<compile_context>
chip_gen: v7x
topology: tpu7x:2x2x1
jax: 0.10.0
libtpu: 0.0.40
codegen_flags: <defaults>
</compile_context>

<pallas_src>
import math

import jax
import jax.numpy as jnp
from jax.experimental import pallas as pl
from jax.experimental.pallas import tpu as pltpu

# ----------------------------- config ---------------------------------------
BATCH = 2
SEQ = 8
HIDDEN = 32
NUM_HEADS = 4
HEAD_DIM = HIDDEN // NUM_HEADS
INTERMEDIATE = 64
NUM_LAYERS = 2
LN_EPS = 1e-12
NEG_INF = -1e30


# ----------------------------- kernel helpers --------------------------------
def _layernorm(x, g, b):
    mu = jnp.mean(x, axis=-1, keepdims=True)
    var = jnp.mean((x - mu) ** 2, axis=-1, keepdims=True)
    return (x - mu) * jax.lax.rsqrt(var + LN_EPS) * g + b


def _erf(x):
    # Abramowitz & Stegun 7.1.26 (|abs err| <= 1.5e-7). Uses only exp/mul/add/where/
    # reciprocal, which all have guaranteed Mosaic lowerings (an erf primitive lowering
    # is not guaranteed), so the HF erf-based "gelu" semantics are preserved safely.
    a1, a2, a3, a4, a5 = 0.254829592, -0.284496736, 1.421413741, -1.453152027, 1.061405429
    p = 0.3275911
    z = jnp.abs(x)
    t = pl.reciprocal(1.0 + p * z, approx=True)      # divide on EUP, off the VALU
    poly = ((((a5 * t + a4) * t + a3) * t + a2) * t + a1) * t
    y = 1.0 - poly * jnp.exp(-z * z)
    return jnp.where(x >= 0, y, -y)


def _gelu(x):
    # HF "gelu": 0.5 * x * (1 + erf(x / sqrt(2)))
    return 0.5 * x * (1.0 + _erf(x * (1.0 / math.sqrt(2.0))))


# ----------------------------- the fused encoder kernel ----------------------
def _make_encoder_kernel(num_layers, add_residual):
    def kernel(*refs):
        if add_residual:
            (x_ref, res_ref, bias_ref,
             wqkv_ref, bqkv_ref, wo_ref, bo_ref, g1_ref, b1_ref,
             wi_ref, bi_ref, wo2_ref, bo2_ref, g2_ref, b2_ref,
             out_ref) = refs
        else:
            (x_ref, bias_ref,
             wqkv_ref, bqkv_ref, wo_ref, bo_ref, g1_ref, b1_ref,
             wi_ref, bi_ref, wo2_ref, bo2_ref, g2_ref, b2_ref,
             out_ref) = refs
            res_ref = None

        scale = 1.0 / math.sqrt(HEAD_DIM)
        attn_bias = bias_ref[...]                            # (BS, BS) block-diag additive mask
        res = res_ref[...].astype(jnp.float32) if add_residual else None

        h = x_ref[...].astype(jnp.float32)                   # (BS, H), live across all layers

        for l in range(num_layers):                          # fully unrolled; weights VMEM-resident
            # ---- fused QKV projection: one MXU matmul on flattened activations ----
            qkv = jnp.dot(h, wqkv_ref[l],
                          preferred_element_type=jnp.float32) + bqkv_ref[l]     # (BS, 3H)
            q = qkv[:, 0 * HIDDEN:1 * HIDDEN] * scale        # pre-scale q once
            k = qkv[:, 1 * HIDDEN:2 * HIDDEN]
            v = qkv[:, 2 * HIDDEN:3 * HIDDEN]

            # ---- per-head attention on (BS, BS) scores; heads are static lane slices ----
            ctx_parts = []
            for hd in range(NUM_HEADS):
                sl = slice(hd * HEAD_DIM, (hd + 1) * HEAD_DIM)
                qh, kh, vh = q[:, sl], k[:, sl], v[:, sl]    # (BS, HD) lane sub-blocks
                s = jax.lax.dot_general(                     # q . k^T without materializing k.T
                    qh, kh, (((1,), (1,)), ((), ())),
                    preferred_element_type=jnp.float32) + attn_bias             # (BS, BS)
                s = s - jnp.max(s, axis=-1, keepdims=True)
                p = jnp.exp(s)
                denom = jnp.sum(p, axis=-1, keepdims=True)
                ctx_parts.append(
                    jnp.dot(p, vh, preferred_element_type=jnp.float32)
                    * pl.reciprocal(denom, approx=True))     # softmax norm on EUP
            ctx2d = jnp.concatenate(ctx_parts, axis=-1)      # (BS, H), single lane concat

            # ---- BertSelfOutput: dense + residual + LayerNorm ----
            attn = jnp.dot(ctx2d, wo_ref[l],
                           preferred_element_type=jnp.float32) + bo_ref[l]
            h1 = _layernorm(attn + h, g1_ref[l], b1_ref[l])

            # ---- BertIntermediate (erf-GELU) + BertOutput ----
            inter = _gelu(jnp.dot(h1, wi_ref[l],
                                  preferred_element_type=jnp.float32) + bi_ref[l])
            ffn = jnp.dot(inter, wo2_ref[l],
                          preferred_element_type=jnp.float32) + bo2_ref[l]
            h = _layernorm(ffn + h1, g2_ref[l], b2_ref[l])

            if add_residual:
                h = h + res                                  # fused residual_h add

        out_ref[...] = h.astype(out_ref.dtype)               # single store at the end

    return kernel


# ----------------------------- wrapper ----------------------------------------
def bert_encoder_pallas(hidden_states, stacked_params, residual_h=None):
    """Mirrors BertEncoder.forward (output_hidden_states=output_attentions=False,
    attention_mask=None, head_mask=None, is_decoder=False). Returns (hidden_states,)."""
    B, S, H = hidden_states.shape
    BS = B * S
    x2d = hidden_states.reshape(BS, H)
    num_layers = stacked_params[0].shape[0]
    add_residual = residual_h is not None

    # Additive cross-batch mask on the flattened (BS, BS) score matrix:
    # 0 within a sequence, -1e30 across sequences (so softmax stays per-sequence).
    batch_ids = jnp.repeat(jnp.arange(B, dtype=jnp.int32), S)
    attn_bias = jnp.where(batch_ids[:, None] == batch_ids[None, :],
                          0.0, NEG_INF).astype(jnp.float32)

    inputs = [x2d]
    if add_residual:
        res2d = jnp.broadcast_to(
            residual_h[:, None, :].astype(hidden_states.dtype), (B, S, H)
        ).reshape(BS, H)
        inputs.append(res2d)
    inputs.append(attn_bias)
    inputs.extend(stacked_params)   # (wqkv, bqkv, wo, bo, g1, b1, wi, bi, wo2, bo2, g2, b2)

    # No grid: everything (activations + full weight stack, ~70 KiB) lives in VMEM for
    # the whole call; the layer loop is unrolled inside the kernel.
    # TODO(synk): at real BERT sizes (H=768, I=3072, L>=12) reintroduce a layer grid with
    # per-layer bf16 weight slabs (double-buffered prefetch) and a parallel row-tile axis.
    vmem = pl.BlockSpec(memory_space=pltpu.MemorySpace.VMEM)
    out2d = pl.pallas_call(
        _make_encoder_kernel(num_layers, add_residual),
        out_shape=jax.ShapeDtypeStruct((BS, H), hidden_states.dtype),
        in_specs=[vmem] * len(inputs),
        out_specs=vmem,
    )(*inputs)
    return (out2d.reshape(B, S, H),)


# ----------------------------- pure-JAX reference ------------------------------
def _layernorm_ref(x, g, b):
    mu = jnp.mean(x, axis=-1, keepdims=True)
    var = jnp.mean((x - mu) ** 2, axis=-1, keepdims=True)
    return (x - mu) * jax.lax.rsqrt(var + LN_EPS) * g + b


def bert_layer_ref(x, p):
    (wq, bq, wk, bk, wv, bv, wo, bo, g1, b1, wi, bi, wo2, bo2, g2, b2) = p
    B, S, H = x.shape

    def dense(t, w, b):
        return jnp.einsum("bsd,de->bse", t, w) + b

    def heads(t):
        return t.reshape(B, S, NUM_HEADS, HEAD_DIM).transpose(0, 2, 1, 3)

    q, k, v = heads(dense(x, wq, bq)), heads(dense(x, wk, bk)), heads(dense(x, wv, bv))
    s = jnp.einsum("bhqd,bhkd->bhqk", q, k) / math.sqrt(HEAD_DIM)
    a = jax.nn.softmax(s, axis=-1)
    ctx = jnp.einsum("bhqk,bhkd->bhqd", a, v).transpose(0, 2, 1, 3).reshape(B, S, H)
    h1 = _layernorm_ref(dense(ctx, wo, bo) + x, g1, b1)
    inter = jax.nn.gelu(dense(h1, wi, bi), approximate=False)     # exact erf GELU
    return _layernorm_ref(dense(inter, wo2, bo2) + h1, g2, b2)


def bert_encoder_ref(x, all_layer_params, residual_h=None):
    for p in all_layer_params:
        x = bert_layer_ref(x, p)
        if residual_h is not None:
            x = x + residual_h[:, None, :]
    return x


# ----------------------------- deterministic params ----------------------------
def init_layer_params(key):
    ks = jax.random.split(key, 10)
    std = 0.02
    wq = jax.random.normal(ks[0], (HIDDEN, HIDDEN), jnp.float32) * std
    wk = jax.random.normal(ks[1], (HIDDEN, HIDDEN), jnp.float32) * std
    wv = jax.random.normal(ks[2], (HIDDEN, HIDDEN), jnp.float32) * std
    wo = jax.random.normal(ks[3], (HIDDEN, HIDDEN), jnp.float32) * std
    wi = jax.random.normal(ks[4], (HIDDEN, INTERMEDIATE), jnp.float32) * std
    wo2 = jax.random.normal(ks[5], (INTERMEDIATE, HIDDEN), jnp.float32) * std
    bq = jax.random.normal(ks[6], (1, HIDDEN), jnp.float32) * std
    bk = jax.random.normal(ks[7], (1, HIDDEN), jnp.float32) * std
    bv = jax.random.normal(ks[8], (1, HIDDEN), jnp.float32) * std
    bo = jnp.zeros((1, HIDDEN), jnp.float32)
    bi = jnp.zeros((1, INTERMEDIATE), jnp.float32)
    bo2 = jnp.zeros((1, HIDDEN), jnp.float32)
    g1 = jnp.ones((1, HIDDEN), jnp.float32)
    b1 = jnp.zeros((1, HIDDEN), jnp.float32)
    g2 = jnp.ones((1, HIDDEN), jnp.float32)
    b2 = jnp.zeros((1, HIDDEN), jnp.float32)
    return (wq, bq, wk, bk, wv, bv, wo, bo, g1, b1, wi, bi, wo2, bo2, g2, b2)


def stack_and_fuse(all_layer_params):
    """Stack per-layer params with a leading layer dim and fuse Q/K/V into (H, 3H)."""
    def get(i):
        return jnp.stack([p[i] for p in all_layer_params], axis=0)

    wqkv = jnp.stack([jnp.concatenate([p[0], p[2], p[4]], axis=1)
                      for p in all_layer_params], axis=0)          # (L, H, 3H)
    bqkv = jnp.stack([jnp.concatenate([p[1], p[3], p[5]], axis=1)
                      for p in all_layer_params], axis=0)          # (L, 1, 3H)
    wo, bo = get(6), get(7)
    g1, b1 = get(8), get(9)
    wi, bi = get(10), get(11)
    wo2, bo2 = get(12), get(13)
    g2, b2 = get(14), get(15)
    return (wqkv, bqkv, wo, bo, g1, b1, wi, bi, wo2, bo2, g2, b2)


# ----------------------------- driver ------------------------------------------
if __name__ == "__main__":
    root = jax.random.PRNGKey(0)
    kx, kr, *layer_keys = jax.random.split(root, NUM_LAYERS + 2)

    hidden_states = jax.random.normal(kx, (BATCH, SEQ, HIDDEN), jnp.float32)
    all_layer_params = [init_layer_params(k) for k in layer_keys]
    stacked = stack_and_fuse(all_layer_params)

    # --- main configuration (residual_h=None, matches the spec config) ---
    out = bert_encoder_pallas(hidden_states, stacked, residual_h=None)
    final_hidden = jax.block_until_ready(out[0])
    ref = bert_encoder_ref(hidden_states, all_layer_params, residual_h=None)
    assert final_hidden.shape == (BATCH, SEQ, HIDDEN)
    # 1e-3 tolerance: approximate EUP reciprocal (softmax + erf poly) + A&S erf error
    # + MXU accumulation order differ slightly from the pure-JAX reference.
    err = float(jnp.max(jnp.abs(final_hidden - ref)))
    assert jnp.allclose(final_hidden, ref, atol=1e-3, rtol=1e-3), (
        f"Pallas output mismatch vs JAX reference (max abs err={err})")

    # --- residual_h path (fused in-kernel broadcast add after each layer) ---
    residual_h = jax.random.normal(kr, (BATCH, HIDDEN), jnp.float32) * 0.1
    out_r = bert_encoder_pallas(hidden_states, stacked, residual_h=residual_h)
    final_r = jax.block_until_ready(out_r[0])
    ref_r = bert_encoder_ref(hidden_states, all_layer_params, residual_h=residual_h)
    err_r = float(jnp.max(jnp.abs(final_r - ref_r)))
    assert jnp.allclose(final_r, ref_r, atol=1e-3, rtol=1e-3), (
        f"Pallas residual-path mismatch vs JAX reference (max abs err={err_r})")

    print("KERNEL_OK")
</pallas_src>

<mosaic_0001>
module attributes {stable_mosaic.version = 11 : i64} {
  func.func @kernel(%arg0: memref<16x32xf32, #tpu.memory_space<vmem>>, %arg1: memref<16x16xf32, #tpu.memory_space<vmem>>, %arg2: memref<2x32x96xf32, #tpu.memory_space<vmem>>, %arg3: memref<2x1x96xf32, #tpu.memory_space<vmem>>, %arg4: memref<2x32x32xf32, #tpu.memory_space<vmem>>, %arg5: memref<2x1x32xf32, #tpu.memory_space<vmem>>, %arg6: memref<2x1x32xf32, #tpu.memory_space<vmem>>, %arg7: memref<2x1x32xf32, #tpu.memory_space<vmem>>, %arg8: memref<2x32x64xf32, #tpu.memory_space<vmem>>, %arg9: memref<2x1x64xf32, #tpu.memory_space<vmem>>, %arg10: memref<2x64x32xf32, #tpu.memory_space<vmem>>, %arg11: memref<2x1x32xf32, #tpu.memory_space<vmem>>, %arg12: memref<2x1x32xf32, #tpu.memory_space<vmem>>, %arg13: memref<2x1x32xf32, #tpu.memory_space<vmem>>, %arg14: memref<16x32xf32, #tpu.memory_space<vmem>>) attributes {dimension_semantics = [], scalar_prefetch = 0 : i64, scratch_operands = 0 : i64, tpu.core_type = #tpu.core_type<tc>} {
    %c0 = arith.constant 0 : index
    %c0_0 = arith.constant 0 : index
    %0 = vector.load %arg1[%c0, %c0_0] : memref<16x16xf32, #tpu.memory_space<vmem>>, vector<16x16xf32>
    %c0_1 = arith.constant 0 : index
    %c0_2 = arith.constant 0 : index
    %1 = vector.load %arg0[%c0_1, %c0_2] : memref<16x32xf32, #tpu.memory_space<vmem>>, vector<16x32xf32>
    %c0_3 = arith.constant 0 : index
    %c0_4 = arith.constant 0 : index
    %c0_5 = arith.constant 0 : index
    %2 = vector.load %arg2[%c0_3, %c0_4, %c0_5] : memref<2x32x96xf32, #tpu.memory_space<vmem>>, vector<1x32x96xf32>
    %3 = vector.shape_cast %2 : vector<1x32x96xf32> to vector<32x96xf32>
    %cst = arith.constant dense<0.000000e+00> : vector<16x96xf32>
    %4 = tpu.matmul %1, %3, %cst {dimension_numbers = #tpu.dot_dimension_numbers<[1], [0], [0], [1], [0, 0, 1, 1], [], []>} : vector<16x32xf32>, vector<32x96xf32>, vector<16x96xf32> -> vector<16x96xf32>
    %c0_6 = arith.constant 0 : index
    %c0_7 = arith.constant 0 : index
    %c0_8 = arith.constant 0 : index
    %5 = vector.load %arg3[%c0_6, %c0_7, %c0_8] : memref<2x1x96xf32, #tpu.memory_space<vmem>>, vector<1x1x96xf32>
    %6 = vector.shape_cast %5 : vector<1x1x96xf32> to vector<1x96xf32>
    %7 = vector.broadcast %6 : vector<1x96xf32> to vector<16x96xf32>
    %8 = arith.addf %4, %7 : vector<16x96xf32>
    %9 = vector.extract_strided_slice %8 {offsets = [0, 0], sizes = [16, 32], strides = [1, 1]} : vector<16x96xf32> to vector<16x32xf32>
    %cst_9 = arith.constant 0.353553385 : f32
    %10 = vector.broadcast %cst_9 : f32 to vector<16x32xf32>
    %11 = arith.mulf %9, %10 : vector<16x32xf32>
    %12 = vector.extract_strided_slice %8 {offsets = [0, 32], sizes = [16, 32], strides = [1, 1]} : vector<16x96xf32> to vector<16x32xf32>
    %13 = vector.extract_strided_slice %8 {offsets = [0, 64], sizes = [16, 32], strides = [1, 1]} : vector<16x96xf32> to vector<16x32xf32>
    %14 = vector.extract_strided_slice %11 {offsets = [0, 0], sizes = [16, 8], strides = [1, 1]} : vector<16x32xf32> to vector<16x8xf32>
    %15 = vector.extract_strided_slice %12 {offsets = [0, 0], sizes = [16, 8], strides = [1, 1]} : vector<16x32xf32> to vector<16x8xf32>
    %16 = vector.extract_strided_slice %13 {offsets = [0, 0], sizes = [16, 8], strides = [1, 1]} : vector<16x32xf32> to vector<16x8xf32>
    %cst_10 = arith.constant dense<0.000000e+00> : vector<16x16xf32>
    %17 = tpu.matmul %14, %15, %cst_10 {dimension_numbers = #tpu.dot_dimension_numbers<[1], [1], [0], [0], [0, 0, 1, 0], [], []>} : vector<16x8xf32>, vector<16x8xf32>, vector<16x16xf32> -> vector<16x16xf32>
    %18 = arith.addf %17, %0 : vector<16x16xf32>
    %cst_11 = arith.constant dense<0xFF800000> : vector<16xf32>
    %19 = vector.multi_reduction <maximumf>, %18, %cst_11 [1] : vector<16x16xf32> to vector<16xf32>
    %20 = vector.shape_cast %19 : vector<16xf32> to vector<16x1xf32>
    %21 = vector.broadcast %20 : vector<16x1xf32> to vector<16x16xf32>
    %22 = arith.subf %18, %21 : vector<16x16xf32>
    %23 = math.exp %22 : vector<16x16xf32>
    %cst_12 = arith.constant dense<0.000000e+00> : vector<16xf32>
    %24 = vector.multi_reduction <add>, %23, %cst_12 [1] : vector<16x16xf32> to vector<16xf32>
    %25 = vector.shape_cast %24 : vector<16xf32> to vector<16x1xf32>
    %cst_13 = arith.constant dense<0.000000e+00> : vector<16x8xf32>
    %26 = tpu.matmul %23, %16, %cst_13 {dimension_numbers = #tpu.dot_dimension_numbers<[1], [0], [0], [1], [0, 0, 1, 1], [], []>} : vector<16x16xf32>, vector<16x8xf32>, vector<16x8xf32> -> vector<16x8xf32>
    %27 = tpu.reciprocal %25 {approx = true} : vector<16x1xf32> -> vector<16x1xf32>
    %28 = vector.broadcast %27 : vector<16x1xf32> to vector<16x8xf32>
    %29 = arith.mulf %26, %28 : vector<16x8xf32>
    %30 = vector.extract_strided_slice %11 {offsets = [0, 8], sizes = [16, 8], strides = [1, 1]} : vector<16x32xf32> to vector<16x8xf32>
    %31 = vector.extract_strided_slice %12 {offsets = [0, 8], sizes = [16, 8], strides = [1, 1]} : vector<16x32xf32> to vector<16x8xf32>
    %32 = vector.extract_strided_slice %13 {offsets = [0, 8], sizes = [16, 8], strides = [1, 1]} : vector<16x32xf32> to vector<16x8xf32>
    %cst_14 = arith.constant dense<0.000000e+00> : vector<16x16xf32>
    %33 = tpu.matmul %30, %31, %cst_14 {dimension_numbers = #tpu.dot_dimension_numbers<[1], [1], [0], [0], [0, 0, 1, 0], [], []>} : vector<16x8xf32>, vector<16x8xf32>, vector<16x16xf32> -> vector<16x16xf32>
    %34 = arith.addf %33, %0 : vector<16x16xf32>
    %cst_15 = arith.constant dense<0xFF800000> : vector<16xf32>
    %35 = vector.multi_reduction <maximumf>, %34, %cst_15 [1] : vector<16x16xf32> to vector<16xf32>
    %36 = vector.shape_cast %35 : vector<16xf32> to vector<16x1xf32>
    %37 = vector.broadcast %36 : vector<16x1xf32> to vector<16x16xf32>
    %38 = arith.subf %34, %37 : vector<16x16xf32>
    %39 = math.exp %38 : vector<16x16xf32>
    %cst_16 = arith.constant dense<0.000000e+00> : vector<16xf32>
    %40 = vector.multi_reduction <add>, %39, %cst_16 [1] : vector<16x16xf32> to vector<16xf32>
    %41 = vector.shape_cast %40 : vector<16xf32> to vector<16x1xf32>
    %cst_17 = arith.constant dense<0.000000e+00> : vector<16x8xf32>
    %42 = tpu.matmul %39, %32, %cst_17 {dimension_numbers = #tpu.dot_dimension_numbers<[1], [0], [0], [1], [0, 0, 1, 1], [], []>} : vector<16x16xf32>, vector<16x8xf32>, vector<16x8xf32> -> vector<16x8xf32>
    %43 = tpu.reciprocal %41 {approx = true} : vector<16x1xf32> -> vector<16x1xf32>
    %44 = vector.broadcast %43 : vector<16x1xf32> to vector<16x8xf32>
    %45 = arith.mulf %42, %44 : vector<16x8xf32>
    %46 = vector.extract_strided_slice %11 {offsets = [0, 16], sizes = [16, 8], strides = [1, 1]} : vector<16x32xf32> to vector<16x8xf32>
    %47 = vector.extract_strided_slice %12 {offsets = [0, 16], sizes = [16, 8], strides = [1, 1]} : vector<16x32xf32> to vector<16x8xf32>
    %48 = vector.extract_strided_slice %13 {offsets = [0, 16], sizes = [16, 8], strides = [1, 1]} : vector<16x32xf32> to vector<16x8xf32>
    %cst_18 = arith.constant dense<0.000000e+00> : vector<16x16xf32>
    %49 = tpu.matmul %46, %47, %cst_18 {dimension_numbers = #tpu.dot_dimension_numbers<[1], [1], [0], [0], [0, 0, 1, 0], [], []>} : vector<16x8xf32>, vector<16x8xf32>, vector<16x16xf32> -> vector<16x16xf32>
    %50 = arith.addf %49, %0 : vector<16x16xf32>
    %cst_19 = arith.constant dense<0xFF800000> : vector<16xf32>
    %51 = vector.multi_reduction <maximumf>, %50, %cst_19 [1] : vector<16x16xf32> to vector<16xf32>
    %52 = vector.shape_cast %51 : vector<16xf32> to vector<16x1xf32>
    %53 = vector.broadcast %52 : vector<16x1xf32> to vector<16x16xf32>
    %54 = arith.subf %50, %53 : vector<16x16xf32>
    %55 = math.exp %54 : vector<16x16xf32>
    %cst_20 = arith.constant dense<0.000000e+00> : vector<16xf32>
    %56 = vector.multi_reduction <add>, %55, %cst_20 [1] : vector<16x16xf32> to vector<16xf32>
    %57 = vector.shape_cast %56 : vector<16xf32> to vector<16x1xf32>
    %cst_21 = arith.constant dense<0.000000e+00> : vector<16x8xf32>
    %58 = tpu.matmul %55, %48, %cst_21 {dimension_numbers = #tpu.dot_dimension_numbers<[1], [0], [0], [1], [0, 0, 1, 1], [], []>} : vector<16x16xf32>, vector<16x8xf32>, vector<16x8xf32> -> vector<16x8xf32>
    %59 = tpu.reciprocal %57 {approx = true} : vector<16x1xf32> -> vector<16x1xf32>
    %60 = vector.broadcast %59 : vector<16x1xf32> to vector<16x8xf32>
    %61 = arith.mulf %58, %60 : vector<16x8xf32>
    %62 = vector.extract_strided_slice %11 {offsets = [0, 24], sizes = [16, 8], strides = [1, 1]} : vector<16x32xf32> to vector<16x8xf32>
    %63 = vector.extract_strided_slice %12 {offsets = [0, 24], sizes = [16, 8], strides = [1, 1]} : vector<16x32xf32> to vector<16x8xf32>
    %64 = vector.extract_strided_slice %13 {offsets = [0, 24], sizes = [16, 8], strides = [1, 1]} : vector<16x32xf32> to vector<16x8xf32>
    %cst_22 = arith.constant dense<0.000000e+00> : vector<16x16xf32>
    %65 = tpu.matmul %62, %63, %cst_22 {dimension_numbers = #tpu.dot_dimension_numbers<[1], [1], [0], [0], [0, 0, 1, 0], [], []>} : vector<16x8xf32>, vector<16x8xf32>, vector<16x16xf32> -> vector<16x16xf32>
    %66 = arith.addf %65, %0 : vector<16x16xf32>
    %cst_23 = arith.constant dense<0xFF800000> : vector<16xf32>
    %67 = vector.multi_reduction <maximumf>, %66, %cst_23 [1] : vector<16x16xf32> to vector<16xf32>
    %68 = vector.shape_cast %67 : vector<16xf32> to vector<16x1xf32>
    %69 = vector.broadcast %68 : vector<16x1xf32> to vector<16x16xf32>
    %70 = arith.subf %66, %69 : vector<16x16xf32>
    %71 = math.exp %70 : vector<16x16xf32>
    %cst_24 = arith.constant dense<0.000000e+00> : vector<16xf32>
    %72 = vector.multi_reduction <add>, %71, %cst_24 [1] : vector<16x16xf32> to vector<16xf32>
    %73 = vector.shape_cast %72 : vector<16xf32> to vector<16x1xf32>
    %cst_25 = arith.constant dense<0.000000e+00> : vector<16x8xf32>
    %74 = tpu.matmul %71, %64, %cst_25 {dimension_numbers = #tpu.dot_dimension_numbers<[1], [0], [0], [1], [0, 0, 1, 1], [], []>} : vector<16x16xf32>, vector<16x8xf32>, vector<16x8xf32> -> vector<16x8xf32>
    %75 = tpu.reciprocal %73 {approx = true} : vector<16x1xf32> -> vector<16x1xf32>
    %76 = vector.broadcast %75 : vector<16x1xf32> to vector<16x8xf32>
    %77 = arith.mulf %74, %76 : vector<16x8xf32>
    %78 = tpu.concatenate %29, %45, %61, %77 in 1 : vector<16x8xf32>, vector<16x8xf32>, vector<16x8xf32>, vector<16x8xf32> -> vector<16x32xf32>
    %c0_26 = arith.constant 0 : index
    %c0_27 = arith.constant 0 : index
    %c0_28 = arith.constant 0 : index
    %79 = vector.load %arg4[%c0_26, %c0_27, %c0_28] : memref<2x32x32xf32, #tpu.memory_space<vmem>>, vector<1x32x32xf32>
    %80 = vector.shape_cast %79 : vector<1x32x32xf32> to vector<32x32xf32>
    %cst_29 = arith.constant dense<0.000000e+00> : vector<16x32xf32>
    %81 = tpu.matmul %78, %80, %cst_29 {dimension_numbers = #tpu.dot_dimension_numbers<[1], [0], [0], [1], [0, 0, 1, 1], [], []>} : vector<16x32xf32>, vector<32x32xf32>, vector<16x32xf32> -> vector<16x32xf32>
    %c0_30 = arith.constant 0 : index
    %c0_31 = arith.constant 0 : index
    %c0_32 = arith.constant 0 : index
    %82 = vector.load %arg5[%c0_30, %c0_31, %c0_32] : memref<2x1x32xf32, #tpu.memory_space<vmem>>, vector<1x1x32xf32>
    %83 = vector.shape_cast %82 : vector<1x1x32xf32> to vector<1x32xf32>
    %84 = vector.broadcast %83 : vector<1x32xf32> to vector<16x32xf32>
    %85 = arith.addf %81, %84 : vector<16x32xf32>
    %86 = arith.addf %85, %1 : vector<16x32xf32>
    %c0_33 = arith.constant 0 : index
    %c0_34 = arith.constant 0 : index
    %c0_35 = arith.constant 0 : index
    %87 = vector.load %arg6[%c0_33, %c0_34, %c0_35] : memref<2x1x32xf32, #tpu.memory_space<vmem>>, vector<1x1x32xf32>
    %88 = vector.shape_cast %87 : vector<1x1x32xf32> to vector<1x32xf32>
    %c0_36 = arith.constant 0 : index
    %c0_37 = arith.constant 0 : index
    %c0_38 = arith.constant 0 : index
    %89 = vector.load %arg7[%c0_36, %c0_37, %c0_38] : memref<2x1x32xf32, #tpu.memory_space<vmem>>, vector<1x1x32xf32>
    %90 = vector.shape_cast %89 : vector<1x1x32xf32> to vector<1x32xf32>
    %cst_39 = arith.constant dense<0.000000e+00> : vector<16xf32>
    %91 = vector.multi_reduction <add>, %86, %cst_39 [1] : vector<16x32xf32> to vector<16xf32>
    %92 = vector.shape_cast %91 : vector<16xf32> to vector<16x1xf32>
    %cst_40 = arith.constant 3.200000e+01 : f32
    %93 = vector.broadcast %cst_40 : f32 to vector<16x1xf32>
    %94 = arith.divf %92, %93 : vector<16x1xf32>
    %95 = vector.broadcast %94 : vector<16x1xf32> to vector<16x32xf32>
    %96 = arith.subf %86, %95 : vector<16x32xf32>
    %97 = arith.mulf %96, %96 : vector<16x32xf32>
    %cst_41 = arith.constant dense<0.000000e+00> : vector<16xf32>
    %98 = vector.multi_reduction <add>, %97, %cst_41 [1] : vector<16x32xf32> to vector<16xf32>
    %99 = vector.shape_cast %98 : vector<16xf32> to vector<16x1xf32>
    %cst_42 = arith.constant 3.200000e+01 : f32
    %100 = vector.broadcast %cst_42 : f32 to vector<16x1xf32>
    %101 = arith.divf %99, %100 : vector<16x1xf32>
    %102 = vector.broadcast %94 : vector<16x1xf32> to vector<16x32xf32>
    %103 = arith.subf %86, %102 : vector<16x32xf32>
    %cst_43 = arith.constant 9.99999996E-13 : f32
    %104 = vector.broadcast %cst_43 : f32 to vector<16x1xf32>
    %105 = arith.addf %101, %104 : vector<16x1xf32>
    %106 = math.rsqrt %105 : vector<16x1xf32>
    %107 = vector.broadcast %106 : vector<16x1xf32> to vector<16x32xf32>
    %108 = arith.mulf %103, %107 : vector<16x32xf32>
    %109 = vector.broadcast %88 : vector<1x32xf32> to vector<16x32xf32>
    %110 = arith.mulf %108, %109 : vector<16x32xf32>
    %111 = vector.broadcast %90 : vector<1x32xf32> to vector<16x32xf32>
    %112 = arith.addf %110, %111 : vector<16x32xf32>
    %c0_44 = arith.constant 0 : index
    %c0_45 = arith.constant 0 : index
    %c0_46 = arith.constant 0 : index
    %113 = vector.load %arg8[%c0_44, %c0_45, %c0_46] : memref<2x32x64xf32, #tpu.memory_space<vmem>>, vector<1x32x64xf32>
    %114 = vector.shape_cast %113 : vector<1x32x64xf32> to vector<32x64xf32>
    %cst_47 = arith.constant dense<0.000000e+00> : vector<16x64xf32>
    %115 = tpu.matmul %112, %114, %cst_47 {dimension_numbers = #tpu.dot_dimension_numbers<[1], [0], [0], [1], [0, 0, 1, 1], [], []>} : vector<16x32xf32>, vector<32x64xf32>, vector<16x64xf32> -> vector<16x64xf32>
    %c0_48 = arith.constant 0 : index
    %c0_49 = arith.constant 0 : index
    %c0_50 = arith.constant 0 : index
    %116 = vector.load %arg9[%c0_48, %c0_49, %c0_50] : memref<2x1x64xf32, #tpu.memory_space<vmem>>, vector<1x1x64xf32>
    %117 = vector.shape_cast %116 : vector<1x1x64xf32> to vector<1x64xf32>
    %118 = vector.broadcast %117 : vector<1x64xf32> to vector<16x64xf32>
    %119 = arith.addf %115, %118 : vector<16x64xf32>
    %cst_51 = arith.constant 5.000000e-01 : f32
    %120 = vector.broadcast %cst_51 : f32 to vector<16x64xf32>
    %121 = arith.mulf %120, %119 : vector<16x64xf32>
    %cst_52 = arith.constant 0.707106769 : f32
    %122 = vector.broadcast %cst_52 : f32 to vector<16x64xf32>
    %123 = arith.mulf %119, %122 : vector<16x64xf32>
    %124 = math.absf %123 : vector<16x64xf32>
    %cst_53 = arith.constant 0.327591091 : f32
    %125 = vector.broadcast %cst_53 : f32 to vector<16x64xf32>
    %126 = arith.mulf %125, %124 : vector<16x64xf32>
    %cst_54 = arith.constant 1.000000e+00 : f32
    %127 = vector.broadcast %cst_54 : f32 to vector<16x64xf32>
    %128 = arith.addf %127, %126 : vector<16x64xf32>
    %129 = tpu.reciprocal %128 {approx = true} : vector<16x64xf32> -> vector<16x64xf32>
    %cst_55 = arith.constant 1.06140542 : f32
    %130 = vector.broadcast %cst_55 : f32 to vector<16x64xf32>
    %131 = arith.mulf %130, %129 : vector<16x64xf32>
    %cst_56 = arith.constant -1.45315206 : f32
    %132 = vector.broadcast %cst_56 : f32 to vector<16x64xf32>
    %133 = arith.addf %131, %132 : vector<16x64xf32>
    %134 = arith.mulf %133, %129 : vector<16x64xf32>
    %cst_57 = arith.constant 1.42141378 : f32
    %135 = vector.broadcast %cst_57 : f32 to vector<16x64xf32>
    %136 = arith.addf %134, %135 : vector<16x64xf32>
    %137 = arith.mulf %136, %129 : vector<16x64xf32>
    %cst_58 = arith.constant -0.284496725 : f32
    %138 = vector.broadcast %cst_58 : f32 to vector<16x64xf32>
    %139 = arith.addf %137, %138 : vector<16x64xf32>
    %140 = arith.mulf %139, %129 : vector<16x64xf32>
    %cst_59 = arith.constant 0.254829586 : f32
    %141 = vector.broadcast %cst_59 : f32 to vector<16x64xf32>
    %142 = arith.addf %140, %141 : vector<16x64xf32>
    %143 = arith.mulf %142, %129 : vector<16x64xf32>
    %cst_60 = arith.constant 0.000000e+00 : f32
    %144 = vector.broadcast %cst_60 : f32 to vector<16x64xf32>
    %145 = arith.subf %144, %124 : vector<16x64xf32>
    %146 = arith.mulf %145, %124 : vector<16x64xf32>
    %147 = math.exp %146 : vector<16x64xf32>
    %148 = arith.mulf %143, %147 : vector<16x64xf32>
    %cst_61 = arith.constant 1.000000e+00 : f32
    %149 = vector.broadcast %cst_61 : f32 to vector<16x64xf32>
    %150 = arith.subf %149, %148 : vector<16x64xf32>
    %cst_62 = arith.constant 0.000000e+00 : f32
    %151 = vector.broadcast %cst_62 : f32 to vector<16x64xf32>
    %152 = arith.cmpf oge, %123, %151 : vector<16x64xf32>
    %cst_63 = arith.constant 0.000000e+00 : f32
    %153 = vector.broadcast %cst_63 : f32 to vector<16x64xf32>
    %154 = arith.subf %153, %150 : vector<16x64xf32>
    %155 = arith.select %152, %150, %154 : vector<16x64xi1>, vector<16x64xf32>
    %cst_64 = arith.constant 1.000000e+00 : f32
    %156 = vector.broadcast %cst_64 : f32 to vector<16x64xf32>
    %157 = arith.addf %156, %155 : vector<16x64xf32>
    %158 = arith.mulf %121, %157 : vector<16x64xf32>
    %c0_65 = arith.constant 0 : index
    %c0_66 = arith.constant 0 : index
    %c0_67 = arith.constant 0 : index
    %159 = vector.load %arg10[%c0_65, %c0_66, %c0_67] : memref<2x64x32xf32, #tpu.memory_space<vmem>>, vector<1x64x32xf32>
    %160 = vector.shape_cast %159 : vector<1x64x32xf32> to vector<64x32xf32>
    %cst_68 = arith.constant dense<0.000000e+00> : vector<16x32xf32>
    %161 = tpu.matmul %158, %160, %cst_68 {dimension_numbers = #tpu.dot_dimension_numbers<[1], [0], [0], [1], [0, 0, 1, 1], [], []>} : vector<16x64xf32>, vector<64x32xf32>, vector<16x32xf32> -> vector<16x32xf32>
    %c0_69 = arith.constant 0 : index
    %c0_70 = arith.constant 0 : index
    %c0_71 = arith.constant 0 : index
    %162 = vector.load %arg11[%c0_69, %c0_70, %c0_71] : memref<2x1x32xf32, #tpu.memory_space<vmem>>, vector<1x1x32xf32>
    %163 = vector.shape_cast %162 : vector<1x1x32xf32> to vector<1x32xf32>
    %164 = vector.broadcast %163 : vector<1x32xf32> to vector<16x32xf32>
    %165 = arith.addf %161, %164 : vector<16x32xf32>
    %166 = arith.addf %165, %112 : vector<16x32xf32>
    %c0_72 = arith.constant 0 : index
    %c0_73 = arith.constant 0 : index
    %c0_74 = arith.constant 0 : index
    %167 = vector.load %arg12[%c0_72, %c0_73, %c0_74] : memref<2x1x32xf32, #tpu.memory_space<vmem>>, vector<1x1x32xf32>
    %168 = vector.shape_cast %167 : vector<1x1x32xf32> to vector<1x32xf32>
    %c0_75 = arith.constant 0 : index
    %c0_76 = arith.constant 0 : index
    %c0_77 = arith.constant 0 : index
    %169 = vector.load %arg13[%c0_75, %c0_76, %c0_77] : memref<2x1x32xf32, #tpu.memory_space<vmem>>, vector<1x1x32xf32>
    %170 = vector.shape_cast %169 : vector<1x1x32xf32> to vector<1x32xf32>
    %cst_78 = arith.constant dense<0.000000e+00> : vector<16xf32>
    %171 = vector.multi_reduction <add>, %166, %cst_78 [1] : vector<16x32xf32> to vector<16xf32>
    %172 = vector.shape_cast %171 : vector<16xf32> to vector<16x1xf32>
    %cst_79 = arith.constant 3.200000e+01 : f32
    %173 = vector.broadcast %cst_79 : f32 to vector<16x1xf32>
    %174 = arith.divf %172, %173 : vector<16x1xf32>
    %175 = vector.broadcast %174 : vector<16x1xf32> to vector<16x32xf32>
    %176 = arith.subf %166, %175 : vector<16x32xf32>
    %177 = arith.mulf %176, %176 : vector<16x32xf32>
    %cst_80 = arith.constant dense<0.000000e+00> : vector<16xf32>
    %178 = vector.multi_reduction <add>, %177, %cst_80 [1] : vector<16x32xf32> to vector<16xf32>
    %179 = vector.shape_cast %178 : vector<16xf32> to vector<16x1xf32>
    %cst_81 = arith.constant 3.200000e+01 : f32
    %180 = vector.broadcast %cst_81 : f32 to vector<16x1xf32>
    %181 = arith.divf %179, %180 : vector<16x1xf32>
    %182 = vector.broadcast %174 : vector<16x1xf32> to vector<16x32xf32>
    %183 = arith.subf %166, %182 : vector<16x32xf32>
    %cst_82 = arith.constant 9.99999996E-13 : f32
    %184 = vector.broadcast %cst_82 : f32 to vector<16x1xf32>
    %185 = arith.addf %181, %184 : vector<16x1xf32>
    %186 = math.rsqrt %185 : vector<16x1xf32>
    %187 = vector.broadcast %186 : vector<16x1xf32> to vector<16x32xf32>
    %188 = arith.mulf %183, %187 : vector<16x32xf32>
    %189 = vector.broadcast %168 : vector<1x32xf32> to vector<16x32xf32>
    %190 = arith.mulf %188, %189 : vector<16x32xf32>
    %191 = vector.broadcast %170 : vector<1x32xf32> to vector<16x32xf32>
    %192 = arith.addf %190, %191 : vector<16x32xf32>
    %c1 = arith.constant 1 : index
    %c0_83 = arith.constant 0 : index
    %c0_84 = arith.constant 0 : index
    %193 = vector.load %arg2[%c1, %c0_83, %c0_84] : memref<2x32x96xf32, #tpu.memory_space<vmem>>, vector<1x32x96xf32>
    %194 = vector.shape_cast %193 : vector<1x32x96xf32> to vector<32x96xf32>
    %cst_85 = arith.constant dense<0.000000e+00> : vector<16x96xf32>
    %195 = tpu.matmul %192, %194, %cst_85 {dimension_numbers = #tpu.dot_dimension_numbers<[1], [0], [0], [1], [0, 0, 1, 1], [], []>} : vector<16x32xf32>, vector<32x96xf32>, vector<16x96xf32> -> vector<16x96xf32>
    %c1_86 = arith.constant 1 : index
    %c0_87 = arith.constant 0 : index
    %c0_88 = arith.constant 0 : index
    %196 = vector.load %arg3[%c1_86, %c0_87, %c0_88] : memref<2x1x96xf32, #tpu.memory_space<vmem>>, vector<1x1x96xf32>
    %197 = vector.shape_cast %196 : vector<1x1x96xf32> to vector<1x96xf32>
    %198 = vector.broadcast %197 : vector<1x96xf32> to vector<16x96xf32>
    %199 = arith.addf %195, %198 : vector<16x96xf32>
    %200 = vector.extract_strided_slice %199 {offsets = [0, 0], sizes = [16, 32], strides = [1, 1]} : vector<16x96xf32> to vector<16x32xf32>
    %cst_89 = arith.constant 0.353553385 : f32
    %201 = vector.broadcast %cst_89 : f32 to vector<16x32xf32>
    %202 = arith.mulf %200, %201 : vector<16x32xf32>
    %203 = vector.extract_strided_slice %199 {offsets = [0, 32], sizes = [16, 32], strides = [1, 1]} : vector<16x96xf32> to vector<16x32xf32>
    %204 = vector.extract_strided_slice %199 {offsets = [0, 64], sizes = [16, 32], strides = [1, 1]} : vector<16x96xf32> to vector<16x32xf32>
    %205 = vector.extract_strided_slice %202 {offsets = [0, 0], sizes = [16, 8], strides = [1, 1]} : vector<16x32xf32> to vector<16x8xf32>
    %206 = vector.extract_strided_slice %203 {offsets = [0, 0], sizes = [16, 8], strides = [1, 1]} : vector<16x32xf32> to vector<16x8xf32>
    %207 = vector.extract_strided_slice %204 {offsets = [0, 0], sizes = [16, 8], strides = [1, 1]} : vector<16x32xf32> to vector<16x8xf32>
    %cst_90 = arith.constant dense<0.000000e+00> : vector<16x16xf32>
    %208 = tpu.matmul %205, %206, %cst_90 {dimension_numbers = #tpu.dot_dimension_numbers<[1], [1], [0], [0], [0, 0, 1, 0], [], []>} : vector<16x8xf32>, vector<16x8xf32>, vector<16x16xf32> -> vector<16x16xf32>
    %209 = arith.addf %208, %0 : vector<16x16xf32>
    %cst_91 = arith.constant dense<0xFF800000> : vector<16xf32>
    %210 = vector.multi_reduction <maximumf>, %209, %cst_91 [1] : vector<16x16xf32> to vector<16xf32>
    %211 = vector.shape_cast %210 : vector<16xf32> to vector<16x1xf32>
    %212 = vector.broadcast %211 : vector<16x1xf32> to vector<16x16xf32>
    %213 = arith.subf %209, %212 : vector<16x16xf32>
    %214 = math.exp %213 : vector<16x16xf32>
    %cst_92 = arith.constant dense<0.000000e+00> : vector<16xf32>
    %215 = vector.multi_reduction <add>, %214, %cst_92 [1] : vector<16x16xf32> to vector<16xf32>
    %216 = vector.shape_cast %215 : vector<16xf32> to vector<16x1xf32>
    %cst_93 = arith.constant dense<0.000000e+00> : vector<16x8xf32>
    %217 = tpu.matmul %214, %207, %cst_93 {dimension_numbers = #tpu.dot_dimension_numbers<[1], [0], [0], [1], [0, 0, 1, 1], [], []>} : vector<16x16xf32>, vector<16x8xf32>, vector<16x8xf32> -> vector<16x8xf32>
    %218 = tpu.reciprocal %216 {approx = true} : vector<16x1xf32> -> vector<16x1xf32>
    %219 = vector.broadcast %218 : vector<16x1xf32> to vector<16x8xf32>
    %220 = arith.mulf %217, %219 : vector<16x8xf32>
    %221 = vector.extract_strided_slice %202 {offsets = [0, 8], sizes = [16, 8], strides = [1, 1]} : vector<16x32xf32> to vector<16x8xf32>
    %222 = vector.extract_strided_slice %203 {offsets = [0, 8], sizes = [16, 8], strides = [1, 1]} : vector<16x32xf32> to vector<16x8xf32>
    %223 = vector.extract_strided_slice %204 {offsets = [0, 8], sizes = [16, 8], strides = [1, 1]} : vector<16x32xf32> to vector<16x8xf32>
    %cst_94 = arith.constant dense<0.000000e+00> : vector<16x16xf32>
    %224 = tpu.matmul %221, %222, %cst_94 {dimension_numbers = #tpu.dot_dimension_numbers<[1], [1], [0], [0], [0, 0, 1, 0], [], []>} : vector<16x8xf32>, vector<16x8xf32>, vector<16x16xf32> -> vector<16x16xf32>
    %225 = arith.addf %224, %0 : vector<16x16xf32>
    %cst_95 = arith.constant dense<0xFF800000> : vector<16xf32>
    %226 = vector.multi_reduction <maximumf>, %225, %cst_95 [1] : vector<16x16xf32> to vector<16xf32>
    %227 = vector.shape_cast %226 : vector<16xf32> to vector<16x1xf32>
    %228 = vector.broadcast %227 : vector<16x1xf32> to vector<16x16xf32>
    %229 = arith.subf %225, %228 : vector<16x16xf32>
    %230 = math.exp %229 : vector<16x16xf32>
    %cst_96 = arith.constant dense<0.000000e+00> : vector<16xf32>
    %231 = vector.multi_reduction <add>, %230, %cst_96 [1] : vector<16x16xf32> to vector<16xf32>
    %232 = vector.shape_cast %231 : vector<16xf32> to vector<16x1xf32>
    %cst_97 = arith.constant dense<0.000000e+00> : vector<16x8xf32>
    %233 = tpu.matmul %230, %223, %cst_97 {dimension_numbers = #tpu.dot_dimension_numbers<[1], [0], [0], [1], [0, 0, 1, 1], [], []>} : vector<16x16xf32>, vector<16x8xf32>, vector<16x8xf32> -> vector<16x8xf32>
    %234 = tpu.reciprocal %232 {approx = true} : vector<16x1xf32> -> vector<16x1xf32>
    %235 = vector.broadcast %234 : vector<16x1xf32> to vector<16x8xf32>
    %236 = arith.mulf %233, %235 : vector<16x8xf32>
    %237 = vector.extract_strided_slice %202 {offsets = [0, 16], sizes = [16, 8], strides = [1, 1]} : vector<16x32xf32> to vector<16x8xf32>
    %238 = vector.extract_strided_slice %203 {offsets = [0, 16], sizes = [16, 8], strides = [1, 1]} : vector<16x32xf32> to vector<16x8xf32>
    %239 = vector.extract_strided_slice %204 {offsets = [0, 16], sizes = [16, 8], strides = [1, 1]} : vector<16x32xf32> to vector<16x8xf32>
    %cst_98 = arith.constant dense<0.000000e+00> : vector<16x16xf32>
    %240 = tpu.matmul %237, %238, %cst_98 {dimension_numbers = #tpu.dot_dimension_numbers<[1], [1], [0], [0], [0, 0, 1, 0], [], []>} : vector<16x8xf32>, vector<16x8xf32>, vector<16x16xf32> -> vector<16x16xf32>
    %241 = arith.addf %240, %0 : vector<16x16xf32>
    %cst_99 = arith.constant dense<0xFF800000> : vector<16xf32>
    %242 = vector.multi_reduction <maximumf>, %241, %cst_99 [1] : vector<16x16xf32> to vector<16xf32>
    %243 = vector.shape_cast %242 : vector<16xf32> to vector<16x1xf32>
    %244 = vector.broadcast %243 : vector<16x1xf32> to vector<16x16xf32>
    %245 = arith.subf %241, %244 : vector<16x16xf32>
    %246 = math.exp %245 : vector<16x16xf32>
    %cst_100 = arith.constant dense<0.000000e+00> : vector<16xf32>
    %247 = vector.multi_reduction <add>, %246, %cst_100 [1] : vector<16x16xf32> to vector<16xf32>
    %248 = vector.shape_cast %247 : vector<16xf32> to vector<16x1xf32>
    %cst_101 = arith.constant dense<0.000000e+00> : vector<16x8xf32>
    %249 = tpu.matmul %246, %239, %cst_101 {dimension_numbers = #tpu.dot_dimension_numbers<[1], [0], [0], [1], [0, 0, 1, 1], [], []>} : vector<16x16xf32>, vector<16x8xf32>, vector<16x8xf32> -> vector<16x8xf32>
    %250 = tpu.reciprocal %248 {approx = true} : vector<16x1xf32> -> vector<16x1xf32>
    %251 = vector.broadcast %250 : vector<16x1xf32> to vector<16x8xf32>
    %252 = arith.mulf %249, %251 : vector<16x8xf32>
    %253 = vector.extract_strided_slice %202 {offsets = [0, 24], sizes = [16, 8], strides = [1, 1]} : vector<16x32xf32> to vector<16x8xf32>
    %254 = vector.extract_strided_slice %203 {offsets = [0, 24], sizes = [16, 8], strides = [1, 1]} : vector<16x32xf32> to vector<16x8xf32>
    %255 = vector.extract_strided_slice %204 {offsets = [0, 24], sizes = [16, 8], strides = [1, 1]} : vector<16x32xf32> to vector<16x8xf32>
    %cst_102 = arith.constant dense<0.000000e+00> : vector<16x16xf32>
    %256 = tpu.matmul %253, %254, %cst_102 {dimension_numbers = #tpu.dot_dimension_numbers<[1], [1], [0], [0], [0, 0, 1, 0], [], []>} : vector<16x8xf32>, vector<16x8xf32>, vector<16x16xf32> -> vector<16x16xf32>
    %257 = arith.addf %256, %0 : vector<16x16xf32>
    %cst_103 = arith.constant dense<0xFF800000> : vector<16xf32>
    %258 = vector.multi_reduction <maximumf>, %257, %cst_103 [1] : vector<16x16xf32> to vector<16xf32>
    %259 = vector.shape_cast %258 : vector<16xf32> to vector<16x1xf32>
    %260 = vector.broadcast %259 : vector<16x1xf32> to vector<16x16xf32>
    %261 = arith.subf %257, %260 : vector<16x16xf32>
    %262 = math.exp %261 : vector<16x16xf32>
    %cst_104 = arith.constant dense<0.000000e+00> : vector<16xf32>
    %263 = vector.multi_reduction <add>, %262, %cst_104 [1] : vector<16x16xf32> to vector<16xf32>
    %264 = vector.shape_cast %263 : vector<16xf32> to vector<16x1xf32>
    %cst_105 = arith.constant dense<0.000000e+00> : vector<16x8xf32>
    %265 = tpu.matmul %262, %255, %cst_105 {dimension_numbers = #tpu.dot_dimension_numbers<[1], [0], [0], [1], [0, 0, 1, 1], [], []>} : vector<16x16xf32>, vector<16x8xf32>, vector<16x8xf32> -> vector<16x8xf32>
    %266 = tpu.reciprocal %264 {approx = true} : vector<16x1xf32> -> vector<16x1xf32>
    %267 = vector.broadcast %266 : vector<16x1xf32> to vector<16x8xf32>
    %268 = arith.mulf %265, %267 : vector<16x8xf32>
    %269 = tpu.concatenate %220, %236, %252, %268 in 1 : vector<16x8xf32>, vector<16x8xf32>, vector<16x8xf32>, vector<16x8xf32> -> vector<16x32xf32>
    %c1_106 = arith.constant 1 : index
    %c0_107 = arith.constant 0 : index
    %c0_108 = arith.constant 0 : index
    %270 = vector.load %arg4[%c1_106, %c0_107, %c0_108] : memref<2x32x32xf32, #tpu.memory_space<vmem>>, vector<1x32x32xf32>
    %271 = vector.shape_cast %270 : vector<1x32x32xf32> to vector<32x32xf32>
    %cst_109 = arith.constant dense<0.000000e+00> : vector<16x32xf32>
    %272 = tpu.matmul %269, %271, %cst_109 {dimension_numbers = #tpu.dot_dimension_numbers<[1], [0], [0], [1], [0, 0, 1, 1], [], []>} : vector<16x32xf32>, vector<32x32xf32>, vector<16x32xf32> -> vector<16x32xf32>
    %c1_110 = arith.constant 1 : index
    %c0_111 = arith.constant 0 : index
    %c0_112 = arith.constant 0 : index
    %273 = vector.load %arg5[%c1_110, %c0_111, %c0_112] : memref<2x1x32xf32, #tpu.memory_space<vmem>>, vector<1x1x32xf32>
    %274 = vector.shape_cast %273 : vector<1x1x32xf32> to vector<1x32xf32>
    %275 = vector.broadcast %274 : vector<1x32xf32> to vector<16x32xf32>
    %276 = arith.addf %272, %275 : vector<16x32xf32>
    %277 = arith.addf %276, %192 : vector<16x32xf32>
    %c1_113 = arith.constant 1 : index
    %c0_114 = arith.constant 0 : index
    %c0_115 = arith.constant 0 : index
    %278 = vector.load %arg6[%c1_113, %c0_114, %c0_115] : memref<2x1x32xf32, #tpu.memory_space<vmem>>, vector<1x1x32xf32>
    %279 = vector.shape_cast %278 : vector<1x1x32xf32> to vector<1x32xf32>
    %c1_116 = arith.constant 1 : index
    %c0_117 = arith.constant 0 : index
    %c0_118 = arith.constant 0 : index
    %280 = vector.load %arg7[%c1_116, %c0_117, %c0_118] : memref<2x1x32xf32, #tpu.memory_space<vmem>>, vector<1x1x32xf32>
    %281 = vector.shape_cast %280 : vector<1x1x32xf32> to vector<1x32xf32>
    %cst_119 = arith.constant dense<0.000000e+00> : vector<16xf32>
    %282 = vector.multi_reduction <add>, %277, %cst_119 [1] : vector<16x32xf32> to vector<16xf32>
    %283 = vector.shape_cast %282 : vector<16xf32> to vector<16x1xf32>
    %cst_120 = arith.constant 3.200000e+01 : f32
    %284 = vector.broadcast %cst_120 : f32 to vector<16x1xf32>
    %285 = arith.divf %283, %284 : vector<16x1xf32>
    %286 = vector.broadcast %285 : vector<16x1xf32> to vector<16x32xf32>
    %287 = arith.subf %277, %286 : vector<16x32xf32>
    %288 = arith.mulf %287, %287 : vector<16x32xf32>
    %cst_121 = arith.constant dense<0.000000e+00> : vector<16xf32>
    %289 = vector.multi_reduction <add>, %288, %cst_121 [1] : vector<16x32xf32> to vector<16xf32>
    %290 = vector.shape_cast %289 : vector<16xf32> to vector<16x1xf32>
    %cst_122 = arith.constant 3.200000e+01 : f32
    %291 = vector.broadcast %cst_122 : f32 to vector<16x1xf32>
    %292 = arith.divf %290, %291 : vector<16x1xf32>
    %293 = vector.broadcast %285 : vector<16x1xf32> to vector<16x32xf32>
    %294 = arith.subf %277, %293 : vector<16x32xf32>
    %cst_123 = arith.constant 9.99999996E-13 : f32
    %295 = vector.broadcast %cst_123 : f32 to vector<16x1xf32>
    %296 = arith.addf %292, %295 : vector<16x1xf32>
    %297 = math.rsqrt %296 : vector<16x1xf32>
    %298 = vector.broadcast %297 : vector<16x1xf32> to vector<16x32xf32>
    %299 = arith.mulf %294, %298 : vector<16x32xf32>
    %300 = vector.broadcast %279 : vector<1x32xf32> to vector<16x32xf32>
    %301 = arith.mulf %299, %300 : vector<16x32xf32>
    %302 = vector.broadcast %281 : vector<1x32xf32> to vector<16x32xf32>
    %303 = arith.addf %301, %302 : vector<16x32xf32>
    %c1_124 = arith.constant 1 : index
    %c0_125 = arith.constant 0 : index
    %c0_126 = arith.constant 0 : index
    %304 = vector.load %arg8[%c1_124, %c0_125, %c0_126] : memref<2x32x64xf32, #tpu.memory_space<vmem>>, vector<1x32x64xf32>
    %305 = vector.shape_cast %304 : vector<1x32x64xf32> to vector<32x64xf32>
    %cst_127 = arith.constant dense<0.000000e+00> : vector<16x64xf32>
    %306 = tpu.matmul %303, %305, %cst_127 {dimension_numbers = #tpu.dot_dimension_numbers<[1], [0], [0], [1], [0, 0, 1, 1], [], []>} : vector<16x32xf32>, vector<32x64xf32>, vector<16x64xf32> -> vector<16x64xf32>
    %c1_128 = arith.constant 1 : index
    %c0_129 = arith.constant 0 : index
    %c0_130 = arith.constant 0 : index
    %307 = vector.load %arg9[%c1_128, %c0_129, %c0_130] : memref<2x1x64xf32, #tpu.memory_space<vmem>>, vector<1x1x64xf32>
    %308 = vector.shape_cast %307 : vector<1x1x64xf32> to vector<1x64xf32>
    %309 = vector.broadcast %308 : vector<1x64xf32> to vector<16x64xf32>
    %310 = arith.addf %306, %309 : vector<16x64xf32>
    %cst_131 = arith.constant 5.000000e-01 : f32
    %311 = vector.broadcast %cst_131 : f32 to vector<16x64xf32>
    %312 = arith.mulf %311, %310 : vector<16x64xf32>
    %cst_132 = arith.constant 0.707106769 : f32
    %313 = vector.broadcast %cst_132 : f32 to vector<16x64xf32>
    %314 = arith.mulf %310, %313 : vector<16x64xf32>
    %315 = math.absf %314 : vector<16x64xf32>
    %cst_133 = arith.constant 0.327591091 : f32
    %316 = vector.broadcast %cst_133 : f32 to vector<16x64xf32>
    %317 = arith.mulf %316, %315 : vector<16x64xf32>
    %cst_134 = arith.constant 1.000000e+00 : f32
    %318 = vector.broadcast %cst_134 : f32 to vector<16x64xf32>
    %319 = arith.addf %318, %317 : vector<16x64xf32>
    %320 = tpu.reciprocal %319 {approx = true} : vector<16x64xf32> -> vector<16x64xf32>
    %cst_135 = arith.constant 1.06140542 : f32
    %321 = vector.broadcast %cst_135 : f32 to vector<16x64xf32>
    %322 = arith.mulf %321, %320 : vector<16x64xf32>
    %cst_136 = arith.constant -1.45315206 : f32
    %323 = vector.broadcast %cst_136 : f32 to vector<16x64xf32>
    %324 = arith.addf %322, %323 : vector<16x64xf32>
    %325 = arith.mulf %324, %320 : vector<16x64xf32>
    %cst_137 = arith.constant 1.42141378 : f32
    %326 = vector.broadcast %cst_137 : f32 to vector<16x64xf32>
    %327 = arith.addf %325, %326 : vector<16x64xf32>
    %328 = arith.mulf %327, %320 : vector<16x64xf32>
    %cst_138 = arith.constant -0.284496725 : f32
    %329 = vector.broadcast %cst_138 : f32 to vector<16x64xf32>
    %330 = arith.addf %328, %329 : vector<16x64xf32>
    %331 = arith.mulf %330, %320 : vector<16x64xf32>
    %cst_139 = arith.constant 0.254829586 : f32
    %332 = vector.broadcast %cst_139 : f32 to vector<16x64xf32>
    %333 = arith.addf %331, %332 : vector<16x64xf32>
    %334 = arith.mulf %333, %320 : vector<16x64xf32>
    %cst_140 = arith.constant 0.000000e+00 : f32
    %335 = vector.broadcast %cst_140 : f32 to vector<16x64xf32>
    %336 = arith.subf %335, %315 : vector<16x64xf32>
    %337 = arith.mulf %336, %315 : vector<16x64xf32>
    %338 = math.exp %337 : vector<16x64xf32>
    %339 = arith.mulf %334, %338 : vector<16x64xf32>
    %cst_141 = arith.constant 1.000000e+00 : f32
    %340 = vector.broadcast %cst_141 : f32 to vector<16x64xf32>
    %341 = arith.subf %340, %339 : vector<16x64xf32>
    %cst_142 = arith.constant 0.000000e+00 : f32
    %342 = vector.broadcast %cst_142 : f32 to vector<16x64xf32>
    %343 = arith.cmpf oge, %314, %342 : vector<16x64xf32>
    %cst_143 = arith.constant 0.000000e+00 : f32
    %344 = vector.broadcast %cst_143 : f32 to vector<16x64xf32>
    %345 = arith.subf %344, %341 : vector<16x64xf32>
    %346 = arith.select %343, %341, %345 : vector<16x64xi1>, vector<16x64xf32>
    %cst_144 = arith.constant 1.000000e+00 : f32
    %347 = vector.broadcast %cst_144 : f32 to vector<16x64xf32>
    %348 = arith.addf %347, %346 : vector<16x64xf32>
    %349 = arith.mulf %312, %348 : vector<16x64xf32>
    %c1_145 = arith.constant 1 : index
    %c0_146 = arith.constant 0 : index
    %c0_147 = arith.constant 0 : index
    %350 = vector.load %arg10[%c1_145, %c0_146, %c0_147] : memref<2x64x32xf32, #tpu.memory_space<vmem>>, vector<1x64x32xf32>
    %351 = vector.shape_cast %350 : vector<1x64x32xf32> to vector<64x32xf32>
    %cst_148 = arith.constant dense<0.000000e+00> : vector<16x32xf32>
    %352 = tpu.matmul %349, %351, %cst_148 {dimension_numbers = #tpu.dot_dimension_numbers<[1], [0], [0], [1], [0, 0, 1, 1], [], []>} : vector<16x64xf32>, vector<64x32xf32>, vector<16x32xf32> -> vector<16x32xf32>
    %c1_149 = arith.constant 1 : index
    %c0_150 = arith.constant 0 : index
    %c0_151 = arith.constant 0 : index
    %353 = vector.load %arg11[%c1_149, %c0_150, %c0_151] : memref<2x1x32xf32, #tpu.memory_space<vmem>>, vector<1x1x32xf32>
    %354 = vector.shape_cast %353 : vector<1x1x32xf32> to vector<1x32xf32>
    %355 = vector.broadcast %354 : vector<1x32xf32> to vector<16x32xf32>
    %356 = arith.addf %352, %355 : vector<16x32xf32>
    %357 = arith.addf %356, %303 : vector<16x32xf32>
    %c1_152 = arith.constant 1 : index
    %c0_153 = arith.constant 0 : index
    %c0_154 = arith.constant 0 : index
    %358 = vector.load %arg12[%c1_152, %c0_153, %c0_154] : memref<2x1x32xf32, #tpu.memory_space<vmem>>, vector<1x1x32xf32>
    %359 = vector.shape_cast %358 : vector<1x1x32xf32> to vector<1x32xf32>
    %c1_155 = arith.constant 1 : index
    %c0_156 = arith.constant 0 : index
    %c0_157 = arith.constant 0 : index
    %360 = vector.load %arg13[%c1_155, %c0_156, %c0_157] : memref<2x1x32xf32, #tpu.memory_space<vmem>>, vector<1x1x32xf32>
    %361 = vector.shape_cast %360 : vector<1x1x32xf32> to vector<1x32xf32>
    %cst_158 = arith.constant dense<0.000000e+00> : vector<16xf32>
    %362 = vector.multi_reduction <add>, %357, %cst_158 [1] : vector<16x32xf32> to vector<16xf32>
    %363 = vector.shape_cast %362 : vector<16xf32> to vector<16x1xf32>
    %cst_159 = arith.constant 3.200000e+01 : f32
    %364 = vector.broadcast %cst_159 : f32 to vector<16x1xf32>
    %365 = arith.divf %363, %364 : vector<16x1xf32>
    %366 = vector.broadcast %365 : vector<16x1xf32> to vector<16x32xf32>
    %367 = arith.subf %357, %366 : vector<16x32xf32>
    %368 = arith.mulf %367, %367 : vector<16x32xf32>
    %cst_160 = arith.constant dense<0.000000e+00> : vector<16xf32>
    %369 = vector.multi_reduction <add>, %368, %cst_160 [1] : vector<16x32xf32> to vector<16xf32>
    %370 = vector.shape_cast %369 : vector<16xf32> to vector<16x1xf32>
    %cst_161 = arith.constant 3.200000e+01 : f32
    %371 = vector.broadcast %cst_161 : f32 to vector<16x1xf32>
    %372 = arith.divf %370, %371 : vector<16x1xf32>
    %373 = vector.broadcast %365 : vector<16x1xf32> to vector<16x32xf32>
    %374 = arith.subf %357, %373 : vector<16x32xf32>
    %cst_162 = arith.constant 9.99999996E-13 : f32
    %375 = vector.broadcast %cst_162 : f32 to vector<16x1xf32>
    %376 = arith.addf %372, %375 : vector<16x1xf32>
    %377 = math.rsqrt %376 : vector<16x1xf32>
    %378 = vector.broadcast %377 : vector<16x1xf32> to vector<16x32xf32>
    %379 = arith.mulf %374, %378 : vector<16x32xf32>
    %380 = vector.broadcast %359 : vector<1x32xf32> to vector<16x32xf32>
    %381 = arith.mulf %379, %380 : vector<16x32xf32>
    %382 = vector.broadcast %361 : vector<1x32xf32> to vector<16x32xf32>
    %383 = arith.addf %381, %382 : vector<16x32xf32>
    %c0_163 = arith.constant 0 : index
    %c0_164 = arith.constant 0 : index
    %384 = vector.load %arg14[%c0_163, %c0_164] : memref<16x32xf32, #tpu.memory_space<vmem>>, vector<16x32xf32>
    tpu.vector_store %arg14[%c0_163, %c0_164], %383 {strides = array<i32>} : memref<16x32xf32, #tpu.memory_space<vmem>>, vector<16x32xf32>,
    return
  }
}

</mosaic_0001>

<llo_original>
// kernel: tpu_custom_call.1
$region0: #{tpu_custom_call.1}
  #allocation0 [shape = 'u32[]', space=smem, size = 0x4, offset = 0x4, fixed_abs, tag = 'smem constant byte address 0x4 - core index']
  #allocation1 [shape = 'u32[144,128]{1,0:T(1,128)}', space=vmem, size = 0x12000, scoped, tag = 'internal scratch']
  %s0 = inlined_call_operand.hbm [shape: f32[16,32], index: 0, kind: input, shape index: {}]
  %s1 = inlined_call_operand.hbm [shape: f32[16,16], index: 1, kind: input, shape index: {}]
  %s2 = inlined_call_operand.vmem [shape: f32[2,32,96], index: 2, kind: input, shape index: {}]
  %s3 = inlined_call_operand.vmem [shape: f32[2,1,96], index: 3, kind: input, shape index: {}]
  %s4 = inlined_call_operand.vmem [shape: f32[2,32,32], index: 4, kind: input, shape index: {}]
  %s5 = inlined_call_operand.vmem [shape: f32[2,1,32], index: 5, kind: input, shape index: {}]
  %s6 = inlined_call_operand.vmem [shape: f32[2,1,32], index: 6, kind: input, shape index: {}]
  %s7 = inlined_call_operand.vmem [shape: f32[2,1,32], index: 7, kind: input, shape index: {}]
  %s8 = inlined_call_operand.vmem [shape: f32[2,32,64], index: 8, kind: input, shape index: {}]
  %s9 = inlined_call_operand.vmem [shape: f32[2,1,64], index: 9, kind: input, shape index: {}]
  %s10 = inlined_call_operand.vmem [shape: f32[2,64,32], index: 10, kind: input, shape index: {}]
  %s11 = inlined_call_operand.vmem [shape: f32[2,1,32], index: 11, kind: input, shape index: {}]
  %s12 = inlined_call_operand.vmem [shape: f32[2,1,32], index: 12, kind: input, shape index: {}]
  %s13 = inlined_call_operand.vmem [shape: f32[2,1,32], index: 13, kind: input, shape index: {}]
  %s14 = inlined_call_operand.hbm [shape: f32[16,32], index: 14, kind: output, shape index: {}]
  %s15 = sld [smem:[#allocation0]]
  $region74: #{tpu_custom_call.1} parent=0
    _
  %s17 = ssub.s32 1, %s15
  %s18 = scalar_select 0, %s17, %s15
  $region1: #{tpu_custom_call.1} parent=0
    #allocation2 [shape = 'u8[8192]{0}', space=vmem, size = 0x2000, scoped, tag = 'input window, operand 0, single buffered']
    #allocation3 [shape = 's32[1]{0}', space=sflag, size = 0x4, scoped, tag = 'scoped memory for tpu_custom_call.1']
    #allocation4 [shape = 's32[1]{0}', space=sflag, size = 0x4, scoped, tag = 'scoped memory for tpu_custom_call.1']
    #allocation5 [shape = 'u8[8192]{0}', space=vmem, size = 0x2000, scoped, tag = 'input window, operand 1, single buffered']
    #allocation6 [shape = 's32[1]{0}', space=sflag, size = 0x4, scoped, tag = 'scoped memory for tpu_custom_call.1']
    #allocation7 [shape = 'u8[8192]{0}', space=vmem, size = 0x2000, scoped, tag = 'output window, operand 0, single buffered']
    %19 = vsyncpa [#allocation3], 0
    %20 = vsyncpa [#allocation6], 0
    %21 = vsyncpa [#allocation4], 0
    // Predicated region
    $region2: #{tpu_custom_call.1} parent=1 // pred_check
      _
    $region3: #{tpu_custom_call.1} parent=1 // pred_check_branch
      %23 = sbr.rel (0) target = $region5
    $region4: #{tpu_custom_call.1} parent=1 // pred_region
      %s25 = ssub.s32 256, 256
      %26 = vsyncadd [#allocation3], %s25
      %s27 = sshll.u32 [#allocation2], 4
      %s28 = int_to_ptr.vmem [resolvable:$true] %s27
      %33 = dma.hbm_to_vmem [thread:$0]  %s0, 256, %s28, [#allocation3], 128, 128, 8
    $region5: #{tpu_custom_call.1} parent=1 // pred_fallthru
      _
    // Predicated region
    $region6: #{tpu_custom_call.1} parent=1 // pred_check
      _
    $region7: #{tpu_custom_call.1} parent=1 // pred_check_branch
      %35 = sbr.rel (0) target = $region9
    $region8: #{tpu_custom_call.1} parent=1 // pred_region
      %s37 = ssub.s32 256, 256
      %38 = vsyncadd [#allocation6], %s37
      %s39 = sshll.u32 [#allocation5], 4
      %s40 = int_to_ptr.vmem [resolvable:$true] %s39
      %45 = dma.hbm_to_vmem [thread:$0]  %s1, 256, %s40, [#allocation6], 128, 128, 8
    $region9: #{tpu_custom_call.1} parent=1 // pred_fallthru
      _
    // Predicated region
    $region10: #{tpu_custom_call.1} parent=1 // pred_check
      _
    $region11: #{tpu_custom_call.1} parent=1 // pred_check_branch
      %47 = sbr.rel (0) target = $region13
    $region12: #{tpu_custom_call.1} parent=1 // pred_region
      _
    $region13: #{tpu_custom_call.1} parent=1 // pred_fallthru
      _
    // Predicated region
    $region14: #{tpu_custom_call.1} parent=1 // pred_check
      _
    $region15: #{tpu_custom_call.1} parent=1 // pred_check_branch
      %49 = sbr.rel (0) target = $region17
    $region16: #{tpu_custom_call.1} parent=1 // pred_region
      _
    $region17: #{tpu_custom_call.1} parent=1 // pred_fallthru
      _
    // Predicated region
    $region18: #{tpu_custom_call.1} parent=1 // pred_check
      _
    $region19: #{tpu_custom_call.1} parent=1 // pred_check_branch
      %51 = sbr.rel (0) target = $region21
    $region20: #{tpu_custom_call.1} parent=1 // pred_region
      _
    $region21: #{tpu_custom_call.1} parent=1 // pred_fallthru
      _
    // Predicated region
    $region22: #{tpu_custom_call.1} parent=1 // pred_check
      _
    $region23: #{tpu_custom_call.1} parent=1 // pred_check_branch
      %53 = sbr.rel (0) target = $region25
    $region24: #{tpu_custom_call.1} parent=1 // pred_region
      _
    $region25: #{tpu_custom_call.1} parent=1 // pred_fallthru
      _
    // Predicated region
    $region26: #{tpu_custom_call.1} parent=1 // pred_check
      _
    $region27: #{tpu_custom_call.1} parent=1 // pred_check_branch
      %55 = sbr.rel (0) target = $region29
    $region28: #{tpu_custom_call.1} parent=1 // pred_region
      _
    $region29: #{tpu_custom_call.1} parent=1 // pred_fallthru
      _
    // Predicated region
    $region30: #{tpu_custom_call.1} parent=1 // pred_check
      _
    $region31: #{tpu_custom_call.1} parent=1 // pred_check_branch
      %57 = sbr.rel (0) target = $region33
    $region32: #{tpu_custom_call.1} parent=1 // pred_region
      _
    $region33: #{tpu_custom_call.1} parent=1 // pred_fallthru
      _
    // Predicated region
    $region34: #{tpu_custom_call.1} parent=1 // pred_check
      _
    $region35: #{tpu_custom_call.1} parent=1 // pred_check_branch
      %59 = sbr.rel (0) target = $region37
    $region36: #{tpu_custom_call.1} parent=1 // pred_region
      _
    $region37: #{tpu_custom_call.1} parent=1 // pred_fallthru
      _
    // Predicated region
    $region38: #{tpu_custom_call.1} parent=1 // pred_check
      _
    $region39: #{tpu_custom_call.1} parent=1 // pred_check_branch
      %61 = sbr.rel (0) target = $region41
    $region40: #{tpu_custom_call.1} parent=1 // pred_region
      _
    $region41: #{tpu_custom_call.1} parent=1 // pred_fallthru
      _
    // Predicated region
    $region42: #{tpu_custom_call.1} parent=1 // pred_check
      _
    $region43: #{tpu_custom_call.1} parent=1 // pred_check_branch
      %63 = sbr.rel (0) target = $region45
    $region44: #{tpu_custom_call.1} parent=1 // pred_region
      _
    $region45: #{tpu_custom_call.1} parent=1 // pred_fallthru
      _
    // Predicated region
    $region46: #{tpu_custom_call.1} parent=1 // pred_check
      _
    $region47: #{tpu_custom_call.1} parent=1 // pred_check_branch
      %65 = sbr.rel (0) target = $region49
    $region48: #{tpu_custom_call.1} parent=1 // pred_region
      _
    $region49: #{tpu_custom_call.1} parent=1 // pred_fallthru
      _
    // Predicated region
    $region50: #{tpu_custom_call.1} parent=1 // pred_check
      _
    $region51: #{tpu_custom_call.1} parent=1 // pred_check_branch
      %67 = sbr.rel (0) target = $region53
    $region52: #{tpu_custom_call.1} parent=1 // pred_region
      _
    $region53: #{tpu_custom_call.1} parent=1 // pred_fallthru
      _
    // Predicated region
    $region54: #{tpu_custom_call.1} parent=1 // pred_check
      _
    $region55: #{tpu_custom_call.1} parent=1 // pred_check_branch
      %69 = sbr.rel (0) target = $region57
    $region56: #{tpu_custom_call.1} parent=1 // pred_region
      _
    $region57: #{tpu_custom_call.1} parent=1 // pred_fallthru
      _
    // Predicated region
    $region58: #{tpu_custom_call.1} parent=1 // pred_check
      _
    $region59: #{tpu_custom_call.1} parent=1 // pred_check_branch
      %71 = sbr.rel (0) target = $region61
    $region60: #{tpu_custom_call.1} parent=1 // pred_region
      %72 = dma.done [#allocation3], 256
    $region61: #{tpu_custom_call.1} parent=1 // pred_fallthru
      _
    // Predicated region
    $region62: #{tpu_custom_call.1} parent=1 // pred_check
      _
    $region63: #{tpu_custom_call.1} parent=1 // pred_check_branch
      %74 = sbr.rel (0) target = $region65
    $region64: #{tpu_custom_call.1} parent=1 // pred_region
      %75 = dma.done [#allocation6], 256
    $region65: #{tpu_custom_call.1} parent=1 // pred_fallthru
      _
    %v76 = vld [vmem:[#allocation5] sm:$0xff]
    %v77 = vld [vmem:[#allocation5 + $0x8] sm:$0xff]
    %v78 = vld [vmem:[#allocation2] sm:$0xff]
    %v79 = vld [vmem:[#allocation2 + $0x8] sm:$0xff]
    %v80 = vld [vmem:[%s2] sm:$0xff]
    %v81 = vld [vmem:[%s2 + $0x8] sm:$0xff]
    %v82 = vld [vmem:[%s2 + $0x10] sm:$0xff]
    %v83 = vld [vmem:[%s2 + $0x18] sm:$0xff]
    %v84 = vld [vmem:[%s3] sm:$0x1]
    %v86 = vlaneseq
    %v87 = vshrl.u32 %v86, 7
    %v88 = vsub.s32 0, %v87
    %v89 = vrot.slane %v84, %v88
    %vm91 = vcmask 261120
    %v93 = vsel %vm91, %v78, 0
    %v96 = vsel %vm91, %v79, 0
    %98 = vmatprep.subr.mxu0 0.0
    %99 = vmatpush1.msra.mxu0 %v80
    %100 = vmatprep.subr.mxu0 0.0
    %101 = vmatpush1.msra.mxu0 %v81
    %102 = vmatprep.subr.mxu0 0.0
    %103 = vmatpush1.msra.mxu0 %v82
    %104 = vmatprep.subr.mxu0 0.0
    %105 = vmatpush1.msra.mxu0 %v83
    %106 = vmatprep.subr.mxu0 0.0
    %107 = vmatpush1.msra.mxu0 0.0
    %108 = vmatprep.subr.mxu0 0.0
    %109 = vmatpush1.msra.mxu0 0.0
    %110 = vmatprep.subr.mxu0 0.0
    %111 = vmatpush1.msra.mxu0 0.0
    %112 = vmatprep.subr.mxu0 0.0
    %113 = vmatpush1.msra.mxu0 0.0
    %114 = vmatprep.subr.mxu0 0.0
    %115 = vmatpush1.msra.mxu0 0.0
    %116 = vmatprep.subr.mxu0 0.0
    %117 = vmatpush1.msra.mxu0 0.0
    %118 = vmatprep.subr.mxu0 0.0
    %119 = vmatpush1.msra.mxu0 0.0
    %120 = vmatprep.subr.mxu0 0.0
    %121 = vmatpush1.msra.mxu0 0.0
    %122 = vmatprep.subr.mxu0 0.0
    %123 = vmatpush1.msra.mxu0 0.0
    %124 = vmatprep.subr.mxu0 0.0
    %125 = vmatpush1.msra.mxu0 0.0
    %126 = vmatprep.subr.mxu0 0.0
    %127 = vmatpush1.msra.mxu0 0.0
    %128 = vmatprep.subr.mxu0 0.0
    %129 = vmatpush1.msra.mxu0 0.0
    %130 = vmatprep.subr.mxu0 0.0
    %131 = vmatpush1.msra.mxu0 0.0
    %132 = vmatprep.subr.mxu0 0.0
    %133 = vmatpush1.msra.mxu0 0.0
    %134 = vmatprep.subr.mxu0 0.0
    %135 = vmatpush1.msra.mxu0 0.0
    %136 = vmatprep.subr.mxu0 0.0
    %137 = vmatpush1.msra.mxu0 0.0
    %138 = vmatprep.subr.mxu0 0.0
    %139 = vmatpush1.msra.mxu0 0.0
    %140 = vmatprep.subr.mxu0 0.0
    %141 = vmatpush1.msra.mxu0 0.0
    %142 = vmatprep.subr.mxu0 0.0
    %143 = vmatpush1.msra.mxu0 0.0
    %144 = vmatprep.subr.mxu0 0.0
    %145 = vmatpush1.msra.mxu0 0.0
    %146 = vmatprep.subr.mxu0 0.0
    %147 = vmatpush1.msra.mxu0 0.0
    %148 = vmatprep.subr.mxu0 0.0
    %149 = vmatpush1.msra.mxu0 0.0
    %150 = vmatprep.subr.mxu0 0.0
    %151 = vmatpush1.msra.mxu0 0.0
    %152 = vmatprep.subr.mxu0 0.0
    %153 = vmatpush1.msra.mxu0 0.0
    %154 = vmatprep.subr.mxu0 0.0
    %155 = vmatpush1.msra.mxu0 0.0
    %156 = vmatprep.subr.mxu0 0.0
    %157 = vmatpush1.msra.mxu0 0.0
    %158 = vmatprep.subr.mxu0 0.0
    %159 = vmatpush1.msra.mxu0 0.0
    %160 = vmatprep.subr.mxu0 0.0
    %161 = vmatpush1.msra.mxu0 0.0
    %162 = vmatprep.mubr.f32.mxu0 0.0
    %163 = vmatmul.mubr.f32.gmra.mrb[0].mxu0 %v93
    %v164 = vpop.f32.mrb[0].mxu0
    %v165 = vadd.f32 %v89, %v164
    %v166 = vpop.f32.mrb[0].mxu0
    %167 = vmatprep.mubr.f32.mxu0 0.0
    %168 = vmatmul.mubr.f32.gmra.mrb[0].mxu0 %v96
    %v169 = vpop.f32.mrb[0].mxu0
    %v170 = vadd.f32 %v89, %v169
    %v171 = vpop.f32.mrb[0].mxu0
    %172 = vdwg.mxu0
    %v173 = vmul.f32 %v165, 0.35355338
    %v174 = vmul.f32 %v170, 0.35355338
    %177 = vrot.lane.b32.xlu0 %v165, 96
    %v178 = vpop.permute.xlu0 %177
    %179 = vrot.lane.b32.xlu0 %v170, 96
    %v180 = vpop.permute.xlu0 %179
    %vm181 = vcmask 64512
    %v183 = vsel %vm181, %v173, 0
    %v186 = vsel %vm181, %v174, 0
    %v188 = vsel %vm181, %v178, 0
    %v190 = vsel %vm181, %v180, 0
    %192 = vmatprep.subr.mxu0 0.0
    %193 = vmatpush1.xpose.msra.mxu0 %v188
    %194 = vmatprep.subr.mxu0 0.0
    %195 = vmatpush1.xpose.msra.mxu0 %v190
    %196 = vmatprep.subr.mxu0 0.0
    %197 = vmatpush1.xpose.msra.mxu0 0.0
    %198 = vmatprep.subr.mxu0 0.0
    %199 = vmatpush1.xpose.msra.mxu0 0.0
    %200 = vmatprep.subr.mxu0 0.0
    %201 = vmatpush1.xpose.msra.mxu0 0.0
    %202 = vmatprep.subr.mxu0 0.0
    %203 = vmatpush1.xpose.msra.mxu0 0.0
    %204 = vmatprep.subr.mxu0 0.0
    %205 = vmatpush1.xpose.msra.mxu0 0.0
    %206 = vmatprep.subr.mxu0 0.0
    %207 = vmatpush1.xpose.msra.mxu0 0.0
    %208 = vmatprep.subr.mxu0 0.0
    %209 = vmatpush1.xpose.msra.mxu0 0.0
    %210 = vmatprep.subr.mxu0 0.0
    %211 = vmatpush1.xpose.msra.mxu0 0.0
    %212 = vmatprep.subr.mxu0 0.0
    %213 = vmatpush1.xpose.msra.mxu0 0.0
    %214 = vmatprep.subr.mxu0 0.0
    %215 = vmatpush1.xpose.msra.mxu0 0.0
    %216 = vmatprep.subr.mxu0 0.0
    %217 = vmatpush1.xpose.msra.mxu0 0.0
    %218 = vmatprep.subr.mxu0 0.0
    %219 = vmatpush1.xpose.msra.mxu0 0.0
    %220 = vmatprep.subr.mxu0 0.0
    %221 = vmatpush1.xpose.msra.mxu0 0.0
    %222 = vmatprep.subr.mxu0 0.0
    %223 = vmatpush1.xpose.msra.mxu0 0.0
    %224 = vmatprep.subr.mxu0 0.0
    %225 = vmatpush1.xpose.msra.mxu0 0.0
    %226 = vmatprep.subr.mxu0 0.0
    %227 = vmatpush1.xpose.msra.mxu0 0.0
    %228 = vmatprep.subr.mxu0 0.0
    %229 = vmatpush1.xpose.msra.mxu0 0.0
    %230 = vmatprep.subr.mxu0 0.0
    %231 = vmatpush1.xpose.msra.mxu0 0.0
    %232 = vmatprep.subr.mxu0 0.0
    %233 = vmatpush1.xpose.msra.mxu0 0.0
    %234 = vmatprep.subr.mxu0 0.0
    %235 = vmatpush1.xpose.msra.mxu0 0.0
    %236 = vmatprep.subr.mxu0 0.0
    %237 = vmatpush1.xpose.msra.mxu0 0.0
    %238 = vmatprep.subr.mxu0 0.0
    %239 = vmatpush1.xpose.msra.mxu0 0.0
    %240 = vmatprep.subr.mxu0 0.0
    %241 = vmatpush1.xpose.msra.mxu0 0.0
    %242 = vmatprep.subr.mxu0 0.0
    %243 = vmatpush1.xpose.msra.mxu0 0.0
    %244 = vmatprep.subr.mxu0 0.0
    %245 = vmatpush1.xpose.msra.mxu0 0.0
    %246 = vmatprep.subr.mxu0 0.0
    %247 = vmatpush1.xpose.msra.mxu0 0.0
    %248 = vmatprep.subr.mxu0 0.0
    %249 = vmatpush1.xpose.msra.mxu0 0.0
    %250 = vmatprep.subr.mxu0 0.0
    %251 = vmatpush1.xpose.msra.mxu0 0.0
    %252 = vmatprep.subr.mxu0 0.0
    %253 = vmatpush1.xpose.msra.mxu0 0.0
    %254 = vmatprep.subr.mxu0 0.0
    %255 = vmatpush1.xpose.msra.mxu0 0.0
    %256 = vmatprep.mubr.f32.mxu0 0.0
    %257 = vmatmul.mubr.f32.gmra.mrb[0].mxu0 %v183
    %v258 = vpop.f32.mrb[0].mxu0
    %v259 = vadd.f32 %v76, %v258
    %v260 = vpop.f32.mrb[0].mxu0
    %261 = vmatprep.mubr.f32.mxu0 0.0
    %262 = vmatmul.mubr.f32.gmra.mrb[0].mxu0 %v186
    %v263 = vpop.f32.mrb[0].mxu0
    %v264 = vadd.f32 %v77, %v263
    %v265 = vpop.f32.mrb[0].mxu0
    %266 = vdwg.mxu0
    %vm267 = vcmask 130048
    %v268 = vsel %vm267, %v259, -inf
    %269 = vmax.xlane.f32.xlu0 %v268
    %v270 = vpop.xlane.xlu0 %269
    %v271 = vsel %vm267, %v264, -inf
    %272 = vmax.xlane.f32.xlu0 %v271
    %v273 = vpop.xlane.xlu0 %272
    %v274 = vsub.f32 %v259, %v270
    %v275 = vsub.f32 %v264, %v273
    %v276 = vmul.f32 %v274, 1.442695
    %v277 = vpow.pop %v276
    %v278 = vmul.f32 %v275, 1.442695
    %v279 = vpow.pop %v278
    %v280 = vsel %vm267, %v277, 0.0
    %281 = vadd.xlane.f32.xlu0 %v280
    %v282 = vpop.xlane.xlu0 %281
    %v283 = vsel %vm267, %v279, 0.0
    %284 = vadd.xlane.f32.xlu0 %v283
    %v285 = vpop.xlane.xlu0 %284
    %286 = vrot.lane.b32.xlu0 %v165, 64
    %v287 = vpop.permute.xlu0 %286
    %288 = vrot.lane.b32.xlu0 %v170, 64
    %v289 = vpop.permute.xlu0 %288
    %v293 = vsel %vm267, %v277, 0
    %v296 = vsel %vm267, %v279, 0
    %298 = vmatprep.subr.mxu0 0.0
    %299 = vmatpush1.msra.mxu0 %v287
    %300 = vmatprep.subr.mxu0 0.0
    %301 = vmatpush1.msra.mxu0 %v289
    %302 = vmatprep.subr.mxu0 0.0
    %303 = vmatpush1.msra.mxu0 0.0
    %304 = vmatprep.subr.mxu0 0.0
    %305 = vmatpush1.msra.mxu0 0.0
    %306 = vmatprep.subr.mxu0 0.0
    %307 = vmatpush1.msra.mxu0 0.0
    %308 = vmatprep.subr.mxu0 0.0
    %309 = vmatpush1.msra.mxu0 0.0
    %310 = vmatprep.subr.mxu0 0.0
    %311 = vmatpush1.msra.mxu0 0.0
    %312 = vmatprep.subr.mxu0 0.0
    %313 = vmatpush1.msra.mxu0 0.0
    %314 = vmatprep.subr.mxu0 0.0
    %315 = vmatpush1.msra.mxu0 0.0
    %316 = vmatprep.subr.mxu0 0.0
    %317 = vmatpush1.msra.mxu0 0.0
    %318 = vmatprep.subr.mxu0 0.0
    %319 = vmatpush1.msra.mxu0 0.0
    %320 = vmatprep.subr.mxu0 0.0
    %321 = vmatpush1.msra.mxu0 0.0
    %322 = vmatprep.subr.mxu0 0.0
    %323 = vmatpush1.msra.mxu0 0.0
    %324 = vmatprep.subr.mxu0 0.0
    %325 = vmatpush1.msra.mxu0 0.0
    %326 = vmatprep.subr.mxu0 0.0
    %327 = vmatpush1.msra.mxu0 0.0
    %328 = vmatprep.subr.mxu0 0.0
    %329 = vmatpush1.msra.mxu0 0.0
    %330 = vmatprep.subr.mxu0 0.0
    %331 = vmatpush1.msra.mxu0 0.0
    %332 = vmatprep.subr.mxu0 0.0
    %333 = vmatpush1.msra.mxu0 0.0
    %334 = vmatprep.subr.mxu0 0.0
    %335 = vmatpush1.msra.mxu0 0.0
    %336 = vmatprep.subr.mxu0 0.0
    %337 = vmatpush1.msra.mxu0 0.0
    %338 = vmatprep.subr.mxu0 0.0
    %339 = vmatpush1.msra.mxu0 0.0
    %340 = vmatprep.subr.mxu0 0.0
    %341 = vmatpush1.msra.mxu0 0.0
    %342 = vmatprep.subr.mxu0 0.0
    %343 = vmatpush1.msra.mxu0 0.0
    %344 = vmatprep.subr.mxu0 0.0
    %345 = vmatpush1.msra.mxu0 0.0
    %346 = vmatprep.subr.mxu0 0.0
    %347 = vmatpush1.msra.mxu0 0.0
    %348 = vmatprep.subr.mxu0 0.0
    %349 = vmatpush1.msra.mxu0 0.0
    %350 = vmatprep.subr.mxu0 0.0
    %351 = vmatpush1.msra.mxu0 0.0
    %352 = vmatprep.subr.mxu0 0.0
    %353 = vmatpush1.msra.mxu0 0.0
    %354 = vmatprep.subr.mxu0 0.0
    %355 = vmatpush1.msra.mxu0 0.0
    %356 = vmatprep.subr.mxu0 0.0
    %357 = vmatpush1.msra.mxu0 0.0
    %358 = vmatprep.subr.mxu0 0.0
    %359 = vmatpush1.msra.mxu0 0.0
    %360 = vmatprep.subr.mxu0 0.0
    %361 = vmatpush1.msra.mxu0 0.0
    %362 = vmatprep.mubr.f32.mxu0 0.0
    %363 = vmatmul.mubr.f32.gmra.mrb[0].mxu0 %v293
    %v364 = vpop.f32.mrb[0].mxu0
    %v365 = vadd.f32 0.0, %v364
    %v366 = vpop.f32.mrb[0].mxu0
    %367 = vmatprep.mubr.f32.mxu0 0.0
    %368 = vmatmul.mubr.f32.gmra.mrb[0].mxu0 %v296
    %v369 = vpop.f32.mrb[0].mxu0
    %v370 = vadd.f32 0.0, %v369
    %v371 = vpop.f32.mrb[0].mxu0
    %372 = vdwg.mxu0
    %v373 = vrcp.pop %v282
    %v374 = vrcp.pop %v285
    %v375 = vmul.f32 %v365, %v373
    %v376 = vmul.f32 %v370, %v374
    %377 = vrot.lane.b32.xlu0 %v173, 120
    %v378 = vpop.permute.xlu0 %377
    %379 = vrot.lane.b32.xlu0 %v174, 120
    %v380 = vpop.permute.xlu0 %379
    %381 = vrot.lane.b32.xlu0 %v165, 88
    %v382 = vpop.permute.xlu0 %381
    %383 = vrot.lane.b32.xlu0 %v170, 88
    %v384 = vpop.permute.xlu0 %383
    %v385 = vsel %vm181, %v378, 0
    %v387 = vsel %vm181, %v380, 0
    %v389 = vsel %vm181, %v382, 0
    %v391 = vsel %vm181, %v384, 0
    %393 = vmatprep.subr.mxu0 0.0
    %394 = vmatpush1.xpose.msra.mxu0 %v389
    %395 = vmatprep.subr.mxu0 0.0
    %396 = vmatpush1.xpose.msra.mxu0 %v391
    %397 = vmatprep.subr.mxu0 0.0
    %398 = vmatpush1.xpose.msra.mxu0 0.0
    %399 = vmatprep.subr.mxu0 0.0
    %400 = vmatpush1.xpose.msra.mxu0 0.0
    %401 = vmatprep.subr.mxu0 0.0
    %402 = vmatpush1.xpose.msra.mxu0 0.0
    %403 = vmatprep.subr.mxu0 0.0
    %404 = vmatpush1.xpose.msra.mxu0 0.0
    %405 = vmatprep.subr.mxu0 0.0
    %406 = vmatpush1.xpose.msra.mxu0 0.0
    %407 = vmatprep.subr.mxu0 0.0
    %408 = vmatpush1.xpose.msra.mxu0 0.0
    %409 = vmatprep.subr.mxu0 0.0
    %410 = vmatpush1.xpose.msra.mxu0 0.0
    %411 = vmatprep.subr.mxu0 0.0
    %412 = vmatpush1.xpose.msra.mxu0 0.0
    %413 = vmatprep.subr.mxu0 0.0
    %414 = vmatpush1.xpose.msra.mxu0 0.0
    %415 = vmatprep.subr.mxu0 0.0
    %416 = vmatpush1.xpose.msra.mxu0 0.0
    %417 = vmatprep.subr.mxu0 0.0
    %418 = vmatpush1.xpose.msra.mxu0 0.0
    %419 = vmatprep.subr.mxu0 0.0
    %420 = vmatpush1.xpose.msra.mxu0 0.0
    %421 = vmatprep.subr.mxu0 0.0
    %422 = vmatpush1.xpose.msra.mxu0 0.0
    %423 = vmatprep.subr.mxu0 0.0
    %424 = vmatpush1.xpose.msra.mxu0 0.0
    %425 = vmatprep.subr.mxu0 0.0
    %426 = vmatpush1.xpose.msra.mxu0 0.0
    %427 = vmatprep.subr.mxu0 0.0
    %428 = vmatpush1.xpose.msra.mxu0 0.0
    %429 = vmatprep.subr.mxu0 0.0
    %430 = vmatpush1.xpose.msra.mxu0 0.0
    %431 = vmatprep.subr.mxu0 0.0
    %432 = vmatpush1.xpose.msra.mxu0 0.0
    %433 = vmatprep.subr.mxu0 0.0
    %434 = vmatpush1.xpose.msra.mxu0 0.0
    %435 = vmatprep.subr.mxu0 0.0
    %436 = vmatpush1.xpose.msra.mxu0 0.0
    %437 = vmatprep.subr.mxu0 0.0
    %438 = vmatpush1.xpose.msra.mxu0 0.0
    %439 = vmatprep.subr.mxu0 0.0
    %440 = vmatpush1.xpose.msra.mxu0 0.0
    %441 = vmatprep.subr.mxu0 0.0
    %442 = vmatpush1.xpose.msra.mxu0 0.0
    %443 = vmatprep.subr.mxu0 0.0
    %444 = vmatpush1.xpose.msra.mxu0 0.0
    %445 = vmatprep.subr.mxu0 0.0
    %446 = vmatpush1.xpose.msra.mxu0 0.0
    %447 = vmatprep.subr.mxu0 0.0
    %448 = vmatpush1.xpose.msra.mxu0 0.0
    %449 = vmatprep.subr.mxu0 0.0
    %450 = vmatpush1.xpose.msra.mxu0 0.0
    %451 = vmatprep.subr.mxu0 0.0
    %452 = vmatpush1.xpose.msra.mxu0 0.0
    %453 = vmatprep.subr.mxu0 0.0
    %454 = vmatpush1.xpose.msra.mxu0 0.0
    %455 = vmatprep.subr.mxu0 0.0
    %456 = vmatpush1.xpose.msra.mxu0 0.0
    %457 = vmatprep.mubr.f32.mxu0 0.0
    %458 = vmatmul.mubr.f32.gmra.mrb[0].mxu0 %v385
    %v459 = vpop.f32.mrb[0].mxu0
    %v460 = vadd.f32 %v76, %v459
    %v461 = vpop.f32.mrb[0].mxu0
    %462 = vmatprep.mubr.f32.mxu0 0.0
    %463 = vmatmul.mubr.f32.gmra.mrb[0].mxu0 %v387
    %v464 = vpop.f32.mrb[0].mxu0
    %v465 = vadd.f32 %v77, %v464
    %v466 = vpop.f32.mrb[0].mxu0
    %467 = vdwg.mxu0
    %v468 = vsel %vm267, %v460, -inf
    %469 = vmax.xlane.f32.xlu0 %v468
    %v470 = vpop.xlane.xlu0 %469
    %v471 = vsel %vm267, %v465, -inf
    %472 = vmax.xlane.f32.xlu0 %v471
    %v473 = vpop.xlane.xlu0 %472
    %v474 = vsub.f32 %v460, %v470
    %v475 = vsub.f32 %v465, %v473
    %v476 = vmul.f32 %v474, 1.442695
    %v477 = vpow.pop %v476
    %v478 = vmul.f32 %v475, 1.442695
    %v479 = vpow.pop %v478
    %v480 = vsel %vm267, %v477, 0.0
    %481 = vadd.xlane.f32.xlu0 %v480
    %v482 = vpop.xlane.xlu0 %481
    %v483 = vsel %vm267, %v479, 0.0
    %484 = vadd.xlane.f32.xlu0 %v483
    %v485 = vpop.xlane.xlu0 %484
    %486 = vrot.lane.b32.xlu0 %v165, 56
    %v487 = vpop.permute.xlu0 %486
    %488 = vrot.lane.b32.xlu0 %v170, 56
    %v489 = vpop.permute.xlu0 %488
    %v493 = vsel %vm267, %v477, 0
    %v496 = vsel %vm267, %v479, 0
    %498 = vmatprep.subr.mxu0 0.0
    %499 = vmatpush1.msra.mxu0 %v487
    %500 = vmatprep.subr.mxu0 0.0
    %501 = vmatpush1.msra.mxu0 %v489
    %502 = vmatprep.subr.mxu0 0.0
    %503 = vmatpush1.msra.mxu0 0.0
    %504 = vmatprep.subr.mxu0 0.0
    %505 = vmatpush1.msra.mxu0 0.0
    %506 = vmatprep.subr.mxu0 0.0
    %507 = vmatpush1.msra.mxu0 0.0
    %508 = vmatprep.subr.mxu0 0.0
    %509 = vmatpush1.msra.mxu0 0.0
    %510 = vmatprep.subr.mxu0 0.0
    %511 = vmatpush1.msra.mxu0 0.0
    %512 = vmatprep.subr.mxu0 0.0
    %513 = vmatpush1.msra.mxu0 0.0
    %514 = vmatprep.subr.mxu0 0.0
    %515 = vmatpush1.msra.mxu0 0.0
    %516 = vmatprep.subr.mxu0 0.0
    %517 = vmatpush1.msra.mxu0 0.0
    %518 = vmatprep.subr.mxu0 0.0
    %519 = vmatpush1.msra.mxu0 0.0
    %520 = vmatprep.subr.mxu0 0.0
    %521 = vmatpush1.msra.mxu0 0.0
    %522 = vmatprep.subr.mxu0 0.0
    %523 = vmatpush1.msra.mxu0 0.0
    %524 = vmatprep.subr.mxu0 0.0
    %525 = vmatpush1.msra.mxu0 0.0
    %526 = vmatprep.subr.mxu0 0.0
    %527 = vmatpush1.msra.mxu0 0.0
    %528 = vmatprep.subr.mxu0 0.0
    %529 = vmatpush1.msra.mxu0 0.0
    %530 = vmatprep.subr.mxu0 0.0
    %531 = vmatpush1.msra.mxu0 0.0
    %532 = vmatprep.subr.mxu0 0.0
    %533 = vmatpush1.msra.mxu0 0.0
    %534 = vmatprep.subr.mxu0 0.0
    %535 = vmatpush1.msra.mxu0 0.0
    %536 = vmatprep.subr.mxu0 0.0
    %537 = vmatpush1.msra.mxu0 0.0
    %538 = vmatprep.subr.mxu0 0.0
    %539 = vmatpush1.msra.mxu0 0.0
    %540 = vmatprep.subr.mxu0 0.0
    %541 = vmatpush1.msra.mxu0 0.0
    %542 = vmatprep.subr.mxu0 0.0
    %543 = vmatpush1.msra.mxu0 0.0
    %544 = vmatprep.subr.mxu0 0.0
    %545 = vmatpush1.msra.mxu0 0.0
    %546 = vmatprep.subr.mxu0 0.0
    %547 = vmatpush1.msra.mxu0 0.0
    %548 = vmatprep.subr.mxu0 0.0
    %549 = vmatpush1.msra.mxu0 0.0
    %550 = vmatprep.subr.mxu0 0.0
    %551 = vmatpush1.msra.mxu0 0.0
    %552 = vmatprep.subr.mxu0 0.0
    %553 = vmatpush1.msra.mxu0 0.0
    %554 = vmatprep.subr.mxu0 0.0
    %555 = vmatpush1.msra.mxu0 0.0
    %556 = vmatprep.subr.mxu0 0.0
    %557 = vmatpush1.msra.mxu0 0.0
    %558 = vmatprep.subr.mxu0 0.0
    %559 = vmatpush1.msra.mxu0 0.0
    %560 = vmatprep.subr.mxu0 0.0
    %561 = vmatpush1.msra.mxu0 0.0
    %562 = vmatprep.mubr.f32.mxu0 0.0
    %563 = vmatmul.mubr.f32.gmra.mrb[0].mxu0 %v493
    %v564 = vpop.f32.mrb[0].mxu0
    %v565 = vadd.f32 0.0, %v564
    %v566 = vpop.f32.mrb[0].mxu0
    %567 = vmatprep.mubr.f32.mxu0 0.0
    %568 = vmatmul.mubr.f32.gmra.mrb[0].mxu0 %v496
    %v569 = vpop.f32.mrb[0].mxu0
    %v570 = vadd.f32 0.0, %v569
    %v571 = vpop.f32.mrb[0].mxu0
    %572 = vdwg.mxu0
    %v573 = vrcp.pop %v482
    %v574 = vrcp.pop %v485
    %v575 = vmul.f32 %v565, %v573
    %v576 = vmul.f32 %v570, %v574
    %577 = vrot.lane.b32.xlu0 %v173, 112
    %v578 = vpop.permute.xlu0 %577
    %579 = vrot.lane.b32.xlu0 %v174, 112
    %v580 = vpop.permute.xlu0 %579
    %581 = vrot.lane.b32.xlu0 %v165, 80
    %v582 = vpop.permute.xlu0 %581
    %583 = vrot.lane.b32.xlu0 %v170, 80
    %v584 = vpop.permute.xlu0 %583
    %v585 = vsel %vm181, %v578, 0
    %v587 = vsel %vm181, %v580, 0
    %v589 = vsel %vm181, %v582, 0
    %v591 = vsel %vm181, %v584, 0
    %593 = vmatprep.subr.mxu0 0.0
    %594 = vmatpush1.xpose.msra.mxu0 %v589
    %595 = vmatprep.subr.mxu0 0.0
    %596 = vmatpush1.xpose.msra.mxu0 %v591
    %597 = vmatprep.subr.mxu0 0.0
    %598 = vmatpush1.xpose.msra.mxu0 0.0
    %599 = vmatprep.subr.mxu0 0.0
    %600 = vmatpush1.xpose.msra.mxu0 0.0
    %601 = vmatprep.subr.mxu0 0.0
    %602 = vmatpush1.xpose.msra.mxu0 0.0
    %603 = vmatprep.subr.mxu0 0.0
    %604 = vmatpush1.xpose.msra.mxu0 0.0
    %605 = vmatprep.subr.mxu0 0.0
    %606 = vmatpush1.xpose.msra.mxu0 0.0
    %607 = vmatprep.subr.mxu0 0.0
    %608 = vmatpush1.xpose.msra.mxu0 0.0
    %609 = vmatprep.subr.mxu0 0.0
    %610 = vmatpush1.xpose.msra.mxu0 0.0
    %611 = vmatprep.subr.mxu0 0.0
    %612 = vmatpush1.xpose.msra.mxu0 0.0
    %613 = vmatprep.subr.mxu0 0.0
    %614 = vmatpush1.xpose.msra.mxu0 0.0
    %615 = vmatprep.subr.mxu0 0.0
    %616 = vmatpush1.xpose.msra.mxu0 0.0
    %617 = vmatprep.subr.mxu0 0.0
    %618 = vmatpush1.xpose.msra.mxu0 0.0
    %619 = vmatprep.subr.mxu0 0.0
    %620 = vmatpush1.xpose.msra.mxu0 0.0
    %621 = vmatprep.subr.mxu0 0.0
    %622 = vmatpush1.xpose.msra.mxu0 0.0
    %623 = vmatprep.subr.mxu0 0.0
    %624 = vmatpush1.xpose.msra.mxu0 0.0
    %625 = vmatprep.subr.mxu0 0.0
    %626 = vmatpush1.xpose.msra.mxu0 0.0
    %627 = vmatprep.subr.mxu0 0.0
    %628 = vmatpush1.xpose.msra.mxu0 0.0
    %629 = vmatprep.subr.mxu0 0.0
    %630 = vmatpush1.xpose.msra.mxu0 0.0
    %631 = vmatprep.subr.mxu0 0.0
    %632 = vmatpush1.xpose.msra.mxu0 0.0
    %633 = vmatprep.subr.mxu0 0.0
    %634 = vmatpush1.xpose.msra.mxu0 0.0
    %635 = vmatprep.subr.mxu0 0.0
    %636 = vmatpush1.xpose.msra.mxu0 0.0
    %637 = vmatprep.subr.mxu0 0.0
    %638 = vmatpush1.xpose.msra.mxu0 0.0
    %639 = vmatprep.subr.mxu0 0.0
    %640 = vmatpush1.xpose.msra.mxu0 0.0
    %641 = vmatprep.subr.mxu0 0.0
    %642 = vmatpush1.xpose.msra.mxu0 0.0
    %643 = vmatprep.subr.mxu0 0.0
    %644 = vmatpush1.xpose.msra.mxu0 0.0
    %645 = vmatprep.subr.mxu0 0.0
    %646 = vmatpush1.xpose.msra.mxu0 0.0
    %647 = vmatprep.subr.mxu0 0.0
    %648 = vmatpush1.xpose.msra.mxu0 0.0
    %649 = vmatprep.subr.mxu0 0.0
    %650 = vmatpush1.xpose.msra.mxu0 0.0
    %651 = vmatprep.subr.mxu0 0.0
    %652 = vmatpush1.xpose.msra.mxu0 0.0
    %653 = vmatprep.subr.mxu0 0.0
    %654 = vmatpush1.xpose.msra.mxu0 0.0
    %655 = vmatprep.subr.mxu0 0.0
    %656 = vmatpush1.xpose.msra.mxu0 0.0
    %657 = vmatprep.mubr.f32.mxu0 0.0
    %658 = vmatmul.mubr.f32.gmra.mrb[0].mxu0 %v585
    %v659 = vpop.f32.mrb[0].mxu0
    %v660 = vadd.f32 %v76, %v659
    %v661 = vpop.f32.mrb[0].mxu0
    %662 = vmatprep.mubr.f32.mxu0 0.0
    %663 = vmatmul.mubr.f32.gmra.mrb[0].mxu0 %v587
    %v664 = vpop.f32.mrb[0].mxu0
    %v665 = vadd.f32 %v77, %v664
    %v666 = vpop.f32.mrb[0].mxu0
    %667 = vdwg.mxu0
    %v668 = vsel %vm267, %v660, -inf
    %669 = vmax.xlane.f32.xlu0 %v668
    %v670 = vpop.xlane.xlu0 %669
    %v671 = vsel %vm267, %v665, -inf
    %672 = vmax.xlane.f32.xlu0 %v671
    %v673 = vpop.xlane.xlu0 %672
    %v674 = vsub.f32 %v660, %v670
    %v675 = vsub.f32 %v665, %v673
    %v676 = vmul.f32 %v674, 1.442695
    %v677 = vpow.pop %v676
    %v678 = vmul.f32 %v675, 1.442695
    %v679 = vpow.pop %v678
    %v680 = vsel %vm267, %v677, 0.0
    %681 = vadd.xlane.f32.xlu0 %v680
    %v682 = vpop.xlane.xlu0 %681
    %v683 = vsel %vm267, %v679, 0.0
    %684 = vadd.xlane.f32.xlu0 %v683
    %v685 = vpop.xlane.xlu0 %684
    %686 = vrot.lane.b32.xlu0 %v165, 48
    %v687 = vpop.permute.xlu0 %686
    %688 = vrot.lane.b32.xlu0 %v170, 48
    %v689 = vpop.permute.xlu0 %688
    %v693 = vsel %vm267, %v677, 0
    %v696 = vsel %vm267, %v679, 0
    %698 = vmatprep.subr.mxu0 0.0
    %699 = vmatpush1.msra.mxu0 %v687
    %700 = vmatprep.subr.mxu0 0.0
    %701 = vmatpush1.msra.mxu0 %v689
    %702 = vmatprep.subr.mxu0 0.0
    %703 = vmatpush1.msra.mxu0 0.0
    %704 = vmatprep.subr.mxu0 0.0
    %705 = vmatpush1.msra.mxu0 0.0
    %706 = vmatprep.subr.mxu0 0.0
    %707 = vmatpush1.msra.mxu0 0.0
    %708 = vmatprep.subr.mxu0 0.0
    %709 = vmatpush1.msra.mxu0 0.0
    %710 = vmatprep.subr.mxu0 0.0
    %711 = vmatpush1.msra.mxu0 0.0
    %712 = vmatprep.subr.mxu0 0.0
    %713 = vmatpush1.msra.mxu0 0.0
    %714 = vmatprep.subr.mxu0 0.0
    %715 = vmatpush1.msra.mxu0 0.0
    %716 = vmatprep.subr.mxu0 0.0
    %717 = vmatpush1.msra.mxu0 0.0
    %718 = vmatprep.subr.mxu0 0.0
    %719 = vmatpush1.msra.mxu0 0.0
    %720 = vmatprep.subr.mxu0 0.0
    %721 = vmatpush1.msra.mxu0 0.0
    %722 = vmatprep.subr.mxu0 0.0
    %723 = vmatpush1.msra.mxu0 0.0
    %724 = vmatprep.subr.mxu0 0.0
    %725 = vmatpush1.msra.mxu0 0.0
    %726 = vmatprep.subr.mxu0 0.0
    %727 = vmatpush1.msra.mxu0 0.0
    %728 = vmatprep.subr.mxu0 0.0
    %729 = vmatpush1.msra.mxu0 0.0
    %730 = vmatprep.subr.mxu0 0.0
    %731 = vmatpush1.msra.mxu0 0.0
    %732 = vmatprep.subr.mxu0 0.0
    %733 = vmatpush1.msra.mxu0 0.0
    %734 = vmatprep.subr.mxu0 0.0
    %735 = vmatpush1.msra.mxu0 0.0
    %736 = vmatprep.subr.mxu0 0.0
    %737 = vmatpush1.msra.mxu0 0.0
    %738 = vmatprep.subr.mxu0 0.0
    %739 = vmatpush1.msra.mxu0 0.0
    %740 = vmatprep.subr.mxu0 0.0
    %741 = vmatpush1.msra.mxu0 0.0
    %742 = vmatprep.subr.mxu0 0.0
    %743 = vmatpush1.msra.mxu0 0.0
    %744 = vmatprep.subr.mxu0 0.0
    %745 = vmatpush1.msra.mxu0 0.0
    %746 = vmatprep.subr.mxu0 0.0
    %747 = vmatpush1.msra.mxu0 0.0
    %748 = vmatprep.subr.mxu0 0.0
    %749 = vmatpush1.msra.mxu0 0.0
    %750 = vmatprep.subr.mxu0 0.0
    %751 = vmatpush1.msra.mxu0 0.0
    %752 = vmatprep.subr.mxu0 0.0
    %753 = vmatpush1.msra.mxu0 0.0
    %754 = vmatprep.subr.mxu0 0.0
    %755 = vmatpush1.msra.mxu0 0.0
    %756 = vmatprep.subr.mxu0 0.0
    %757 = vmatpush1.msra.mxu0 0.0
    %758 = vmatprep.subr.mxu0 0.0
    %759 = vmatpush1.msra.mxu0 0.0
    %760 = vmatprep.subr.mxu0 0.0
    %761 = vmatpush1.msra.mxu0 0.0
    %762 = vmatprep.mubr.f32.mxu0 0.0
    %763 = vmatmul.mubr.f32.gmra.mrb[0].mxu0 %v693
    %v764 = vpop.f32.mrb[0].mxu0
    %v765 = vadd.f32 0.0, %v764
    %v766 = vpop.f32.mrb[0].mxu0
    %767 = vmatprep.mubr.f32.mxu0 0.0
    %768 = vmatmul.mubr.f32.gmra.mrb[0].mxu0 %v696
    %v769 = vpop.f32.mrb[0].mxu0
    %v770 = vadd.f32 0.0, %v769
    %v771 = vpop.f32.mrb[0].mxu0
    %772 = vdwg.mxu0
    %v773 = vrcp.pop %v682
    %v774 = vrcp.pop %v685
    %v775 = vmul.f32 %v765, %v773
    %v776 = vmul.f32 %v770, %v774
    %777 = vrot.lane.b32.xlu0 %v173, 104
    %v778 = vpop.permute.xlu0 %777
    %779 = vrot.lane.b32.xlu0 %v174, 104
    %v780 = vpop.permute.xlu0 %779
    %781 = vrot.lane.b32.xlu0 %v165, 72
    %v782 = vpop.permute.xlu0 %781
    %783 = vrot.lane.b32.xlu0 %v170, 72
    %v784 = vpop.permute.xlu0 %783
    %v785 = vsel %vm181, %v778, 0
    %v787 = vsel %vm181, %v780, 0
    %v789 = vsel %vm181, %v782, 0
    %v791 = vsel %vm181, %v784, 0
    %793 = vmatprep.subr.mxu0 0.0
    %794 = vmatpush1.xpose.msra.mxu0 %v789
    %795 = vmatprep.subr.mxu0 0.0
    %796 = vmatpush1.xpose.msra.mxu0 %v791
    %797 = vmatprep.subr.mxu0 0.0
    %798 = vmatpush1.xpose.msra.mxu0 0.0
    %799 = vmatprep.subr.mxu0 0.0
    %800 = vmatpush1.xpose.msra.mxu0 0.0
    %801 = vmatprep.subr.mxu0 0.0
    %802 = vmatpush1.xpose.msra.mxu0 0.0
    %803 = vmatprep.subr.mxu0 0.0
    %804 = vmatpush1.xpose.msra.mxu0 0.0
    %805 = vmatprep.subr.mxu0 0.0
    %806 = vmatpush1.xpose.msra.mxu0 0.0
    %807 = vmatprep.subr.mxu0 0.0
    %808 = vmatpush1.xpose.msra.mxu0 0.0
    %809 = vmatprep.subr.mxu0 0.0
    %810 = vmatpush1.xpose.msra.mxu0 0.0
    %811 = vmatprep.subr.mxu0 0.0
    %812 = vmatpush1.xpose.msra.mxu0 0.0
    %813 = vmatprep.subr.mxu0 0.0
    %814 = vmatpush1.xpose.msra.mxu0 0.0
    %815 = vmatprep.subr.mxu0 0.0
    %816 = vmatpush1.xpose.msra.mxu0 0.0
    %817 = vmatprep.subr.mxu0 0.0
    %818 = vmatpush1.xpose.msra.mxu0 0.0
    %819 = vmatprep.subr.mxu0 0.0
    %820 = vmatpush1.xpose.msra.mxu0 0.0
    %821 = vmatprep.subr.mxu0 0.0
    %822 = vmatpush1.xpose.msra.mxu0 0.0
    %823 = vmatprep.subr.mxu0 0.0
    %824 = vmatpush1.xpose.msra.mxu0 0.0
    %825 = vmatprep.subr.mxu0 0.0
    %826 = vmatpush1.xpose.msra.mxu0 0.0
    %827 = vmatprep.subr.mxu0 0.0
    %828 = vmatpush1.xpose.msra.mxu0 0.0
    %829 = vmatprep.subr.mxu0 0.0
    %830 = vmatpush1.xpose.msra.mxu0 0.0
    %831 = vmatprep.subr.mxu0 0.0
    %832 = vmatpush1.xpose.msra.mxu0 0.0
    %833 = vmatprep.subr.mxu0 0.0
    %834 = vmatpush1.xpose.msra.mxu0 0.0
    %835 = vmatprep.subr.mxu0 0.0
    %836 = vmatpush1.xpose.msra.mxu0 0.0
    %837 = vmatprep.subr.mxu0 0.0
    %838 = vmatpush1.xpose.msra.mxu0 0.0
    %839 = vmatprep.subr.mxu0 0.0
    %840 = vmatpush1.xpose.msra.mxu0 0.0
    %841 = vmatprep.subr.mxu0 0.0
    %842 = vmatpush1.xpose.msra.mxu0 0.0
    %843 = vmatprep.subr.mxu0 0.0
    %844 = vmatpush1.xpose.msra.mxu0 0.0
    %845 = vmatprep.subr.mxu0 0.0
    %846 = vmatpush1.xpose.msra.mxu0 0.0
    %847 = vmatprep.subr.mxu0 0.0
    %848 = vmatpush1.xpose.msra.mxu0 0.0
    %849 = vmatprep.subr.mxu0 0.0
    %850 = vmatpush1.xpose.msra.mxu0 0.0
    %851 = vmatprep.subr.mxu0 0.0
    %852 = vmatpush1.xpose.msra.mxu0 0.0
    %853 = vmatprep.subr.mxu0 0.0
    %854 = vmatpush1.xpose.msra.mxu0 0.0
    %855 = vmatprep.subr.mxu0 0.0
    %856 = vmatpush1.xpose.msra.mxu0 0.0
    %857 = vmatprep.mubr.f32.mxu0 0.0
    %858 = vmatmul.mubr.f32.gmra.mrb[0].mxu0 %v785
    %v859 = vpop.f32.mrb[0].mxu0
    %v860 = vadd.f32 %v76, %v859
    %v861 = vpop.f32.mrb[0].mxu0
    %862 = vmatprep.mubr.f32.mxu0 0.0
    %863 = vmatmul.mubr.f32.gmra.mrb[0].mxu0 %v787
    %v864 = vpop.f32.mrb[0].mxu0
    %v865 = vadd.f32 %v77, %v864
    %v866 = vpop.f32.mrb[0].mxu0
    %867 = vdwg.mxu0
    %v868 = vsel %vm267, %v860, -inf
    %869 = vmax.xlane.f32.xlu0 %v868
    %v870 = vpop.xlane.xlu0 %869
    %v871 = vsel %vm267, %v865, -inf
    %872 = vmax.xlane.f32.xlu0 %v871
    %v873 = vpop.xlane.xlu0 %872
    %v874 = vsub.f32 %v860, %v870
    %v875 = vsub.f32 %v865, %v873
    %v876 = vmul.f32 %v874, 1.442695
    %v877 = vpow.pop %v876
    %v878 = vmul.f32 %v875, 1.442695
    %v879 = vpow.pop %v878
    %v880 = vsel %vm267, %v877, 0.0
    %881 = vadd.xlane.f32.xlu0 %v880
    %v882 = vpop.xlane.xlu0 %881
    %v883 = vsel %vm267, %v879, 0.0
    %884 = vadd.xlane.f32.xlu0 %v883
    %v885 = vpop.xlane.xlu0 %884
    %886 = vrot.lane.b32.xlu0 %v165, 40
    %v887 = vpop.permute.xlu0 %886
    %888 = vrot.lane.b32.xlu0 %v170, 40
    %v889 = vpop.permute.xlu0 %888
    %v893 = vsel %vm267, %v877, 0
    %v896 = vsel %vm267, %v879, 0
    %898 = vmatprep.subr.mxu0 0.0
    %899 = vmatpush1.msra.mxu0 %v887
    %900 = vmatprep.subr.mxu0 0.0
    %901 = vmatpush1.msra.mxu0 %v889
    %902 = vmatprep.subr.mxu0 0.0
    %903 = vmatpush1.msra.mxu0 0.0
    %904 = vmatprep.subr.mxu0 0.0
    %905 = vmatpush1.msra.mxu0 0.0
    %906 = vmatprep.subr.mxu0 0.0
    %907 = vmatpush1.msra.mxu0 0.0
    %908 = vmatprep.subr.mxu0 0.0
    %909 = vmatpush1.msra.mxu0 0.0
    %910 = vmatprep.subr.mxu0 0.0
    %911 = vmatpush1.msra.mxu0 0.0
    %912 = vmatprep.subr.mxu0 0.0
    %913 = vmatpush1.msra.mxu0 0.0
    %914 = vmatprep.subr.mxu0 0.0
    %915 = vmatpush1.msra.mxu0 0.0
    %916 = vmatprep.subr.mxu0 0.0
    %917 = vmatpush1.msra.mxu0 0.0
    %918 = vmatprep.subr.mxu0 0.0
    %919 = vmatpush1.msra.mxu0 0.0
    %920 = vmatprep.subr.mxu0 0.0
    %921 = vmatpush1.msra.mxu0 0.0
    %922 = vmatprep.subr.mxu0 0.0
    %923 = vmatpush1.msra.mxu0 0.0
    %924 = vmatprep.subr.mxu0 0.0
    %925 = vmatpush1.msra.mxu0 0.0
    %926 = vmatprep.subr.mxu0 0.0
    %927 = vmatpush1.msra.mxu0 0.0
    %928 = vmatprep.subr.mxu0 0.0
    %929 = vmatpush1.msra.mxu0 0.0
    %930 = vmatprep.subr.mxu0 0.0
    %931 = vmatpush1.msra.mxu0 0.0
    %932 = vmatprep.subr.mxu0 0.0
    %933 = vmatpush1.msra.mxu0 0.0
    %934 = vmatprep.subr.mxu0 0.0
    %935 = vmatpush1.msra.mxu0 0.0
    %936 = vmatprep.subr.mxu0 0.0
    %937 = vmatpush1.msra.mxu0 0.0
    %938 = vmatprep.subr.mxu0 0.0
    %939 = vmatpush1.msra.mxu0 0.0
    %940 = vmatprep.subr.mxu0 0.0
    %941 = vmatpush1.msra.mxu0 0.0
    %942 = vmatprep.subr.mxu0 0.0
    %943 = vmatpush1.msra.mxu0 0.0
    %944 = vmatprep.subr.mxu0 0.0
    %945 = vmatpush1.msra.mxu0 0.0
    %946 = vmatprep.subr.mxu0 0.0
    %947 = vmatpush1.msra.mxu0 0.0
    %948 = vmatprep.subr.mxu0 0.0
    %949 = vmatpush1.msra.mxu0 0.0
    %950 = vmatprep.subr.mxu0 0.0
    %951 = vmatpush1.msra.mxu0 0.0
    %952 = vmatprep.subr.mxu0 0.0
    %953 = vmatpush1.msra.mxu0 0.0
    %954 = vmatprep.subr.mxu0 0.0
    %955 = vmatpush1.msra.mxu0 0.0
    %956 = vmatprep.subr.mxu0 0.0
    %957 = vmatpush1.msra.mxu0 0.0
    %958 = vmatprep.subr.mxu0 0.0
    %959 = vmatpush1.msra.mxu0 0.0
    %960 = vmatprep.subr.mxu0 0.0
    %961 = vmatpush1.msra.mxu0 0.0
    %962 = vmatprep.mubr.f32.mxu0 0.0
    %963 = vmatmul.mubr.f32.gmra.mrb[0].mxu0 %v893
    %v964 = vpop.f32.mrb[0].mxu0
    %v965 = vadd.f32 0.0, %v964
    %v966 = vpop.f32.mrb[0].mxu0
    %967 = vmatprep.mubr.f32.mxu0 0.0
    %968 = vmatmul.mubr.f32.gmra.mrb[0].mxu0 %v896
    %v969 = vpop.f32.mrb[0].mxu0
    %v970 = vadd.f32 0.0, %v969
    %v971 = vpop.f32.mrb[0].mxu0
    %972 = vdwg.mxu0
    %v973 = vrcp.pop %v882
    %v974 = vrcp.pop %v885
    %v975 = vmul.f32 %v965, %v973
    %v976 = vmul.f32 %v970, %v974
    %979 = vrot.lane.b32.xlu0 %v575, 8
    %v980 = vpop.permute.xlu0 %979
    %981 = vrot.lane.b32.xlu0 %v576, 8
    %v982 = vpop.permute.xlu0 %981
    %987 = vrot.lane.b32.xlu0 %v775, 16
    %v988 = vpop.permute.xlu0 %987
    %989 = vrot.lane.b32.xlu0 %v776, 16
    %v990 = vpop.permute.xlu0 %989
    %995 = vrot.lane.b32.xlu0 %v975, 24
    %v996 = vpop.permute.xlu0 %995
    %997 = vrot.lane.b32.xlu0 %v976, 24
    %v998 = vpop.permute.xlu0 %997
    %v1001 = vsel %vm181, %v375, %v980
    %v1002 = vsel %vm181, %v376, %v982
    %v1003 = vsel %vm267, %v1001, %v988
    %v1004 = vsel %vm267, %v1002, %v990
    %vm1005 = vcmask 195584
    %v1006 = vsel %vm1005, %v1003, %v996
    %v1007 = vsel %vm1005, %v1004, %v998
    %v1008 = vld [vmem:[%s4] sm:$0xff]
    %v1009 = vld [vmem:[%s4 + $0x8] sm:$0xff]
    %v1010 = vld [vmem:[%s4 + $0x10] sm:$0xff]
    %v1011 = vld [vmem:[%s4 + $0x18] sm:$0xff]
    %v1012 = vld [vmem:[%s5] sm:$0x1]
    %v1014 = vlaneseq
    %v1015 = vshrl.u32 %v1014, 7
    %v1016 = vsub.s32 0, %v1015
    %v1017 = vrot.slane %v1012, %v1016
    %v1020 = vsel %vm91, %v1006, 0
    %v1023 = vsel %vm91, %v1007, 0
    %1025 = vmatprep.subr.mxu0 0.0
    %1026 = vmatpush1.msra.mxu0 %v1008
    %1027 = vmatprep.subr.mxu0 0.0
    %1028 = vmatpush1.msra.mxu0 %v1009
    %1029 = vmatprep.subr.mxu0 0.0
    %1030 = vmatpush1.msra.mxu0 %v1010
    %1031 = vmatprep.subr.mxu0 0.0
    %1032 = vmatpush1.msra.mxu0 %v1011
    %1033 = vmatprep.subr.mxu0 0.0
    %1034 = vmatpush1.msra.mxu0 0.0
    %1035 = vmatprep.subr.mxu0 0.0
    %1036 = vmatpush1.msra.mxu0 0.0
    %1037 = vmatprep.subr.mxu0 0.0
    %1038 = vmatpush1.msra.mxu0 0.0
    %1039 = vmatprep.subr.mxu0 0.0
    %1040 = vmatpush1.msra.mxu0 0.0
    %1041 = vmatprep.subr.mxu0 0.0
    %1042 = vmatpush1.msra.mxu0 0.0
    %1043 = vmatprep.subr.mxu0 0.0
    %1044 = vmatpush1.msra.mxu0 0.0
    %1045 = vmatprep.subr.mxu0 0.0
    %1046 = vmatpush1.msra.mxu0 0.0
    %1047 = vmatprep.subr.mxu0 0.0
    %1048 = vmatpush1.msra.mxu0 0.0
    %1049 = vmatprep.subr.mxu0 0.0
    %1050 = vmatpush1.msra.mxu0 0.0
    %1051 = vmatprep.subr.mxu0 0.0
    %1052 = vmatpush1.msra.mxu0 0.0
    %1053 = vmatprep.subr.mxu0 0.0
    %1054 = vmatpush1.msra.mxu0 0.0
    %1055 = vmatprep.subr.mxu0 0.0
    %1056 = vmatpush1.msra.mxu0 0.0
    %1057 = vmatprep.subr.mxu0 0.0
    %1058 = vmatpush1.msra.mxu0 0.0
    %1059 = vmatprep.subr.mxu0 0.0
    %1060 = vmatpush1.msra.mxu0 0.0
    %1061 = vmatprep.subr.mxu0 0.0
    %1062 = vmatpush1.msra.mxu0 0.0
    %1063 = vmatprep.subr.mxu0 0.0
    %1064 = vmatpush1.msra.mxu0 0.0
    %1065 = vmatprep.subr.mxu0 0.0
    %1066 = vmatpush1.msra.mxu0 0.0
    %1067 = vmatprep.subr.mxu0 0.0
    %1068 = vmatpush1.msra.mxu0 0.0
    %1069 = vmatprep.subr.mxu0 0.0
    %1070 = vmatpush1.msra.mxu0 0.0
    %1071 = vmatprep.subr.mxu0 0.0
    %1072 = vmatpush1.msra.mxu0 0.0
    %1073 = vmatprep.subr.mxu0 0.0
    %1074 = vmatpush1.msra.mxu0 0.0
    %1075 = vmatprep.subr.mxu0 0.0
    %1076 = vmatpush1.msra.mxu0 0.0
    %1077 = vmatprep.subr.mxu0 0.0
    %1078 = vmatpush1.msra.mxu0 0.0
    %1079 = vmatprep.subr.mxu0 0.0
    %1080 = vmatpush1.msra.mxu0 0.0
    %1081 = vmatprep.subr.mxu0 0.0
    %1082 = vmatpush1.msra.mxu0 0.0
    %1083 = vmatprep.subr.mxu0 0.0
    %1084 = vmatpush1.msra.mxu0 0.0
    %1085 = vmatprep.subr.mxu0 0.0
    %1086 = vmatpush1.msra.mxu0 0.0
    %1087 = vmatprep.subr.mxu0 0.0
    %1088 = vmatpush1.msra.mxu0 0.0
    %1089 = vmatprep.mubr.f32.mxu0 0.0
    %1090 = vmatmul.mubr.f32.gmra.mrb[0].mxu0 %v1020
    %v1091 = vpop.f32.mrb[0].mxu0
    %v1092 = vadd.f32 %v1017, %v1091
    %v1093 = vpop.f32.mrb[0].mxu0
    %1094 = vmatprep.mubr.f32.mxu0 0.0
    %1095 = vmatmul.mubr.f32.gmra.mrb[0].mxu0 %v1023
    %v1096 = vpop.f32.mrb[0].mxu0
    %v1097 = vadd.f32 %v1017, %v1096
    %v1098 = vpop.f32.mrb[0].mxu0
    %1099 = vdwg.mxu0
    %v1100 = vadd.f32 %v1092, %v78
    %v1101 = vadd.f32 %v1097, %v79
    %v1102 = vld [vmem:[%s6] sm:$0x1]
    %v1103 = vld [vmem:[%s7] sm:$0x1]
    %v1104 = vsel %vm91, %v1100, 0.0
    %1105 = vadd.xlane.f32.xlu0 %v1104
    %v1106 = vpop.xlane.xlu0 %1105
    %v1107 = vsel %vm91, %v1101, 0.0
    %1108 = vadd.xlane.f32.xlu0 %v1107
    %v1109 = vpop.xlane.xlu0 %1108
    %v1110 = vrcp.pop 32.0
    %v1111 = vmul.f32 %v1106, %v1110
    %v1112 = vmul.f32 %v1109, %v1110
    %v1113 = vsub.f32 %v1100, %v1111
    %v1114 = vsub.f32 %v1101, %v1112
    %v1115 = vmul.f32 %v1113, %v1113
    %v1116 = vmul.f32 %v1114, %v1114
    %v1117 = vsel %vm91, %v1115, 0.0
    %1118 = vadd.xlane.f32.xlu0 %v1117
    %v1119 = vpop.xlane.xlu0 %1118
    %v1120 = vsel %vm91, %v1116, 0.0
    %1121 = vadd.xlane.f32.xlu0 %v1120
    %v1122 = vpop.xlane.xlu0 %1121
    %v1123 = vmul.f32 %v1119, %v1110
    %v1124 = vmul.f32 %v1122, %v1110
    %v1125 = vadd.f32 %v1123, 1e-12
    %v1126 = vadd.f32 %v1124, 1e-12
    %v1127 = vrsqrt.pop %v1125
    %v1128 = vrsqrt.pop %v1126
    %v1129 = vmul.f32 %v1113, %v1127
    %v1130 = vmul.f32 %v1114, %v1128
    %v1132 = vlaneseq
    %v1133 = vshrl.u32 %v1132, 7
    %v1134 = vsub.s32 0, %v1133
    %v1135 = vrot.slane %v1102, %v1134
    %v1137 = vmul.f32 %v1129, %v1135
    %v1138 = vmul.f32 %v1130, %v1135
    %v1140 = vlaneseq
    %v1141 = vshrl.u32 %v1140, 7
    %v1142 = vsub.s32 0, %v1141
    %v1143 = vrot.slane %v1103, %v1142
    %v1145 = vadd.f32 %v1137, %v1143
    %v1146 = vadd.f32 %v1138, %v1143
    %v1147 = vld [vmem:[%s8] sm:$0xff]
    %v1148 = vld [vmem:[%s8 + $0x8] sm:$0xff]
    %v1149 = vld [vmem:[%s8 + $0x10] sm:$0xff]
    %v1150 = vld [vmem:[%s8 + $0x18] sm:$0xff]
    %v1151 = vld [vmem:[%s9] sm:$0x1]
    %v1153 = vlaneseq
    %v1154 = vshrl.u32 %v1153, 7
    %v1155 = vsub.s32 0, %v1154
    %v1156 = vrot.slane %v1151, %v1155
    %v1159 = vsel %vm91, %v1145, 0
    %v1162 = vsel %vm91, %v1146, 0
    %1164 = vmatprep.subr.mxu0 0.0
    %1165 = vmatpush1.msra.mxu0 %v1147
    %1166 = vmatprep.subr.mxu0 0.0
    %1167 = vmatpush1.msra.mxu0 %v1148
    %1168 = vmatprep.subr.mxu0 0.0
    %1169 = vmatpush1.msra.mxu0 %v1149
    %1170 = vmatprep.subr.mxu0 0.0
    %1171 = vmatpush1.msra.mxu0 %v1150
    %1172 = vmatprep.subr.mxu0 0.0
    %1173 = vmatpush1.msra.mxu0 0.0
    %1174 = vmatprep.subr.mxu0 0.0
    %1175 = vmatpush1.msra.mxu0 0.0
    %1176 = vmatprep.subr.mxu0 0.0
    %1177 = vmatpush1.msra.mxu0 0.0
    %1178 = vmatprep.subr.mxu0 0.0
    %1179 = vmatpush1.msra.mxu0 0.0
    %1180 = vmatprep.subr.mxu0 0.0
    %1181 = vmatpush1.msra.mxu0 0.0
    %1182 = vmatprep.subr.mxu0 0.0
    %1183 = vmatpush1.msra.mxu0 0.0
    %1184 = vmatprep.subr.mxu0 0.0
    %1185 = vmatpush1.msra.mxu0 0.0
    %1186 = vmatprep.subr.mxu0 0.0
    %1187 = vmatpush1.msra.mxu0 0.0
    %1188 = vmatprep.subr.mxu0 0.0
    %1189 = vmatpush1.msra.mxu0 0.0
    %1190 = vmatprep.subr.mxu0 0.0
    %1191 = vmatpush1.msra.mxu0 0.0
    %1192 = vmatprep.subr.mxu0 0.0
    %1193 = vmatpush1.msra.mxu0 0.0
    %1194 = vmatprep.subr.mxu0 0.0
    %1195 = vmatpush1.msra.mxu0 0.0
    %1196 = vmatprep.subr.mxu0 0.0
    %1197 = vmatpush1.msra.mxu0 0.0
    %1198 = vmatprep.subr.mxu0 0.0
    %1199 = vmatpush1.msra.mxu0 0.0
    %1200 = vmatprep.subr.mxu0 0.0
    %1201 = vmatpush1.msra.mxu0 0.0
    %1202 = vmatprep.subr.mxu0 0.0
    %1203 = vmatpush1.msra.mxu0 0.0
    %1204 = vmatprep.subr.mxu0 0.0
    %1205 = vmatpush1.msra.mxu0 0.0
    %1206 = vmatprep.subr.mxu0 0.0
    %1207 = vmatpush1.msra.mxu0 0.0
    %1208 = vmatprep.subr.mxu0 0.0
    %1209 = vmatpush1.msra.mxu0 0.0
    %1210 = vmatprep.subr.mxu0 0.0
    %1211 = vmatpush1.msra.mxu0 0.0
    %1212 = vmatprep.subr.mxu0 0.0
    %1213 = vmatpush1.msra.mxu0 0.0
    %1214 = vmatprep.subr.mxu0 0.0
    %1215 = vmatpush1.msra.mxu0 0.0
    %1216 = vmatprep.subr.mxu0 0.0
    %1217 = vmatpush1.msra.mxu0 0.0
    %1218 = vmatprep.subr.mxu0 0.0
    %1219 = vmatpush1.msra.mxu0 0.0
    %1220 = vmatprep.subr.mxu0 0.0
    %1221 = vmatpush1.msra.mxu0 0.0
    %1222 = vmatprep.subr.mxu0 0.0
    %1223 = vmatpush1.msra.mxu0 0.0
    %1224 = vmatprep.subr.mxu0 0.0
    %1225 = vmatpush1.msra.mxu0 0.0
    %1226 = vmatprep.subr.mxu0 0.0
    %1227 = vmatpush1.msra.mxu0 0.0
    %1228 = vmatprep.mubr.f32.mxu0 0.0
    %1229 = vmatmul.mubr.f32.gmra.mrb[0].mxu0 %v1159
    %v1230 = vpop.f32.mrb[0].mxu0
    %v1231 = vadd.f32 %v1156, %v1230
    %v1232 = vpop.f32.mrb[0].mxu0
    %1233 = vmatprep.mubr.f32.mxu0 0.0
    %1234 = vmatmul.mubr.f32.gmra.mrb[0].mxu0 %v1162
    %v1235 = vpop.f32.mrb[0].mxu0
    %v1236 = vadd.f32 %v1156, %v1235
    %v1237 = vpop.f32.mrb[0].mxu0
    %1238 = vdwg.mxu0
    %v1239 = vmul.f32 %v1231, 0.5
    %v1240 = vmul.f32 %v1236, 0.5
    %v1241 = vmul.f32 %v1231, 0.70710677
    %v1242 = vmul.f32 %v1236, 0.70710677
    %v1243 = vand.u32 2147483647, %v1241
    %v1244 = vand.u32 2147483647, %v1242
    %v1245 = vmul.f32 %v1243, 0.3275911
    %v1246 = vmul.f32 %v1244, 0.3275911
    %v1247 = vadd.f32 %v1245, 1.0
    %v1248 = vadd.f32 %v1246, 1.0
    %v1249 = vrcp.pop %v1247
    %v1250 = vrcp.pop %v1248
    %v1251 = vmul.f32 %v1249, 1.0614054
    %v1252 = vmul.f32 %v1250, 1.0614054
    %v1253 = vadd.f32 %v1251, -1.4531521
    %v1254 = vadd.f32 %v1252, -1.4531521
    %v1255 = vmul.f32 %v1253, %v1249
    %v1256 = vmul.f32 %v1254, %v1250
    %v1257 = vadd.f32 %v1255, 1.4214138
    %v1258 = vadd.f32 %v1256, 1.4214138
    %v1259 = vmul.f32 %v1257, %v1249
    %v1260 = vmul.f32 %v1258, %v1250
    %v1261 = vadd.f32 %v1259, -0.28449672
    %v1262 = vadd.f32 %v1260, -0.28449672
    %v1263 = vmul.f32 %v1261, %v1249
    %v1264 = vmul.f32 %v1262, %v1250
    %v1265 = vadd.f32 %v1263, 0.2548296
    %v1266 = vadd.f32 %v1264, 0.2548296
    %v1267 = vmul.f32 %v1265, %v1249
    %v1268 = vmul.f32 %v1266, %v1250
    %v1269 = vsub.f32 0.0, %v1243
    %v1270 = vsub.f32 0.0, %v1244
    %v1271 = vmul.f32 %v1269, %v1243
    %v1272 = vmul.f32 %v1270, %v1244
    %v1273 = vmul.f32 %v1271, 1.442695
    %v1274 = vpow.pop %v1273
    %v1275 = vmul.f32 %v1272, 1.442695
    %v1276 = vpow.pop %v1275
    %v1277 = vmul.f32 %v1267, %v1274
    %v1278 = vmul.f32 %v1268, %v1276
    %v1279 = vsub.f32 1.0, %v1277
    %v1280 = vsub.f32 1.0, %v1278
    %vm1281 = vcmp.ge.f32.partialorder %v1241, 0.0
    %vm1282 = vcmp.ge.f32.partialorder %v1242, 0.0
    %v1283 = vsub.f32 0.0, %v1279
    %v1284 = vsub.f32 0.0, %v1280
    %v1285 = vsel %vm1281, %v1279, %v1283
    %v1286 = vsel %vm1282, %v1280, %v1284
    %v1287 = vadd.f32 %v1285, 1.0
    %v1288 = vadd.f32 %v1286, 1.0
    %v1289 = vmul.f32 %v1239, %v1287
    %v1290 = vmul.f32 %v1240, %v1288
    %v1291 = vld [vmem:[%s10] sm:$0xff]
    %v1292 = vld [vmem:[%s10 + $0x8] sm:$0xff]
    %v1293 = vld [vmem:[%s10 + $0x10] sm:$0xff]
    %v1294 = vld [vmem:[%s10 + $0x18] sm:$0xff]
    %v1295 = vld [vmem:[%s10 + $0x20] sm:$0xff]
    %v1296 = vld [vmem:[%s10 + $0x28] sm:$0xff]
    %v1297 = vld [vmem:[%s10 + $0x30] sm:$0xff]
    %v1298 = vld [vmem:[%s10 + $0x38] sm:$0xff]
    %v1299 = vld [vmem:[%s11] sm:$0x1]
    %v1301 = vlaneseq
    %v1302 = vshrl.u32 %v1301, 7
    %v1303 = vsub.s32 0, %v1302
    %v1304 = vrot.slane %v1299, %v1303
    %vm1306 = vcmask 523264
    %v1308 = vsel %vm1306, %v1289, 0
    %v1311 = vsel %vm1306, %v1290, 0
    %1313 = vmatprep.subr.mxu0 0.0
    %1314 = vmatpush1.msra.mxu0 %v1291
    %1315 = vmatprep.subr.mxu0 0.0
    %1316 = vmatpush1.msra.mxu0 %v1292
    %1317 = vmatprep.subr.mxu0 0.0
    %1318 = vmatpush1.msra.mxu0 %v1293
    %1319 = vmatprep.subr.mxu0 0.0
    %1320 = vmatpush1.msra.mxu0 %v1294
    %1321 = vmatprep.subr.mxu0 0.0
    %1322 = vmatpush1.msra.mxu0 %v1295
    %1323 = vmatprep.subr.mxu0 0.0
    %1324 = vmatpush1.msra.mxu0 %v1296
    %1325 = vmatprep.subr.mxu0 0.0
    %1326 = vmatpush1.msra.mxu0 %v1297
    %1327 = vmatprep.subr.mxu0 0.0
    %1328 = vmatpush1.msra.mxu0 %v1298
    %1329 = vmatprep.subr.mxu0 0.0
    %1330 = vmatpush1.msra.mxu0 0.0
    %1331 = vmatprep.subr.mxu0 0.0
    %1332 = vmatpush1.msra.mxu0 0.0
    %1333 = vmatprep.subr.mxu0 0.0
    %1334 = vmatpush1.msra.mxu0 0.0
    %1335 = vmatprep.subr.mxu0 0.0
    %1336 = vmatpush1.msra.mxu0 0.0
    %1337 = vmatprep.subr.mxu0 0.0
    %1338 = vmatpush1.msra.mxu0 0.0
    %1339 = vmatprep.subr.mxu0 0.0
    %1340 = vmatpush1.msra.mxu0 0.0
    %1341 = vmatprep.subr.mxu0 0.0
    %1342 = vmatpush1.msra.mxu0 0.0
    %1343 = vmatprep.subr.mxu0 0.0
    %1344 = vmatpush1.msra.mxu0 0.0
    %1345 = vmatprep.subr.mxu0 0.0
    %1346 = vmatpush1.msra.mxu0 0.0
    %1347 = vmatprep.subr.mxu0 0.0
    %1348 = vmatpush1.msra.mxu0 0.0
    %1349 = vmatprep.subr.mxu0 0.0
    %1350 = vmatpush1.msra.mxu0 0.0
    %1351 = vmatprep.subr.mxu0 0.0
    %1352 = vmatpush1.msra.mxu0 0.0
    %1353 = vmatprep.subr.mxu0 0.0
    %1354 = vmatpush1.msra.mxu0 0.0
    %1355 = vmatprep.subr.mxu0 0.0
    %1356 = vmatpush1.msra.mxu0 0.0
    %1357 = vmatprep.subr.mxu0 0.0
    %1358 = vmatpush1.msra.mxu0 0.0
    %1359 = vmatprep.subr.mxu0 0.0
    %1360 = vmatpush1.msra.mxu0 0.0
    %1361 = vmatprep.subr.mxu0 0.0
    %1362 = vmatpush1.msra.mxu0 0.0
    %1363 = vmatprep.subr.mxu0 0.0
    %1364 = vmatpush1.msra.mxu0 0.0
    %1365 = vmatprep.subr.mxu0 0.0
    %1366 = vmatpush1.msra.mxu0 0.0
    %1367 = vmatprep.subr.mxu0 0.0
    %1368 = vmatpush1.msra.mxu0 0.0
    %1369 = vmatprep.subr.mxu0 0.0
    %1370 = vmatpush1.msra.mxu0 0.0
    %1371 = vmatprep.subr.mxu0 0.0
    %1372 = vmatpush1.msra.mxu0 0.0
    %1373 = vmatprep.subr.mxu0 0.0
    %1374 = vmatpush1.msra.mxu0 0.0
    %1375 = vmatprep.subr.mxu0 0.0
    %1376 = vmatpush1.msra.mxu0 0.0
    %1377 = vmatprep.mubr.f32.mxu0 0.0
    %1378 = vmatmul.mubr.f32.gmra.mrb[0].mxu0 %v1308
    %v1379 = vpop.f32.mrb[0].mxu0
    %v1380 = vadd.f32 %v1304, %v1379
    %v1381 = vpop.f32.mrb[0].mxu0
    %1382 = vmatprep.mubr.f32.mxu0 0.0
    %1383 = vmatmul.mubr.f32.gmra.mrb[0].mxu0 %v1311
    %v1384 = vpop.f32.mrb[0].mxu0
    %v1385 = vadd.f32 %v1304, %v1384
    %v1386 = vpop.f32.mrb[0].mxu0
    %1387 = vdwg.mxu0
    %v1388 = vadd.f32 %v1380, %v1145
    %v1389 = vadd.f32 %v1385, %v1146
    %v1390 = vld [vmem:[%s12] sm:$0x1]
    %v1391 = vld [vmem:[%s13] sm:$0x1]
    %v1392 = vsel %vm91, %v1388, 0.0
    %1393 = vadd.xlane.f32.xlu0 %v1392
    %v1394 = vpop.xlane.xlu0 %1393
    %v1395 = vsel %vm91, %v1389, 0.0
    %1396 = vadd.xlane.f32.xlu0 %v1395
    %v1397 = vpop.xlane.xlu0 %1396
    %v1398 = vmul.f32 %v1394, %v1110
    %v1399 = vmul.f32 %v1397, %v1110
    %v1400 = vsub.f32 %v1388, %v1398
    %v1401 = vsub.f32 %v1389, %v1399
    %v1402 = vmul.f32 %v1400, %v1400
    %v1403 = vmul.f32 %v1401, %v1401
    %v1404 = vsel %vm91, %v1402, 0.0
    %1405 = vadd.xlane.f32.xlu0 %v1404
    %v1406 = vpop.xlane.xlu0 %1405
    %v1407 = vsel %vm91, %v1403, 0.0
    %1408 = vadd.xlane.f32.xlu0 %v1407
    %v1409 = vpop.xlane.xlu0 %1408
    %v1410 = vmul.f32 %v1406, %v1110
    %v1411 = vmul.f32 %v1409, %v1110
    %v1412 = vadd.f32 %v1410, 1e-12
    %v1413 = vadd.f32 %v1411, 1e-12
    %v1414 = vrsqrt.pop %v1412
    %v1415 = vrsqrt.pop %v1413
    %v1416 = vmul.f32 %v1400, %v1414
    %v1417 = vmul.f32 %v1401, %v1415
    %v1419 = vlaneseq
    %v1420 = vshrl.u32 %v1419, 7
    %v1421 = vsub.s32 0, %v1420
    %v1422 = vrot.slane %v1390, %v1421
    %v1424 = vmul.f32 %v1416, %v1422
    %v1425 = vmul.f32 %v1417, %v1422
    %v1427 = vlaneseq
    %v1428 = vshrl.u32 %v1427, 7
    %v1429 = vsub.s32 0, %v1428
    %v1430 = vrot.slane %v1391, %v1429
    %v1432 = vadd.f32 %v1424, %v1430
    %v1433 = vadd.f32 %v1425, %v1430
    %s1434 = scalar_lea.vmem %s2, 32
    %v1435 = vld [vmem:[%s1434] sm:$0xff]
    %v1436 = vld [vmem:[%s1434 + $0x8] sm:$0xff]
    %v1437 = vld [vmem:[%s1434 + $0x10] sm:$0xff]
    %v1438 = vld [vmem:[%s1434 + $0x18] sm:$0xff]
    %s1439 = scalar_lea.vmem %s3, 1
    %v1440 = vld [vmem:[%s1439] sm:$0x1]
    %v1442 = vlaneseq
    %v1443 = vshrl.u32 %v1442, 7
    %v1444 = vsub.s32 0, %v1443
    %v1445 = vrot.slane %v1440, %v1444
    %v1448 = vsel %vm91, %v1432, 0
    %v1451 = vsel %vm91, %v1433, 0
    %1453 = vmatprep.subr.mxu0 0.0
    %1454 = vmatpush1.msra.mxu0 %v1435
    %1455 = vmatprep.subr.mxu0 0.0
    %1456 = vmatpush1.msra.mxu0 %v1436
    %1457 = vmatprep.subr.mxu0 0.0
    %1458 = vmatpush1.msra.mxu0 %v1437
    %1459 = vmatprep.subr.mxu0 0.0
    %1460 = vmatpush1.msra.mxu0 %v1438
    %1461 = vmatprep.subr.mxu0 0.0
    %1462 = vmatpush1.msra.mxu0 0.0
    %1463 = vmatprep.subr.mxu0 0.0
    %1464 = vmatpush1.msra.mxu0 0.0
    %1465 = vmatprep.subr.mxu0 0.0
    %1466 = vmatpush1.msra.mxu0 0.0
    %1467 = vmatprep.subr.mxu0 0.0
    %1468 = vmatpush1.msra.mxu0 0.0
    %1469 = vmatprep.subr.mxu0 0.0
    %1470 = vmatpush1.msra.mxu0 0.0
    %1471 = vmatprep.subr.mxu0 0.0
    %1472 = vmatpush1.msra.mxu0 0.0
    %1473 = vmatprep.subr.mxu0 0.0
    %1474 = vmatpush1.msra.mxu0 0.0
    %1475 = vmatprep.subr.mxu0 0.0
    %1476 = vmatpush1.msra.mxu0 0.0
    %1477 = vmatprep.subr.mxu0 0.0
    %1478 = vmatpush1.msra.mxu0 0.0
    %1479 = vmatprep.subr.mxu0 0.0
    %1480 = vmatpush1.msra.mxu0 0.0
    %1481 = vmatprep.subr.mxu0 0.0
    %1482 = vmatpush1.msra.mxu0 0.0
    %1483 = vmatprep.subr.mxu0 0.0
    %1484 = vmatpush1.msra.mxu0 0.0
    %1485 = vmatprep.subr.mxu0 0.0
    %1486 = vmatpush1.msra.mxu0 0.0
    %1487 = vmatprep.subr.mxu0 0.0
    %1488 = vmatpush1.msra.mxu0 0.0
    %1489 = vmatprep.subr.mxu0 0.0
    %1490 = vmatpush1.msra.mxu0 0.0
    %1491 = vmatprep.subr.mxu0 0.0
    %1492 = vmatpush1.msra.mxu0 0.0
    %1493 = vmatprep.subr.mxu0 0.0
    %1494 = vmatpush1.msra.mxu0 0.0
    %1495 = vmatprep.subr.mxu0 0.0
    %1496 = vmatpush1.msra.mxu0 0.0
    %1497 = vmatprep.subr.mxu0 0.0
    %1498 = vmatpush1.msra.mxu0 0.0
    %1499 = vmatprep.subr.mxu0 0.0
    %1500 = vmatpush1.msra.mxu0 0.0
    %1501 = vmatprep.subr.mxu0 0.0
    %1502 = vmatpush1.msra.mxu0 0.0
    %1503 = vmatprep.subr.mxu0 0.0
    %1504 = vmatpush1.msra.mxu0 0.0
    %1505 = vmatprep.subr.mxu0 0.0
    %1506 = vmatpush1.msra.mxu0 0.0
    %1507 = vmatprep.subr.mxu0 0.0
    %1508 = vmatpush1.msra.mxu0 0.0
    %1509 = vmatprep.subr.mxu0 0.0
    %1510 = vmatpush1.msra.mxu0 0.0
    %1511 = vmatprep.subr.mxu0 0.0
    %1512 = vmatpush1.msra.mxu0 0.0
    %1513 = vmatprep.subr.mxu0 0.0
    %1514 = vmatpush1.msra.mxu0 0.0
    %1515 = vmatprep.subr.mxu0 0.0
    %1516 = vmatpush1.msra.mxu0 0.0
    %1517 = vmatprep.mubr.f32.mxu0 0.0
    %1518 = vmatmul.mubr.f32.gmra.mrb[0].mxu0 %v1448
    %v1519 = vpop.f32.mrb[0].mxu0
    %v1520 = vadd.f32 %v1445, %v1519
    %v1521 = vpop.f32.mrb[0].mxu0
    %1522 = vmatprep.mubr.f32.mxu0 0.0
    %1523 = vmatmul.mubr.f32.gmra.mrb[0].mxu0 %v1451
    %v1524 = vpop.f32.mrb[0].mxu0
    %v1525 = vadd.f32 %v1445, %v1524
    %v1526 = vpop.f32.mrb[0].mxu0
    %1527 = vdwg.mxu0
    %v1528 = vmul.f32 %v1520, 0.35355338
    %v1529 = vmul.f32 %v1525, 0.35355338
    %1532 = vrot.lane.b32.xlu0 %v1520, 96
    %v1533 = vpop.permute.xlu0 %1532
    %1534 = vrot.lane.b32.xlu0 %v1525, 96
    %v1535 = vpop.permute.xlu0 %1534
    %v1537 = vsel %vm181, %v1528, 0
    %v1540 = vsel %vm181, %v1529, 0
    %v1542 = vsel %vm181, %v1533, 0
    %v1544 = vsel %vm181, %v1535, 0
    %1546 = vmatprep.subr.mxu0 0.0
    %1547 = vmatpush1.xpose.msra.mxu0 %v1542
    %1548 = vmatprep.subr.mxu0 0.0
    %1549 = vmatpush1.xpose.msra.mxu0 %v1544
    %1550 = vmatprep.subr.mxu0 0.0
    %1551 = vmatpush1.xpose.msra.mxu0 0.0
    %1552 = vmatprep.subr.mxu0 0.0
    %1553 = vmatpush1.xpose.msra.mxu0 0.0
    %1554 = vmatprep.subr.mxu0 0.0
    %1555 = vmatpush1.xpose.msra.mxu0 0.0
    %1556 = vmatprep.subr.mxu0 0.0
    %1557 = vmatpush1.xpose.msra.mxu0 0.0
    %1558 = vmatprep.subr.mxu0 0.0
    %1559 = vmatpush1.xpose.msra.mxu0 0.0
    %1560 = vmatprep.subr.mxu0 0.0
    %1561 = vmatpush1.xpose.msra.mxu0 0.0
    %1562 = vmatprep.subr.mxu0 0.0
    %1563 = vmatpush1.xpose.msra.mxu0 0.0
    %1564 = vmatprep.subr.mxu0 0.0
    %1565 = vmatpush1.xpose.msra.mxu0 0.0
    %1566 = vmatprep.subr.mxu0 0.0
    %1567 = vmatpush1.xpose.msra.mxu0 0.0
    %1568 = vmatprep.subr.mxu0 0.0
    %1569 = vmatpush1.xpose.msra.mxu0 0.0
    %1570 = vmatprep.subr.mxu0 0.0
    %1571 = vmatpush1.xpose.msra.mxu0 0.0
    %1572 = vmatprep.subr.mxu0 0.0
    %1573 = vmatpush1.xpose.msra.mxu0 0.0
    %1574 = vmatprep.subr.mxu0 0.0
    %1575 = vmatpush1.xpose.msra.mxu0 0.0
    %1576 = vmatprep.subr.mxu0 0.0
    %1577 = vmatpush1.xpose.msra.mxu0 0.0
    %1578 = vmatprep.subr.mxu0 0.0
    %1579 = vmatpush1.xpose.msra.mxu0 0.0
    %1580 = vmatprep.subr.mxu0 0.0
    %1581 = vmatpush1.xpose.msra.mxu0 0.0
    %1582 = vmatprep.subr.mxu0 0.0
    %1583 = vmatpush1.xpose.msra.mxu0 0.0
    %1584 = vmatprep.subr.mxu0 0.0
    %1585 = vmatpush1.xpose.msra.mxu0 0.0
    %1586 = vmatprep.subr.mxu0 0.0
    %1587 = vmatpush1.xpose.msra.mxu0 0.0
    %1588 = vmatprep.subr.mxu0 0.0
    %1589 = vmatpush1.xpose.msra.mxu0 0.0
    %1590 = vmatprep.subr.mxu0 0.0
    %1591 = vmatpush1.xpose.msra.mxu0 0.0
    %1592 = vmatprep.subr.mxu0 0.0
    %1593 = vmatpush1.xpose.msra.mxu0 0.0
    %1594 = vmatprep.subr.mxu0 0.0
    %1595 = vmatpush1.xpose.msra.mxu0 0.0
    %1596 = vmatprep.subr.mxu0 0.0
    %1597 = vmatpush1.xpose.msra.mxu0 0.0
    %1598 = vmatprep.subr.mxu0 0.0
    %1599 = vmatpush1.xpose.msra.mxu0 0.0
    %1600 = vmatprep.subr.mxu0 0.0
    %1601 = vmatpush1.xpose.msra.mxu0 0.0
    %1602 = vmatprep.subr.mxu0 0.0
    %1603 = vmatpush1.xpose.msra.mxu0 0.0
    %1604 = vmatprep.subr.mxu0 0.0
    %1605 = vmatpush1.xpose.msra.mxu0 0.0
    %1606 = vmatprep.subr.mxu0 0.0
    %1607 = vmatpush1.xpose.msra.mxu0 0.0
    %1608 = vmatprep.subr.mxu0 0.0
    %1609 = vmatpush1.xpose.msra.mxu0 0.0
    %1610 = vmatprep.mubr.f32.mxu0 0.0
    %1611 = vmatmul.mubr.f32.gmra.mrb[0].mxu0 %v1537
    %v1612 = vpop.f32.mrb[0].mxu0
    %v1613 = vadd.f32 %v76, %v1612
    %v1614 = vpop.f32.mrb[0].mxu0
    %1615 = vmatprep.mubr.f32.mxu0 0.0
    %1616 = vmatmul.mubr.f32.gmra.mrb[0].mxu0 %v1540
    %v1617 = vpop.f32.mrb[0].mxu0
    %v1618 = vadd.f32 %v77, %v1617
    %v1619 = vpop.f32.mrb[0].mxu0
    %1620 = vdwg.mxu0
    %v1621 = vsel %vm267, %v1613, -inf
    %1622 = vmax.xlane.f32.xlu0 %v1621
    %v1623 = vpop.xlane.xlu0 %1622
    %v1624 = vsel %vm267, %v1618, -inf
    %1625 = vmax.xlane.f32.xlu0 %v1624
    %v1626 = vpop.xlane.xlu0 %1625
    %v1627 = vsub.f32 %v1613, %v1623
    %v1628 = vsub.f32 %v1618, %v1626
    %v1629 = vmul.f32 %v1627, 1.442695
    %v1630 = vpow.pop %v1629
    %v1631 = vmul.f32 %v1628, 1.442695
    %v1632 = vpow.pop %v1631
    %v1633 = vsel %vm267, %v1630, 0.0
    %1634 = vadd.xlane.f32.xlu0 %v1633
    %v1635 = vpop.xlane.xlu0 %1634
    %v1636 = vsel %vm267, %v1632, 0.0
    %1637 = vadd.xlane.f32.xlu0 %v1636
    %v1638 = vpop.xlane.xlu0 %1637
    %1639 = vrot.lane.b32.xlu0 %v1520, 64
    %v1640 = vpop.permute.xlu0 %1639
    %1641 = vrot.lane.b32.xlu0 %v1525, 64
    %v1642 = vpop.permute.xlu0 %1641
    %v1646 = vsel %vm267, %v1630, 0
    %v1649 = vsel %vm267, %v1632, 0
    %1651 = vmatprep.subr.mxu0 0.0
    %1652 = vmatpush1.msra.mxu0 %v1640
    %1653 = vmatprep.subr.mxu0 0.0
    %1654 = vmatpush1.msra.mxu0 %v1642
    %1655 = vmatprep.subr.mxu0 0.0
    %1656 = vmatpush1.msra.mxu0 0.0
    %1657 = vmatprep.subr.mxu0 0.0
    %1658 = vmatpush1.msra.mxu0 0.0
    %1659 = vmatprep.subr.mxu0 0.0
    %1660 = vmatpush1.msra.mxu0 0.0
    %1661 = vmatprep.subr.mxu0 0.0
    %1662 = vmatpush1.msra.mxu0 0.0
    %1663 = vmatprep.subr.mxu0 0.0
    %1664 = vmatpush1.msra.mxu0 0.0
    %1665 = vmatprep.subr.mxu0 0.0
    %1666 = vmatpush1.msra.mxu0 0.0
    %1667 = vmatprep.subr.mxu0 0.0
    %1668 = vmatpush1.msra.mxu0 0.0
    %1669 = vmatprep.subr.mxu0 0.0
    %1670 = vmatpush1.msra.mxu0 0.0
    %1671 = vmatprep.subr.mxu0 0.0
    %1672 = vmatpush1.msra.mxu0 0.0
    %1673 = vmatprep.subr.mxu0 0.0
    %1674 = vmatpush1.msra.mxu0 0.0
    %1675 = vmatprep.subr.mxu0 0.0
    %1676 = vmatpush1.msra.mxu0 0.0
    %1677 = vmatprep.subr.mxu0 0.0
    %1678 = vmatpush1.msra.mxu0 0.0
    %1679 = vmatprep.subr.mxu0 0.0
    %1680 = vmatpush1.msra.mxu0 0.0
    %1681 = vmatprep.subr.mxu0 0.0
    %1682 = vmatpush1.msra.mxu0 0.0
    %1683 = vmatprep.subr.mxu0 0.0
    %1684 = vmatpush1.msra.mxu0 0.0
    %1685 = vmatprep.subr.mxu0 0.0
    %1686 = vmatpush1.msra.mxu0 0.0
    %1687 = vmatprep.subr.mxu0 0.0
    %1688 = vmatpush1.msra.mxu0 0.0
    %1689 = vmatprep.subr.mxu0 0.0
    %1690 = vmatpush1.msra.mxu0 0.0
    %1691 = vmatprep.subr.mxu0 0.0
    %1692 = vmatpush1.msra.mxu0 0.0
    %1693 = vmatprep.subr.mxu0 0.0
    %1694 = vmatpush1.msra.mxu0 0.0
    %1695 = vmatprep.subr.mxu0 0.0
    %1696 = vmatpush1.msra.mxu0 0.0
    %1697 = vmatprep.subr.mxu0 0.0
    %1698 = vmatpush1.msra.mxu0 0.0
    %1699 = vmatprep.subr.mxu0 0.0
    %1700 = vmatpush1.msra.mxu0 0.0
    %1701 = vmatprep.subr.mxu0 0.0
    %1702 = vmatpush1.msra.mxu0 0.0
    %1703 = vmatprep.subr.mxu0 0.0
    %1704 = vmatpush1.msra.mxu0 0.0
    %1705 = vmatprep.subr.mxu0 0.0
    %1706 = vmatpush1.msra.mxu0 0.0
    %1707 = vmatprep.subr.mxu0 0.0
    %1708 = vmatpush1.msra.mxu0 0.0
    %1709 = vmatprep.subr.mxu0 0.0
    %1710 = vmatpush1.msra.mxu0 0.0
    %1711 = vmatprep.subr.mxu0 0.0
    %1712 = vmatpush1.msra.mxu0 0.0
    %1713 = vmatprep.subr.mxu0 0.0
    %1714 = vmatpush1.msra.mxu0 0.0
    %1715 = vmatprep.mubr.f32.mxu0 0.0
    %1716 = vmatmul.mubr.f32.gmra.mrb[0].mxu0 %v1646
    %v1717 = vpop.f32.mrb[0].mxu0
    %v1718 = vadd.f32 0.0, %v1717
    %v1719 = vpop.f32.mrb[0].mxu0
    %1720 = vmatprep.mubr.f32.mxu0 0.0
    %1721 = vmatmul.mubr.f32.gmra.mrb[0].mxu0 %v1649
    %v1722 = vpop.f32.mrb[0].mxu0
    %v1723 = vadd.f32 0.0, %v1722
    %v1724 = vpop.f32.mrb[0].mxu0
    %1725 = vdwg.mxu0
    %v1726 = vrcp.pop %v1635
    %v1727 = vrcp.pop %v1638
    %v1728 = vmul.f32 %v1718, %v1726
    %v1729 = vmul.f32 %v1723, %v1727
    %1730 = vrot.lane.b32.xlu0 %v1528, 120
    %v1731 = vpop.permute.xlu0 %1730
    %1732 = vrot.lane.b32.xlu0 %v1529, 120
    %v1733 = vpop.permute.xlu0 %1732
    %1734 = vrot.lane.b32.xlu0 %v1520, 88
    %v1735 = vpop.permute.xlu0 %1734
    %1736 = vrot.lane.b32.xlu0 %v1525, 88
    %v1737 = vpop.permute.xlu0 %1736
    %v1738 = vsel %vm181, %v1731, 0
    %v1740 = vsel %vm181, %v1733, 0
    %v1742 = vsel %vm181, %v1735, 0
    %v1744 = vsel %vm181, %v1737, 0
    %1746 = vmatprep.subr.mxu0 0.0
    %1747 = vmatpush1.xpose.msra.mxu0 %v1742
    %1748 = vmatprep.subr.mxu0 0.0
    %1749 = vmatpush1.xpose.msra.mxu0 %v1744
    %1750 = vmatprep.subr.mxu0 0.0
    %1751 = vmatpush1.xpose.msra.mxu0 0.0
    %1752 = vmatprep.subr.mxu0 0.0
    %1753 = vmatpush1.xpose.msra.mxu0 0.0
    %1754 = vmatprep.subr.mxu0 0.0
    %1755 = vmatpush1.xpose.msra.mxu0 0.0
    %1756 = vmatprep.subr.mxu0 0.0
    %1757 = vmatpush1.xpose.msra.mxu0 0.0
    %1758 = vmatprep.subr.mxu0 0.0
    %1759 = vmatpush1.xpose.msra.mxu0 0.0
    %1760 = vmatprep.subr.mxu0 0.0
    %1761 = vmatpush1.xpose.msra.mxu0 0.0
    %1762 = vmatprep.subr.mxu0 0.0
    %1763 = vmatpush1.xpose.msra.mxu0 0.0
    %1764 = vmatprep.subr.mxu0 0.0
    %1765 = vmatpush1.xpose.msra.mxu0 0.0
    %1766 = vmatprep.subr.mxu0 0.0
    %1767 = vmatpush1.xpose.msra.mxu0 0.0
    %1768 = vmatprep.subr.mxu0 0.0
    %1769 = vmatpush1.xpose.msra.mxu0 0.0
    %1770 = vmatprep.subr.mxu0 0.0
    %1771 = vmatpush1.xpose.msra.mxu0 0.0
    %1772 = vmatprep.subr.mxu0 0.0
    %1773 = vmatpush1.xpose.msra.mxu0 0.0
    %1774 = vmatprep.subr.mxu0 0.0
    %1775 = vmatpush1.xpose.msra.mxu0 0.0
    %1776 = vmatprep.subr.mxu0 0.0
    %1777 = vmatpush1.xpose.msra.mxu0 0.0
    %1778 = vmatprep.subr.mxu0 0.0
    %1779 = vmatpush1.xpose.msra.mxu0 0.0
    %1780 = vmatprep.subr.mxu0 0.0
    %1781 = vmatpush1.xpose.msra.mxu0 0.0
    %1782 = vmatprep.subr.mxu0 0.0
    %1783 = vmatpush1.xpose.msra.mxu0 0.0
    %1784 = vmatprep.subr.mxu0 0.0
    %1785 = vmatpush1.xpose.msra.mxu0 0.0
    %1786 = vmatprep.subr.mxu0 0.0
    %1787 = vmatpush1.xpose.msra.mxu0 0.0
    %1788 = vmatprep.subr.mxu0 0.0
    %1789 = vmatpush1.xpose.msra.mxu0 0.0
    %1790 = vmatprep.subr.mxu0 0.0
    %1791 = vmatpush1.xpose.msra.mxu0 0.0
    %1792 = vmatprep.subr.mxu0 0.0
    %1793 = vmatpush1.xpose.msra.mxu0 0.0
    %1794 = vmatprep.subr.mxu0 0.0
    %1795 = vmatpush1.xpose.msra.mxu0 0.0
    %1796 = vmatprep.subr.mxu0 0.0
    %1797 = vmatpush1.xpose.msra.mxu0 0.0
    %1798 = vmatprep.subr.mxu0 0.0
    %1799 = vmatpush1.xpose.msra.mxu0 0.0
    %1800 = vmatprep.subr.mxu0 0.0
    %1801 = vmatpush1.xpose.msra.mxu0 0.0
    %1802 = vmatprep.subr.mxu0 0.0
    %1803 = vmatpush1.xpose.msra.mxu0 0.0
    %1804 = vmatprep.subr.mxu0 0.0
    %1805 = vmatpush1.xpose.msra.mxu0 0.0
    %1806 = vmatprep.subr.mxu0 0.0
    %1807 = vmatpush1.xpose.msra.mxu0 0.0
    %1808 = vmatprep.subr.mxu0 0.0
    %1809 = vmatpush1.xpose.msra.mxu0 0.0
    %1810 = vmatprep.mubr.f32.mxu0 0.0
    %1811 = vmatmul.mubr.f32.gmra.mrb[0].mxu0 %v1738
    %v1812 = vpop.f32.mrb[0].mxu0
    %v1813 = vadd.f32 %v76, %v1812
    %v1814 = vpop.f32.mrb[0].mxu0
    %1815 = vmatprep.mubr.f32.mxu0 0.0
    %1816 = vmatmul.mubr.f32.gmra.mrb[0].mxu0 %v1740
    %v1817 = vpop.f32.mrb[0].mxu0
    %v1818 = vadd.f32 %v77, %v1817
    %v1819 = vpop.f32.mrb[0].mxu0
    %1820 = vdwg.mxu0
    %v1821 = vsel %vm267, %v1813, -inf
    %1822 = vmax.xlane.f32.xlu0 %v1821
    %v1823 = vpop.xlane.xlu0 %1822
    %v1824 = vsel %vm267, %v1818, -inf
    %1825 = vmax.xlane.f32.xlu0 %v1824
    %v1826 = vpop.xlane.xlu0 %1825
    %v1827 = vsub.f32 %v1813, %v1823
    %v1828 = vsub.f32 %v1818, %v1826
    %v1829 = vmul.f32 %v1827, 1.442695
    %v1830 = vpow.pop %v1829
    %v1831 = vmul.f32 %v1828, 1.442695
    %v1832 = vpow.pop %v1831
    %v1833 = vsel %vm267, %v1830, 0.0
    %1834 = vadd.xlane.f32.xlu0 %v1833
    %v1835 = vpop.xlane.xlu0 %1834
    %v1836 = vsel %vm267, %v1832, 0.0
    %1837 = vadd.xlane.f32.xlu0 %v1836
    %v1838 = vpop.xlane.xlu0 %1837
    %1839 = vrot.lane.b32.xlu0 %v1520, 56
    %v1840 = vpop.permute.xlu0 %1839
    %1841 = vrot.lane.b32.xlu0 %v1525, 56
    %v1842 = vpop.permute.xlu0 %1841
    %v1846 = vsel %vm267, %v1830, 0
    %v1849 = vsel %vm267, %v1832, 0
    %1851 = vmatprep.subr.mxu0 0.0
    %1852 = vmatpush1.msra.mxu0 %v1840
    %1853 = vmatprep.subr.mxu0 0.0
    %1854 = vmatpush1.msra.mxu0 %v1842
    %1855 = vmatprep.subr.mxu0 0.0
    %1856 = vmatpush1.msra.mxu0 0.0
    %1857 = vmatprep.subr.mxu0 0.0
    %1858 = vmatpush1.msra.mxu0 0.0
    %1859 = vmatprep.subr.mxu0 0.0
    %1860 = vmatpush1.msra.mxu0 0.0
    %1861 = vmatprep.subr.mxu0 0.0
    %1862 = vmatpush1.msra.mxu0 0.0
    %1863 = vmatprep.subr.mxu0 0.0
    %1864 = vmatpush1.msra.mxu0 0.0
    %1865 = vmatprep.subr.mxu0 0.0
    %1866 = vmatpush1.msra.mxu0 0.0
    %1867 = vmatprep.subr.mxu0 0.0
    %1868 = vmatpush1.msra.mxu0 0.0
    %1869 = vmatprep.subr.mxu0 0.0
    %1870 = vmatpush1.msra.mxu0 0.0
    %1871 = vmatprep.subr.mxu0 0.0
    %1872 = vmatpush1.msra.mxu0 0.0
    %1873 = vmatprep.subr.mxu0 0.0
    %1874 = vmatpush1.msra.mxu0 0.0
    %1875 = vmatprep.subr.mxu0 0.0
    %1876 = vmatpush1.msra.mxu0 0.0
    %1877 = vmatprep.subr.mxu0 0.0
    %1878 = vmatpush1.msra.mxu0 0.0
    %1879 = vmatprep.subr.mxu0 0.0
    %1880 = vmatpush1.msra.mxu0 0.0
    %1881 = vmatprep.subr.mxu0 0.0
    %1882 = vmatpush1.msra.mxu0 0.0
    %1883 = vmatprep.subr.mxu0 0.0
    %1884 = vmatpush1.msra.mxu0 0.0
    %1885 = vmatprep.subr.mxu0 0.0
    %1886 = vmatpush1.msra.mxu0 0.0
    %1887 = vmatprep.subr.mxu0 0.0
    %1888 = vmatpush1.msra.mxu0 0.0
    %1889 = vmatprep.subr.mxu0 0.0
    %1890 = vmatpush1.msra.mxu0 0.0
    %1891 = vmatprep.subr.mxu0 0.0
    %1892 = vmatpush1.msra.mxu0 0.0
    %1893 = vmatprep.subr.mxu0 0.0
    %1894 = vmatpush1.msra.mxu0 0.0
    %1895 = vmatprep.subr.mxu0 0.0
    %1896 = vmatpush1.msra.mxu0 0.0
    %1897 = vmatprep.subr.mxu0 0.0
    %1898 = vmatpush1.msra.mxu0 0.0
    %1899 = vmatprep.subr.mxu0 0.0
    %1900 = vmatpush1.msra.mxu0 0.0
    %1901 = vmatprep.subr.mxu0 0.0
    %1902 = vmatpush1.msra.mxu0 0.0
    %1903 = vmatprep.subr.mxu0 0.0
    %1904 = vmatpush1.msra.mxu0 0.0
    %1905 = vmatprep.subr.mxu0 0.0
    %1906 = vmatpush1.msra.mxu0 0.0
    %1907 = vmatprep.subr.mxu0 0.0
    %1908 = vmatpush1.msra.mxu0 0.0
    %1909 = vmatprep.subr.mxu0 0.0
    %1910 = vmatpush1.msra.mxu0 0.0
    %1911 = vmatprep.subr.mxu0 0.0
    %1912 = vmatpush1.msra.mxu0 0.0
    %1913 = vmatprep.subr.mxu0 0.0
    %1914 = vmatpush1.msra.mxu0 0.0
    %1915 = vmatprep.mubr.f32.mxu0 0.0
    %1916 = vmatmul.mubr.f32.gmra.mrb[0].mxu0 %v1846
    %v1917 = vpop.f32.mrb[0].mxu0
    %v1918 = vadd.f32 0.0, %v1917
    %v1919 = vpop.f32.mrb[0].mxu0
    %1920 = vmatprep.mubr.f32.mxu0 0.0
    %1921 = vmatmul.mubr.f32.gmra.mrb[0].mxu0 %v1849
    %v1922 = vpop.f32.mrb[0].mxu0
    %v1923 = vadd.f32 0.0, %v1922
    %v1924 = vpop.f32.mrb[0].mxu0
    %1925 = vdwg.mxu0
    %v1926 = vrcp.pop %v1835
    %v1927 = vrcp.pop %v1838
    %v1928 = vmul.f32 %v1918, %v1926
    %v1929 = vmul.f32 %v1923, %v1927
    %1930 = vrot.lane.b32.xlu0 %v1528, 112
    %v1931 = vpop.permute.xlu0 %1930
    %1932 = vrot.lane.b32.xlu0 %v1529, 112
    %v1933 = vpop.permute.xlu0 %1932
    %1934 = vrot.lane.b32.xlu0 %v1520, 80
    %v1935 = vpop.permute.xlu0 %1934
    %1936 = vrot.lane.b32.xlu0 %v1525, 80
    %v1937 = vpop.permute.xlu0 %1936
    %v1938 = vsel %vm181, %v1931, 0
    %v1940 = vsel %vm181, %v1933, 0
    %v1942 = vsel %vm181, %v1935, 0
    %v1944 = vsel %vm181, %v1937, 0
    %1946 = vmatprep.subr.mxu0 0.0
    %1947 = vmatpush1.xpose.msra.mxu0 %v1942
    %1948 = vmatprep.subr.mxu0 0.0
    %1949 = vmatpush1.xpose.msra.mxu0 %v1944
    %1950 = vmatprep.subr.mxu0 0.0
    %1951 = vmatpush1.xpose.msra.mxu0 0.0
    %1952 = vmatprep.subr.mxu0 0.0
    %1953 = vmatpush1.xpose.msra.mxu0 0.0
    %1954 = vmatprep.subr.mxu0 0.0
    %1955 = vmatpush1.xpose.msra.mxu0 0.0
    %1956 = vmatprep.subr.mxu0 0.0
    %1957 = vmatpush1.xpose.msra.mxu0 0.0
    %1958 = vmatprep.subr.mxu0 0.0
    %1959 = vmatpush1.xpose.msra.mxu0 0.0
    %1960 = vmatprep.subr.mxu0 0.0
    %1961 = vmatpush1.xpose.msra.mxu0 0.0
    %1962 = vmatprep.subr.mxu0 0.0
    %1963 = vmatpush1.xpose.msra.mxu0 0.0
    %1964 = vmatprep.subr.mxu0 0.0
    %1965 = vmatpush1.xpose.msra.mxu0 0.0
    %1966 = vmatprep.subr.mxu0 0.0
    %1967 = vmatpush1.xpose.msra.mxu0 0.0
    %1968 = vmatprep.subr.mxu0 0.0
    %1969 = vmatpush1.xpose.msra.mxu0 0.0
    %1970 = vmatprep.subr.mxu0 0.0
    %1971 = vmatpush1.xpose.msra.mxu0 0.0
    %1972 = vmatprep.subr.mxu0 0.0
    %1973 = vmatpush1.xpose.msra.mxu0 0.0
    %1974 = vmatprep.subr.mxu0 0.0
    %1975 = vmatpush1.xpose.msra.mxu0 0.0
    %1976 = vmatprep.subr.mxu0 0.0
    %1977 = vmatpush1.xpose.msra.mxu0 0.0
    %1978 = vmatprep.subr.mxu0 0.0
    %1979 = vmatpush1.xpose.msra.mxu0 0.0
    %1980 = vmatprep.subr.mxu0 0.0
    %1981 = vmatpush1.xpose.msra.mxu0 0.0
    %1982 = vmatprep.subr.mxu0 0.0
    %1983 = vmatpush1.xpose.msra.mxu0 0.0
    %1984 = vmatprep.subr.mxu0 0.0
    %1985 = vmatpush1.xpose.msra.mxu0 0.0
    %1986 = vmatprep.subr.mxu0 0.0
    %1987 = vmatpush1.xpose.msra.mxu0 0.0
    %1988 = vmatprep.subr.mxu0 0.0
    %1989 = vmatpush1.xpose.msra.mxu0 0.0
    %1990 = vmatprep.subr.mxu0 0.0
    %1991 = vmatpush1.xpose.msra.mxu0 0.0
    %1992 = vmatprep.subr.mxu0 0.0
    %1993 = vmatpush1.xpose.msra.mxu0 0.0
    %1994 = vmatprep.subr.mxu0 0.0
    %1995 = vmatpush1.xpose.msra.mxu0 0.0
    %1996 = vmatprep.subr.mxu0 0.0
    %1997 = vmatpush1.xpose.msra.mxu0 0.0
    %1998 = vmatprep.subr.mxu0 0.0
    %1999 = vmatpush1.xpose.msra.mxu0 0.0
    %2000 = vmatprep.subr.mxu0 0.0
    %2001 = vmatpush1.xpose.msra.mxu0 0.0
    %2002 = vmatprep.subr.mxu0 0.0
    %2003 = vmatpush1.xpose.msra.mxu0 0.0
    %2004 = vmatprep.subr.mxu0 0.0
    %2005 = vmatpush1.xpose.msra.mxu0 0.0
    %2006 = vmatprep.subr.mxu0 0.0
    %2007 = vmatpush1.xpose.msra.mxu0 0.0
    %2008 = vmatprep.subr.mxu0 0.0
    %2009 = vmatpush1.xpose.msra.mxu0 0.0
    %2010 = vmatprep.mubr.f32.mxu0 0.0
    %2011 = vmatmul.mubr.f32.gmra.mrb[0].mxu0 %v1938
    %v2012 = vpop.f32.mrb[0].mxu0
    %v2013 = vadd.f32 %v76, %v2012
    %v2014 = vpop.f32.mrb[0].mxu0
    %2015 = vmatprep.mubr.f32.mxu0 0.0
    %2016 = vmatmul.mubr.f32.gmra.mrb[0].mxu0 %v1940
    %v2017 = vpop.f32.mrb[0].mxu0
    %v2018 = vadd.f32 %v77, %v2017
    %v2019 = vpop.f32.mrb[0].mxu0
    %2020 = vdwg.mxu0
    %v2021 = vsel %vm267, %v2013, -inf
    %2022 = vmax.xlane.f32.xlu0 %v2021
    %v2023 = vpop.xlane.xlu0 %2022
    %v2024 = vsel %vm267, %v2018, -inf
    %2025 = vmax.xlane.f32.xlu0 %v2024
    %v2026 = vpop.xlane.xlu0 %2025
    %v2027 = vsub.f32 %v2013, %v2023
    %v2028 = vsub.f32 %v2018, %v2026
    %v2029 = vmul.f32 %v2027, 1.442695
    %v2030 = vpow.pop %v2029
    %v2031 = vmul.f32 %v2028, 1.442695
    %v2032 = vpow.pop %v2031
    %v2033 = vsel %vm267, %v2030, 0.0
    %2034 = vadd.xlane.f32.xlu0 %v2033
    %v2035 = vpop.xlane.xlu0 %2034
    %v2036 = vsel %vm267, %v2032, 0.0
    %2037 = vadd.xlane.f32.xlu0 %v2036
    %v2038 = vpop.xlane.xlu0 %2037
    %2039 = vrot.lane.b32.xlu0 %v1520, 48
    %v2040 = vpop.permute.xlu0 %2039
    %2041 = vrot.lane.b32.xlu0 %v1525, 48
    %v2042 = vpop.permute.xlu0 %2041
    %v2046 = vsel %vm267, %v2030, 0
    %v2049 = vsel %vm267, %v2032, 0
    %2051 = vmatprep.subr.mxu0 0.0
    %2052 = vmatpush1.msra.mxu0 %v2040
    %2053 = vmatprep.subr.mxu0 0.0
    %2054 = vmatpush1.msra.mxu0 %v2042
    %2055 = vmatprep.subr.mxu0 0.0
    %2056 = vmatpush1.msra.mxu0 0.0
    %2057 = vmatprep.subr.mxu0 0.0
    %2058 = vmatpush1.msra.mxu0 0.0
    %2059 = vmatprep.subr.mxu0 0.0
    %2060 = vmatpush1.msra.mxu0 0.0
    %2061 = vmatprep.subr.mxu0 0.0
    %2062 = vmatpush1.msra.mxu0 0.0
    %2063 = vmatprep.subr.mxu0 0.0
    %2064 = vmatpush1.msra.mxu0 0.0
    %2065 = vmatprep.subr.mxu0 0.0
    %2066 = vmatpush1.msra.mxu0 0.0
    %2067 = vmatprep.subr.mxu0 0.0
    %2068 = vmatpush1.msra.mxu0 0.0
    %2069 = vmatprep.subr.mxu0 0.0
    %2070 = vmatpush1.msra.mxu0 0.0
    %2071 = vmatprep.subr.mxu0 0.0
    %2072 = vmatpush1.msra.mxu0 0.0
    %2073 = vmatprep.subr.mxu0 0.0
    %2074 = vmatpush1.msra.mxu0 0.0
    %2075 = vmatprep.subr.mxu0 0.0
    %2076 = vmatpush1.msra.mxu0 0.0
    %2077 = vmatprep.subr.mxu0 0.0
    %2078 = vmatpush1.msra.mxu0 0.0
    %2079 = vmatprep.subr.mxu0 0.0
    %2080 = vmatpush1.msra.mxu0 0.0
    %2081 = vmatprep.subr.mxu0 0.0
    %2082 = vmatpush1.msra.mxu0 0.0
    %2083 = vmatprep.subr.mxu0 0.0
    %2084 = vmatpush1.msra.mxu0 0.0
    %2085 = vmatprep.subr.mxu0 0.0
    %2086 = vmatpush1.msra.mxu0 0.0
    %2087 = vmatprep.subr.mxu0 0.0
    %2088 = vmatpush1.msra.mxu0 0.0
    %2089 = vmatprep.subr.mxu0 0.0
    %2090 = vmatpush1.msra.mxu0 0.0
    %2091 = vmatprep.subr.mxu0 0.0
    %2092 = vmatpush1.msra.mxu0 0.0
    %2093 = vmatprep.subr.mxu0 0.0
    %2094 = vmatpush1.msra.mxu0 0.0
    %2095 = vmatprep.subr.mxu0 0.0
    %2096 = vmatpush1.msra.mxu0 0.0
    %2097 = vmatprep.subr.mxu0 0.0
    %2098 = vmatpush1.msra.mxu0 0.0
    %2099 = vmatprep.subr.mxu0 0.0
    %2100 = vmatpush1.msra.mxu0 0.0
    %2101 = vmatprep.subr.mxu0 0.0
    %2102 = vmatpush1.msra.mxu0 0.0
    %2103 = vmatprep.subr.mxu0 0.0
    %2104 = vmatpush1.msra.mxu0 0.0
    %2105 = vmatprep.subr.mxu0 0.0
    %2106 = vmatpush1.msra.mxu0 0.0
    %2107 = vmatprep.subr.mxu0 0.0
    %2108 = vmatpush1.msra.mxu0 0.0
    %2109 = vmatprep.subr.mxu0 0.0
    %2110 = vmatpush1.msra.mxu0 0.0
    %2111 = vmatprep.subr.mxu0 0.0
    %2112 = vmatpush1.msra.mxu0 0.0
    %2113 = vmatprep.subr.mxu0 0.0
    %2114 = vmatpush1.msra.mxu0 0.0
    %2115 = vmatprep.mubr.f32.mxu0 0.0
    %2116 = vmatmul.mubr.f32.gmra.mrb[0].mxu0 %v2046
    %v2117 = vpop.f32.mrb[0].mxu0
    %v2118 = vadd.f32 0.0, %v2117
    %v2119 = vpop.f32.mrb[0].mxu0
    %2120 = vmatprep.mubr.f32.mxu0 0.0
    %2121 = vmatmul.mubr.f32.gmra.mrb[0].mxu0 %v2049
    %v2122 = vpop.f32.mrb[0].mxu0
    %v2123 = vadd.f32 0.0, %v2122
    %v2124 = vpop.f32.mrb[0].mxu0
    %2125 = vdwg.mxu0
    %v2126 = vrcp.pop %v2035
    %v2127 = vrcp.pop %v2038
    %v2128 = vmul.f32 %v2118, %v2126
    %v2129 = vmul.f32 %v2123, %v2127
    %2130 = vrot.lane.b32.xlu0 %v1528, 104
    %v2131 = vpop.permute.xlu0 %2130
    %2132 = vrot.lane.b32.xlu0 %v1529, 104
    %v2133 = vpop.permute.xlu0 %2132
    %2134 = vrot.lane.b32.xlu0 %v1520, 72
    %v2135 = vpop.permute.xlu0 %2134
    %2136 = vrot.lane.b32.xlu0 %v1525, 72
    %v2137 = vpop.permute.xlu0 %2136
    %v2138 = vsel %vm181, %v2131, 0
    %v2140 = vsel %vm181, %v2133, 0
    %v2142 = vsel %vm181, %v2135, 0
    %v2144 = vsel %vm181, %v2137, 0
    %2146 = vmatprep.subr.mxu0 0.0
    %2147 = vmatpush1.xpose.msra.mxu0 %v2142
    %2148 = vmatprep.subr.mxu0 0.0
    %2149 = vmatpush1.xpose.msra.mxu0 %v2144
    %2150 = vmatprep.subr.mxu0 0.0
    %2151 = vmatpush1.xpose.msra.mxu0 0.0
    %2152 = vmatprep.subr.mxu0 0.0
    %2153 = vmatpush1.xpose.msra.mxu0 0.0
    %2154 = vmatprep.subr.mxu0 0.0
    %2155 = vmatpush1.xpose.msra.mxu0 0.0
    %2156 = vmatprep.subr.mxu0 0.0
    %2157 = vmatpush1.xpose.msra.mxu0 0.0
    %2158 = vmatprep.subr.mxu0 0.0
    %2159 = vmatpush1.xpose.msra.mxu0 0.0
    %2160 = vmatprep.subr.mxu0 0.0
    %2161 = vmatpush1.xpose.msra.mxu0 0.0
    %2162 = vmatprep.subr.mxu0 0.0
    %2163 = vmatpush1.xpose.msra.mxu0 0.0
    %2164 = vmatprep.subr.mxu0 0.0
    %2165 = vmatpush1.xpose.msra.mxu0 0.0
    %2166 = vmatprep.subr.mxu0 0.0
    %2167 = vmatpush1.xpose.msra.mxu0 0.0
    %2168 = vmatprep.subr.mxu0 0.0
    %2169 = vmatpush1.xpose.msra.mxu0 0.0
    %2170 = vmatprep.subr.mxu0 0.0
    %2171 = vmatpush1.xpose.msra.mxu0 0.0
    %2172 = vmatprep.subr.mxu0 0.0
    %2173 = vmatpush1.xpose.msra.mxu0 0.0
    %2174 = vmatprep.subr.mxu0 0.0
    %2175 = vmatpush1.xpose.msra.mxu0 0.0
    %2176 = vmatprep.subr.mxu0 0.0
    %2177 = vmatpush1.xpose.msra.mxu0 0.0
    %2178 = vmatprep.subr.mxu0 0.0
    %2179 = vmatpush1.xpose.msra.mxu0 0.0
    %2180 = vmatprep.subr.mxu0 0.0
    %2181 = vmatpush1.xpose.msra.mxu0 0.0
    %2182 = vmatprep.subr.mxu0 0.0
    %2183 = vmatpush1.xpose.msra.mxu0 0.0
    %2184 = vmatprep.subr.mxu0 0.0
    %2185 = vmatpush1.xpose.msra.mxu0 0.0
    %2186 = vmatprep.subr.mxu0 0.0
    %2187 = vmatpush1.xpose.msra.mxu0 0.0
    %2188 = vmatprep.subr.mxu0 0.0
    %2189 = vmatpush1.xpose.msra.mxu0 0.0
    %2190 = vmatprep.subr.mxu0 0.0
    %2191 = vmatpush1.xpose.msra.mxu0 0.0
    %2192 = vmatprep.subr.mxu0 0.0
    %2193 = vmatpush1.xpose.msra.mxu0 0.0
    %2194 = vmatprep.subr.mxu0 0.0
    %2195 = vmatpush1.xpose.msra.mxu0 0.0
    %2196 = vmatprep.subr.mxu0 0.0
    %2197 = vmatpush1.xpose.msra.mxu0 0.0
    %2198 = vmatprep.subr.mxu0 0.0
    %2199 = vmatpush1.xpose.msra.mxu0 0.0
    %2200 = vmatprep.subr.mxu0 0.0
    %2201 = vmatpush1.xpose.msra.mxu0 0.0
    %2202 = vmatprep.subr.mxu0 0.0
    %2203 = vmatpush1.xpose.msra.mxu0 0.0
    %2204 = vmatprep.subr.mxu0 0.0
    %2205 = vmatpush1.xpose.msra.mxu0 0.0
    %2206 = vmatprep.subr.mxu0 0.0
    %2207 = vmatpush1.xpose.msra.mxu0 0.0
    %2208 = vmatprep.subr.mxu0 0.0
    %2209 = vmatpush1.xpose.msra.mxu0 0.0
    %2210 = vmatprep.mubr.f32.mxu0 0.0
    %2211 = vmatmul.mubr.f32.gmra.mrb[0].mxu0 %v2138
    %v2212 = vpop.f32.mrb[0].mxu0
    %v2213 = vadd.f32 %v76, %v2212
    %v2214 = vpop.f32.mrb[0].mxu0
    %2215 = vmatprep.mubr.f32.mxu0 0.0
    %2216 = vmatmul.mubr.f32.gmra.mrb[0].mxu0 %v2140
    %v2217 = vpop.f32.mrb[0].mxu0
    %v2218 = vadd.f32 %v77, %v2217
    %v2219 = vpop.f32.mrb[0].mxu0
    %2220 = vdwg.mxu0
    %v2221 = vsel %vm267, %v2213, -inf
    %2222 = vmax.xlane.f32.xlu0 %v2221
    %v2223 = vpop.xlane.xlu0 %2222
    %v2224 = vsel %vm267, %v2218, -inf
    %2225 = vmax.xlane.f32.xlu0 %v2224
    %v2226 = vpop.xlane.xlu0 %2225
    %v2227 = vsub.f32 %v2213, %v2223
    %v2228 = vsub.f32 %v2218, %v2226
    %v2229 = vmul.f32 %v2227, 1.442695
    %v2230 = vpow.pop %v2229
    %v2231 = vmul.f32 %v2228, 1.442695
    %v2232 = vpow.pop %v2231
    %v2233 = vsel %vm267, %v2230, 0.0
    %2234 = vadd.xlane.f32.xlu0 %v2233
    %v2235 = vpop.xlane.xlu0 %2234
    %v2236 = vsel %vm267, %v2232, 0.0
    %2237 = vadd.xlane.f32.xlu0 %v2236
    %v2238 = vpop.xlane.xlu0 %2237
    %2239 = vrot.lane.b32.xlu0 %v1520, 40
    %v2240 = vpop.permute.xlu0 %2239
    %2241 = vrot.lane.b32.xlu0 %v1525, 40
    %v2242 = vpop.permute.xlu0 %2241
    %v2246 = vsel %vm267, %v2230, 0
    %v2249 = vsel %vm267, %v2232, 0
    %2251 = vmatprep.subr.mxu0 0.0
    %2252 = vmatpush1.msra.mxu0 %v2240
    %2253 = vmatprep.subr.mxu0 0.0
    %2254 = vmatpush1.msra.mxu0 %v2242
    %2255 = vmatprep.subr.mxu0 0.0
    %2256 = vmatpush1.msra.mxu0 0.0
    %2257 = vmatprep.subr.mxu0 0.0
    %2258 = vmatpush1.msra.mxu0 0.0
    %2259 = vmatprep.subr.mxu0 0.0
    %2260 = vmatpush1.msra.mxu0 0.0
    %2261 = vmatprep.subr.mxu0 0.0
    %2262 = vmatpush1.msra.mxu0 0.0
    %2263 = vmatprep.subr.mxu0 0.0
    %2264 = vmatpush1.msra.mxu0 0.0
    %2265 = vmatprep.subr.mxu0 0.0
    %2266 = vmatpush1.msra.mxu0 0.0
    %2267 = vmatprep.subr.mxu0 0.0
    %2268 = vmatpush1.msra.mxu0 0.0
    %2269 = vmatprep.subr.mxu0 0.0
    %2270 = vmatpush1.msra.mxu0 0.0
    %2271 = vmatprep.subr.mxu0 0.0
    %2272 = vmatpush1.msra.mxu0 0.0
    %2273 = vmatprep.subr.mxu0 0.0
    %2274 = vmatpush1.msra.mxu0 0.0
    %2275 = vmatprep.subr.mxu0 0.0
    %2276 = vmatpush1.msra.mxu0 0.0
    %2277 = vmatprep.subr.mxu0 0.0
    %2278 = vmatpush1.msra.mxu0 0.0
    %2279 = vmatprep.subr.mxu0 0.0
    %2280 = vmatpush1.msra.mxu0 0.0
    %2281 = vmatprep.subr.mxu0 0.0
    %2282 = vmatpush1.msra.mxu0 0.0
    %2283 = vmatprep.subr.mxu0 0.0
    %2284 = vmatpush1.msra.mxu0 0.0
    %2285 = vmatprep.subr.mxu0 0.0
    %2286 = vmatpush1.msra.mxu0 0.0
    %2287 = vmatprep.subr.mxu0 0.0
    %2288 = vmatpush1.msra.mxu0 0.0
    %2289 = vmatprep.subr.mxu0 0.0
    %2290 = vmatpush1.msra.mxu0 0.0
    %2291 = vmatprep.subr.mxu0 0.0
    %2292 = vmatpush1.msra.mxu0 0.0
    %2293 = vmatprep.subr.mxu0 0.0
    %2294 = vmatpush1.msra.mxu0 0.0
    %2295 = vmatprep.subr.mxu0 0.0
    %2296 = vmatpush1.msra.mxu0 0.0
    %2297 = vmatprep.subr.mxu0 0.0
    %2298 = vmatpush1.msra.mxu0 0.0
    %2299 = vmatprep.subr.mxu0 0.0
    %2300 = vmatpush1.msra.mxu0 0.0
    %2301 = vmatprep.subr.mxu0 0.0
    %2302 = vmatpush1.msra.mxu0 0.0
    %2303 = vmatprep.subr.mxu0 0.0
    %2304 = vmatpush1.msra.mxu0 0.0
    %2305 = vmatprep.subr.mxu0 0.0
    %2306 = vmatpush1.msra.mxu0 0.0
    %2307 = vmatprep.subr.mxu0 0.0
    %2308 = vmatpush1.msra.mxu0 0.0
    %2309 = vmatprep.subr.mxu0 0.0
    %2310 = vmatpush1.msra.mxu0 0.0
    %2311 = vmatprep.subr.mxu0 0.0
    %2312 = vmatpush1.msra.mxu0 0.0
    %2313 = vmatprep.subr.mxu0 0.0
    %2314 = vmatpush1.msra.mxu0 0.0
    %2315 = vmatprep.mubr.f32.mxu0 0.0
    %2316 = vmatmul.mubr.f32.gmra.mrb[0].mxu0 %v2246
    %v2317 = vpop.f32.mrb[0].mxu0
    %v2318 = vadd.f32 0.0, %v2317
    %v2319 = vpop.f32.mrb[0].mxu0
    %2320 = vmatprep.mubr.f32.mxu0 0.0
    %2321 = vmatmul.mubr.f32.gmra.mrb[0].mxu0 %v2249
    %v2322 = vpop.f32.mrb[0].mxu0
    %v2323 = vadd.f32 0.0, %v2322
    %v2324 = vpop.f32.mrb[0].mxu0
    %2325 = vdwg.mxu0
    %v2326 = vrcp.pop %v2235
    %v2327 = vrcp.pop %v2238
    %v2328 = vmul.f32 %v2318, %v2326
    %v2329 = vmul.f32 %v2323, %v2327
    %2332 = vrot.lane.b32.xlu0 %v1928, 8
    %v2333 = vpop.permute.xlu0 %2332
    %2334 = vrot.lane.b32.xlu0 %v1929, 8
    %v2335 = vpop.permute.xlu0 %2334
    %2340 = vrot.lane.b32.xlu0 %v2128, 16
    %v2341 = vpop.permute.xlu0 %2340
    %2342 = vrot.lane.b32.xlu0 %v2129, 16
    %v2343 = vpop.permute.xlu0 %2342
    %2348 = vrot.lane.b32.xlu0 %v2328, 24
    %v2349 = vpop.permute.xlu0 %2348
    %2350 = vrot.lane.b32.xlu0 %v2329, 24
    %v2351 = vpop.permute.xlu0 %2350
    %v2354 = vsel %vm181, %v1728, %v2333
    %v2355 = vsel %vm181, %v1729, %v2335
    %v2356 = vsel %vm267, %v2354, %v2341
    %v2357 = vsel %vm267, %v2355, %v2343
    %v2358 = vsel %vm1005, %v2356, %v2349
    %v2359 = vsel %vm1005, %v2357, %v2351
    %s2360 = scalar_lea.vmem %s4, 32
    %v2361 = vld [vmem:[%s2360] sm:$0xff]
    %v2362 = vld [vmem:[%s2360 + $0x8] sm:$0xff]
    %v2363 = vld [vmem:[%s2360 + $0x10] sm:$0xff]
    %v2364 = vld [vmem:[%s2360 + $0x18] sm:$0xff]
    %s2365 = scalar_lea.vmem %s5, 1
    %v2366 = vld [vmem:[%s2365] sm:$0x1]
    %v2368 = vlaneseq
    %v2369 = vshrl.u32 %v2368, 7
    %v2370 = vsub.s32 0, %v2369
    %v2371 = vrot.slane %v2366, %v2370
    %v2374 = vsel %vm91, %v2358, 0
    %v2377 = vsel %vm91, %v2359, 0
    %2379 = vmatprep.subr.mxu0 0.0
    %2380 = vmatpush1.msra.mxu0 %v2361
    %2381 = vmatprep.subr.mxu0 0.0
    %2382 = vmatpush1.msra.mxu0 %v2362
    %2383 = vmatprep.subr.mxu0 0.0
    %2384 = vmatpush1.msra.mxu0 %v2363
    %2385 = vmatprep.subr.mxu0 0.0
    %2386 = vmatpush1.msra.mxu0 %v2364
    %2387 = vmatprep.subr.mxu0 0.0
    %2388 = vmatpush1.msra.mxu0 0.0
    %2389 = vmatprep.subr.mxu0 0.0
    %2390 = vmatpush1.msra.mxu0 0.0
    %2391 = vmatprep.subr.mxu0 0.0
    %2392 = vmatpush1.msra.mxu0 0.0
    %2393 = vmatprep.subr.mxu0 0.0
    %2394 = vmatpush1.msra.mxu0 0.0
    %2395 = vmatprep.subr.mxu0 0.0
    %2396 = vmatpush1.msra.mxu0 0.0
    %2397 = vmatprep.subr.mxu0 0.0
    %2398 = vmatpush1.msra.mxu0 0.0
    %2399 = vmatprep.subr.mxu0 0.0
    %2400 = vmatpush1.msra.mxu0 0.0
    %2401 = vmatprep.subr.mxu0 0.0
    %2402 = vmatpush1.msra.mxu0 0.0
    %2403 = vmatprep.subr.mxu0 0.0
    %2404 = vmatpush1.msra.mxu0 0.0
    %2405 = vmatprep.subr.mxu0 0.0
    %2406 = vmatpush1.msra.mxu0 0.0
    %2407 = vmatprep.subr.mxu0 0.0
    %2408 = vmatpush1.msra.mxu0 0.0
    %2409 = vmatprep.subr.mxu0 0.0
    %2410 = vmatpush1.msra.mxu0 0.0
    %2411 = vmatprep.subr.mxu0 0.0
    %2412 = vmatpush1.msra.mxu0 0.0
    %2413 = vmatprep.subr.mxu0 0.0
    %2414 = vmatpush1.msra.mxu0 0.0
    %2415 = vmatprep.subr.mxu0 0.0
    %2416 = vmatpush1.msra.mxu0 0.0
    %2417 = vmatprep.subr.mxu0 0.0
    %2418 = vmatpush1.msra.mxu0 0.0
    %2419 = vmatprep.subr.mxu0 0.0
    %2420 = vmatpush1.msra.mxu0 0.0
    %2421 = vmatprep.subr.mxu0 0.0
    %2422 = vmatpush1.msra.mxu0 0.0
    %2423 = vmatprep.subr.mxu0 0.0
    %2424 = vmatpush1.msra.mxu0 0.0
    %2425 = vmatprep.subr.mxu0 0.0
    %2426 = vmatpush1.msra.mxu0 0.0
    %2427 = vmatprep.subr.mxu0 0.0
    %2428 = vmatpush1.msra.mxu0 0.0
    %2429 = vmatprep.subr.mxu0 0.0
    %2430 = vmatpush1.msra.mxu0 0.0
    %2431 = vmatprep.subr.mxu0 0.0
    %2432 = vmatpush1.msra.mxu0 0.0
    %2433 = vmatprep.subr.mxu0 0.0
    %2434 = vmatpush1.msra.mxu0 0.0
    %2435 = vmatprep.subr.mxu0 0.0
    %2436 = vmatpush1.msra.mxu0 0.0
    %2437 = vmatprep.subr.mxu0 0.0
    %2438 = vmatpush1.msra.mxu0 0.0
    %2439 = vmatprep.subr.mxu0 0.0
    %2440 = vmatpush1.msra.mxu0 0.0
    %2441 = vmatprep.subr.mxu0 0.0
    %2442 = vmatpush1.msra.mxu0 0.0
    %2443 = vmatprep.mubr.f32.mxu0 0.0
    %2444 = vmatmul.mubr.f32.gmra.mrb[0].mxu0 %v2374
    %v2445 = vpop.f32.mrb[0].mxu0
    %v2446 = vadd.f32 %v2371, %v2445
    %v2447 = vpop.f32.mrb[0].mxu0
    %2448 = vmatprep.mubr.f32.mxu0 0.0
    %2449 = vmatmul.mubr.f32.gmra.mrb[0].mxu0 %v2377
    %v2450 = vpop.f32.mrb[0].mxu0
    %v2451 = vadd.f32 %v2371, %v2450
    %v2452 = vpop.f32.mrb[0].mxu0
    %2453 = vdwg.mxu0
    %v2454 = vadd.f32 %v2446, %v1432
    %v2455 = vadd.f32 %v2451, %v1433
    %s2456 = scalar_lea.vmem %s6, 1
    %v2457 = vld [vmem:[%s2456] sm:$0x1]
    %s2458 = scalar_lea.vmem %s7, 1
    %v2459 = vld [vmem:[%s2458] sm:$0x1]
    %v2460 = vsel %vm91, %v2454, 0.0
    %2461 = vadd.xlane.f32.xlu0 %v2460
    %v2462 = vpop.xlane.xlu0 %2461
    %v2463 = vsel %vm91, %v2455, 0.0
    %2464 = vadd.xlane.f32.xlu0 %v2463
    %v2465 = vpop.xlane.xlu0 %2464
    %v2466 = vmul.f32 %v2462, %v1110
    %v2467 = vmul.f32 %v2465, %v1110
    %v2468 = vsub.f32 %v2454, %v2466
    %v2469 = vsub.f32 %v2455, %v2467
    %v2470 = vmul.f32 %v2468, %v2468
    %v2471 = vmul.f32 %v2469, %v2469
    %v2472 = vsel %vm91, %v2470, 0.0
    %2473 = vadd.xlane.f32.xlu0 %v2472
    %v2474 = vpop.xlane.xlu0 %2473
    %v2475 = vsel %vm91, %v2471, 0.0
    %2476 = vadd.xlane.f32.xlu0 %v2475
    %v2477 = vpop.xlane.xlu0 %2476
    %v2478 = vmul.f32 %v2474, %v1110
    %v2479 = vmul.f32 %v2477, %v1110
    %v2480 = vadd.f32 %v2478, 1e-12
    %v2481 = vadd.f32 %v2479, 1e-12
    %v2482 = vrsqrt.pop %v2480
    %v2483 = vrsqrt.pop %v2481
    %v2484 = vmul.f32 %v2468, %v2482
    %v2485 = vmul.f32 %v2469, %v2483
    %v2487 = vlaneseq
    %v2488 = vshrl.u32 %v2487, 7
    %v2489 = vsub.s32 0, %v2488
    %v2490 = vrot.slane %v2457, %v2489
    %v2492 = vmul.f32 %v2484, %v2490
    %v2493 = vmul.f32 %v2485, %v2490
    %v2495 = vlaneseq
    %v2496 = vshrl.u32 %v2495, 7
    %v2497 = vsub.s32 0, %v2496
    %v2498 = vrot.slane %v2459, %v2497
    %v2500 = vadd.f32 %v2492, %v2498
    %v2501 = vadd.f32 %v2493, %v2498
    %s2502 = scalar_lea.vmem %s8, 32
    %v2503 = vld [vmem:[%s2502] sm:$0xff]
    %v2504 = vld [vmem:[%s2502 + $0x8] sm:$0xff]
    %v2505 = vld [vmem:[%s2502 + $0x10] sm:$0xff]
    %v2506 = vld [vmem:[%s2502 + $0x18] sm:$0xff]
    %s2507 = scalar_lea.vmem %s9, 1
    %v2508 = vld [vmem:[%s2507] sm:$0x1]
    %v2510 = vlaneseq
    %v2511 = vshrl.u32 %v2510, 7
    %v2512 = vsub.s32 0, %v2511
    %v2513 = vrot.slane %v2508, %v2512
    %v2516 = vsel %vm91, %v2500, 0
    %v2519 = vsel %vm91, %v2501, 0
    %2521 = vmatprep.subr.mxu0 0.0
    %2522 = vmatpush1.msra.mxu0 %v2503
    %2523 = vmatprep.subr.mxu0 0.0
    %2524 = vmatpush1.msra.mxu0 %v2504
    %2525 = vmatprep.subr.mxu0 0.0
    %2526 = vmatpush1.msra.mxu0 %v2505
    %2527 = vmatprep.subr.mxu0 0.0
    %2528 = vmatpush1.msra.mxu0 %v2506
    %2529 = vmatprep.subr.mxu0 0.0
    %2530 = vmatpush1.msra.mxu0 0.0
    %2531 = vmatprep.subr.mxu0 0.0
    %2532 = vmatpush1.msra.mxu0 0.0
    %2533 = vmatprep.subr.mxu0 0.0
    %2534 = vmatpush1.msra.mxu0 0.0
    %2535 = vmatprep.subr.mxu0 0.0
    %2536 = vmatpush1.msra.mxu0 0.0
    %2537 = vmatprep.subr.mxu0 0.0
    %2538 = vmatpush1.msra.mxu0 0.0
    %2539 = vmatprep.subr.mxu0 0.0
    %2540 = vmatpush1.msra.mxu0 0.0
    %2541 = vmatprep.subr.mxu0 0.0
    %2542 = vmatpush1.msra.mxu0 0.0
    %2543 = vmatprep.subr.mxu0 0.0
    %2544 = vmatpush1.msra.mxu0 0.0
    %2545 = vmatprep.subr.mxu0 0.0
    %2546 = vmatpush1.msra.mxu0 0.0
    %2547 = vmatprep.subr.mxu0 0.0
    %2548 = vmatpush1.msra.mxu0 0.0
    %2549 = vmatprep.subr.mxu0 0.0
    %2550 = vmatpush1.msra.mxu0 0.0
    %2551 = vmatprep.subr.mxu0 0.0
    %2552 = vmatpush1.msra.mxu0 0.0
    %2553 = vmatprep.subr.mxu0 0.0
    %2554 = vmatpush1.msra.mxu0 0.0
    %2555 = vmatprep.subr.mxu0 0.0
    %2556 = vmatpush1.msra.mxu0 0.0
    %2557 = vmatprep.subr.mxu0 0.0
    %2558 = vmatpush1.msra.mxu0 0.0
    %2559 = vmatprep.subr.mxu0 0.0
    %2560 = vmatpush1.msra.mxu0 0.0
    %2561 = vmatprep.subr.mxu0 0.0
    %2562 = vmatpush1.msra.mxu0 0.0
    %2563 = vmatprep.subr.mxu0 0.0
    %2564 = vmatpush1.msra.mxu0 0.0
    %2565 = vmatprep.subr.mxu0 0.0
    %2566 = vmatpush1.msra.mxu0 0.0
    %2567 = vmatprep.subr.mxu0 0.0
    %2568 = vmatpush1.msra.mxu0 0.0
    %2569 = vmatprep.subr.mxu0 0.0
    %2570 = vmatpush1.msra.mxu0 0.0
    %2571 = vmatprep.subr.mxu0 0.0
    %2572 = vmatpush1.msra.mxu0 0.0
    %2573 = vmatprep.subr.mxu0 0.0
    %2574 = vmatpush1.msra.mxu0 0.0
    %2575 = vmatprep.subr.mxu0 0.0
    %2576 = vmatpush1.msra.mxu0 0.0
    %2577 = vmatprep.subr.mxu0 0.0
    %2578 = vmatpush1.msra.mxu0 0.0
    %2579 = vmatprep.subr.mxu0 0.0
    %2580 = vmatpush1.msra.mxu0 0.0
    %2581 = vmatprep.subr.mxu0 0.0
    %2582 = vmatpush1.msra.mxu0 0.0
    %2583 = vmatprep.subr.mxu0 0.0
    %2584 = vmatpush1.msra.mxu0 0.0
    %2585 = vmatprep.mubr.f32.mxu0 0.0
    %2586 = vmatmul.mubr.f32.gmra.mrb[0].mxu0 %v2516
    %v2587 = vpop.f32.mrb[0].mxu0
    %v2588 = vadd.f32 %v2513, %v2587
    %v2589 = vpop.f32.mrb[0].mxu0
    %2590 = vmatprep.mubr.f32.mxu0 0.0
    %2591 = vmatmul.mubr.f32.gmra.mrb[0].mxu0 %v2519
    %v2592 = vpop.f32.mrb[0].mxu0
    %v2593 = vadd.f32 %v2513, %v2592
    %v2594 = vpop.f32.mrb[0].mxu0
    %2595 = vdwg.mxu0
    %v2596 = vmul.f32 %v2588, 0.5
    %v2597 = vmul.f32 %v2593, 0.5
    %v2598 = vmul.f32 %v2588, 0.70710677
    %v2599 = vmul.f32 %v2593, 0.70710677
    %v2600 = vand.u32 2147483647, %v2598
    %v2601 = vand.u32 2147483647, %v2599
    %v2602 = vmul.f32 %v2600, 0.3275911
    %v2603 = vmul.f32 %v2601, 0.3275911
    %v2604 = vadd.f32 %v2602, 1.0
    %v2605 = vadd.f32 %v2603, 1.0
    %v2606 = vrcp.pop %v2604
    %v2607 = vrcp.pop %v2605
    %v2608 = vmul.f32 %v2606, 1.0614054
    %v2609 = vmul.f32 %v2607, 1.0614054
    %v2610 = vadd.f32 %v2608, -1.4531521
    %v2611 = vadd.f32 %v2609, -1.4531521
    %v2612 = vmul.f32 %v2610, %v2606
    %v2613 = vmul.f32 %v2611, %v2607
    %v2614 = vadd.f32 %v2612, 1.4214138
    %v2615 = vadd.f32 %v2613, 1.4214138
    %v2616 = vmul.f32 %v2614, %v2606
    %v2617 = vmul.f32 %v2615, %v2607
    %v2618 = vadd.f32 %v2616, -0.28449672
    %v2619 = vadd.f32 %v2617, -0.28449672
    %v2620 = vmul.f32 %v2618, %v2606
    %v2621 = vmul.f32 %v2619, %v2607
    %v2622 = vadd.f32 %v2620, 0.2548296
    %v2623 = vadd.f32 %v2621, 0.2548296
    %v2624 = vmul.f32 %v2622, %v2606
    %v2625 = vmul.f32 %v2623, %v2607
    %v2626 = vsub.f32 0.0, %v2600
    %v2627 = vsub.f32 0.0, %v2601
    %v2628 = vmul.f32 %v2626, %v2600
    %v2629 = vmul.f32 %v2627, %v2601
    %v2630 = vmul.f32 %v2628, 1.442695
    %v2631 = vpow.pop %v2630
    %v2632 = vmul.f32 %v2629, 1.442695
    %v2633 = vpow.pop %v2632
    %v2634 = vmul.f32 %v2624, %v2631
    %v2635 = vmul.f32 %v2625, %v2633
    %v2636 = vsub.f32 1.0, %v2634
    %v2637 = vsub.f32 1.0, %v2635
    %vm2638 = vcmp.ge.f32.partialorder %v2598, 0.0
    %vm2639 = vcmp.ge.f32.partialorder %v2599, 0.0
    %v2640 = vsub.f32 0.0, %v2636
    %v2641 = vsub.f32 0.0, %v2637
    %v2642 = vsel %vm2638, %v2636, %v2640
    %v2643 = vsel %vm2639, %v2637, %v2641
    %v2644 = vadd.f32 %v2642, 1.0
    %v2645 = vadd.f32 %v2643, 1.0
    %v2646 = vmul.f32 %v2596, %v2644
    %v2647 = vmul.f32 %v2597, %v2645
    %s2648 = scalar_lea.vmem %s10, 64
    %v2649 = vld [vmem:[%s2648] sm:$0xff]
    %v2650 = vld [vmem:[%s2648 + $0x8] sm:$0xff]
    %v2651 = vld [vmem:[%s2648 + $0x10] sm:$0xff]
    %v2652 = vld [vmem:[%s2648 + $0x18] sm:$0xff]
    %v2653 = vld [vmem:[%s2648 + $0x20] sm:$0xff]
    %v2654 = vld [vmem:[%s2648 + $0x28] sm:$0xff]
    %v2655 = vld [vmem:[%s2648 + $0x30] sm:$0xff]
    %v2656 = vld [vmem:[%s2648 + $0x38] sm:$0xff]
    %s2657 = scalar_lea.vmem %s11, 1
    %v2658 = vld [vmem:[%s2657] sm:$0x1]
    %v2660 = vlaneseq
    %v2661 = vshrl.u32 %v2660, 7
    %v2662 = vsub.s32 0, %v2661
    %v2663 = vrot.slane %v2658, %v2662
    %v2666 = vsel %vm1306, %v2646, 0
    %v2669 = vsel %vm1306, %v2647, 0
    %2671 = vmatprep.subr.mxu0 0.0
    %2672 = vmatpush1.msra.mxu0 %v2649
    %2673 = vmatprep.subr.mxu0 0.0
    %2674 = vmatpush1.msra.mxu0 %v2650
    %2675 = vmatprep.subr.mxu0 0.0
    %2676 = vmatpush1.msra.mxu0 %v2651
    %2677 = vmatprep.subr.mxu0 0.0
    %2678 = vmatpush1.msra.mxu0 %v2652
    %2679 = vmatprep.subr.mxu0 0.0
    %2680 = vmatpush1.msra.mxu0 %v2653
    %2681 = vmatprep.subr.mxu0 0.0
    %2682 = vmatpush1.msra.mxu0 %v2654
    %2683 = vmatprep.subr.mxu0 0.0
    %2684 = vmatpush1.msra.mxu0 %v2655
    %2685 = vmatprep.subr.mxu0 0.0
    %2686 = vmatpush1.msra.mxu0 %v2656
    %2687 = vmatprep.subr.mxu0 0.0
    %2688 = vmatpush1.msra.mxu0 0.0
    %2689 = vmatprep.subr.mxu0 0.0
    %2690 = vmatpush1.msra.mxu0 0.0
    %2691 = vmatprep.subr.mxu0 0.0
    %2692 = vmatpush1.msra.mxu0 0.0
    %2693 = vmatprep.subr.mxu0 0.0
    %2694 = vmatpush1.msra.mxu0 0.0
    %2695 = vmatprep.subr.mxu0 0.0
    %2696 = vmatpush1.msra.mxu0 0.0
    %2697 = vmatprep.subr.mxu0 0.0
    %2698 = vmatpush1.msra.mxu0 0.0
    %2699 = vmatprep.subr.mxu0 0.0
    %2700 = vmatpush1.msra.mxu0 0.0
    %2701 = vmatprep.subr.mxu0 0.0
    %2702 = vmatpush1.msra.mxu0 0.0
    %2703 = vmatprep.subr.mxu0 0.0
    %2704 = vmatpush1.msra.mxu0 0.0
    %2705 = vmatprep.subr.mxu0 0.0
    %2706 = vmatpush1.msra.mxu0 0.0
    %2707 = vmatprep.subr.mxu0 0.0
    %2708 = vmatpush1.msra.mxu0 0.0
    %2709 = vmatprep.subr.mxu0 0.0
    %2710 = vmatpush1.msra.mxu0 0.0
    %2711 = vmatprep.subr.mxu0 0.0
    %2712 = vmatpush1.msra.mxu0 0.0
    %2713 = vmatprep.subr.mxu0 0.0
    %2714 = vmatpush1.msra.mxu0 0.0
    %2715 = vmatprep.subr.mxu0 0.0
    %2716 = vmatpush1.msra.mxu0 0.0
    %2717 = vmatprep.subr.mxu0 0.0
    %2718 = vmatpush1.msra.mxu0 0.0
    %2719 = vmatprep.subr.mxu0 0.0
    %2720 = vmatpush1.msra.mxu0 0.0
    %2721 = vmatprep.subr.mxu0 0.0
    %2722 = vmatpush1.msra.mxu0 0.0
    %2723 = vmatprep.subr.mxu0 0.0
    %2724 = vmatpush1.msra.mxu0 0.0
    %2725 = vmatprep.subr.mxu0 0.0
    %2726 = vmatpush1.msra.mxu0 0.0
    %2727 = vmatprep.subr.mxu0 0.0
    %2728 = vmatpush1.msra.mxu0 0.0
    %2729 = vmatprep.subr.mxu0 0.0
    %2730 = vmatpush1.msra.mxu0 0.0
    %2731 = vmatprep.subr.mxu0 0.0
    %2732 = vmatpush1.msra.mxu0 0.0
    %2733 = vmatprep.subr.mxu0 0.0
    %2734 = vmatpush1.msra.mxu0 0.0
    %2735 = vmatprep.mubr.f32.mxu0 0.0
    %2736 = vmatmul.mubr.f32.gmra.mrb[0].mxu0 %v2666
    %v2737 = vpop.f32.mrb[0].mxu0
    %v2738 = vadd.f32 %v2663, %v2737
    %v2739 = vpop.f32.mrb[0].mxu0
    %2740 = vmatprep.mubr.f32.mxu0 0.0
    %2741 = vmatmul.mubr.f32.gmra.mrb[0].mxu0 %v2669
    %v2742 = vpop.f32.mrb[0].mxu0
    %v2743 = vadd.f32 %v2663, %v2742
    %v2744 = vpop.f32.mrb[0].mxu0
    %2745 = vdwg.mxu0
    %v2746 = vadd.f32 %v2738, %v2500
    %v2747 = vadd.f32 %v2743, %v2501
    %s2748 = scalar_lea.vmem %s12, 1
    %v2749 = vld [vmem:[%s2748] sm:$0x1]
    %s2750 = scalar_lea.vmem %s13, 1
    %v2751 = vld [vmem:[%s2750] sm:$0x1]
    %v2752 = vsel %vm91, %v2746, 0.0
    %2753 = vadd.xlane.f32.xlu0 %v2752
    %v2754 = vpop.xlane.xlu0 %2753
    %v2755 = vsel %vm91, %v2747, 0.0
    %2756 = vadd.xlane.f32.xlu0 %v2755
    %v2757 = vpop.xlane.xlu0 %2756
    %v2758 = vmul.f32 %v2754, %v1110
    %v2759 = vmul.f32 %v2757, %v1110
    %v2760 = vsub.f32 %v2746, %v2758
    %v2761 = vsub.f32 %v2747, %v2759
    %v2762 = vmul.f32 %v2760, %v2760
    %v2763 = vmul.f32 %v2761, %v2761
    %v2764 = vsel %vm91, %v2762, 0.0
    %2765 = vadd.xlane.f32.xlu0 %v2764
    %v2766 = vpop.xlane.xlu0 %2765
    %v2767 = vsel %vm91, %v2763, 0.0
    %2768 = vadd.xlane.f32.xlu0 %v2767
    %v2769 = vpop.xlane.xlu0 %2768
    %v2770 = vmul.f32 %v2766, %v1110
    %v2771 = vmul.f32 %v2769, %v1110
    %v2772 = vadd.f32 %v2770, 1e-12
    %v2773 = vadd.f32 %v2771, 1e-12
    %v2774 = vrsqrt.pop %v2772
    %v2775 = vrsqrt.pop %v2773
    %v2776 = vmul.f32 %v2760, %v2774
    %v2777 = vmul.f32 %v2761, %v2775
    %v2779 = vlaneseq
    %v2780 = vshrl.u32 %v2779, 7
    %v2781 = vsub.s32 0, %v2780
    %v2782 = vrot.slane %v2749, %v2781
    %v2784 = vmul.f32 %v2776, %v2782
    %v2785 = vmul.f32 %v2777, %v2782
    %v2787 = vlaneseq
    %v2788 = vshrl.u32 %v2787, 7
    %v2789 = vsub.s32 0, %v2788
    %v2790 = vrot.slane %v2751, %v2789
    %v2792 = vadd.f32 %v2784, %v2790
    %v2793 = vadd.f32 %v2785, %v2790
    %2794 = vst.msk [vmem:[#allocation7] sm:$0xff] %vm91, %v2792
    %2795 = vst.msk [vmem:[#allocation7 + $0x8] sm:$0xff] %vm91, %v2793
    // Predicated region
    $region66: #{tpu_custom_call.1} parent=1 // pred_check
      _
    $region67: #{tpu_custom_call.1} parent=1 // pred_check_branch
      %2797 = sbr.rel (0) target = $region69
    $region68: #{tpu_custom_call.1} parent=1 // pred_region
      %s2799 = ssub.s32 256, 256
      %2800 = vsyncadd [#allocation4], %s2799
      %s2801 = sshll.u32 [#allocation7], 4
      %s2802 = int_to_ptr.vmem [resolvable:$true] %s2801
      %2807 = dma.vmem_to_hbm [thread:$0]  %s2802, 256, %s14, [#allocation4], 128, 128, 8
    $region69: #{tpu_custom_call.1} parent=1 // pred_fallthru
      _
    // Predicated region
    $region70: #{tpu_custom_call.1} parent=1 // pred_check
      _
    $region71: #{tpu_custom_call.1} parent=1 // pred_check_branch
      %2809 = sbr.rel (0) target = $region73
    $region72: #{tpu_custom_call.1} parent=1 // pred_region
      %2810 = dma.done [#allocation4], 256
    $region73: #{tpu_custom_call.1} parent=1 // pred_fallthru
      _
    %2811 = vsyncpa [#allocation3], 1
    %2812 = vsyncpa [#allocation6], 1
    %2813 = vsyncpa [#allocation4], 1

</llo_original>
